<compile_context>
chip_gen: v6e
topology: v6e:2x2x1
jax: 0.10.0
libtpu: 0.0.40
codegen_flags: <defaults>
</compile_context>

<pallas_src>
import functools
import math

import jax
import jax.numpy as jnp
from jax.experimental import pallas as pl
from jax.experimental.pallas import tpu as pltpu

# ------------------------- small synthetic config ---------------------------
D_MODEL = 32             # d_model            (256 in the real module)
NUM_HEADS = 4            # encodec default is 8
NUM_LAYERS = 2           # small synthetic streaming-transformer stack
HIDDEN_SCALE = 4         # dim_feedforward = 4 * d_model (encodec default)
PAST_CONTEXT = 1000      # encodec streaming attention window
MAX_PERIOD = 10000.0
VOCAB_SCORE = 64         # vocab_size_score    (512 in the real module)
VOCAB_ACOUSTIC = 128     # vocab_size_acoustic (1024 in the real module)
NUM_STYLES = 4
MAX_POS = 64             # pos_emb rows        (4096 in the real module)
LN_EPS = 1e-5
NEG_INF = -1e30          # f32 mask fill (scores are kept in f32)


# ------------------------------ kernel helpers -------------------------------
def _layernorm(x, gb):
    """x: (T, D) f32; gb: (2, D) f32 with row0 = gamma, row1 = beta."""
    g = gb[0:1, :]
    b = gb[1:2, :]
    mu = jnp.mean(x, axis=-1, keepdims=True)
    var = jnp.mean(jnp.square(x - mu), axis=-1, keepdims=True)
    return (x - mu) * jax.lax.rsqrt(var + LN_EPS) * g + b


# -------------------- single fused forward-pass kernel -----------------------
def _fused_forward_kernel(
        score_ref,      # (1, Ts, D) f32   embedded score tokens for this batch elem
        style_ref,      # (1, 1, D)  f32   embedded style label
        posl_ref,       # (T, D)     f32   learned positional embedding slice
        sinpos_ref,     # (T, D)     f32   encodec sinusoidal positional embedding
        normin_ref,     # (2, D)     f32   norm_in gamma/beta
        past_ref,       # (L, 1, Hp, D) f32  cached normed inputs per layer
        ln1_ref,        # (L, 2, D)  f32
        ln2_ref,        # (L, 2, D)  f32
        wq_ref,         # (L, D, D)   bf16   fused Q projection
        bq_ref,         # (L, 1, D)   f32
        wkv_ref,        # (L, D, 2D)  bf16   fused K‖V projection
        bkv_ref,        # (L, 1, 2D)  f32
        wo_ref,         # (L, D, D)   bf16   output projection
        bo_ref,         # (L, 1, D)   f32
        w1_ref,         # (L, D, Dff) bf16
        b1_ref,         # (L, 1, Dff) f32
        w2_ref,         # (L, Dff, D) bf16
        b2_ref,         # (L, 1, D)   f32
        outw_ref,       # (D, V)      bf16
        outb_ref,       # (1, V)      f32
        logits_ref,     # (1, T, V)   f32   out
        newstate_ref,   # (L, 1, Hp+T, D) f32  out: [past ‖ new normed inputs]
        *, num_heads, num_layers, past_context):
    T, D = posl_ref.shape
    Hp = past_ref.shape[2]
    S = T + Hp
    hd = D // num_heads
    scale = 1.0 / math.sqrt(hd)

    # ---- cond feature: score_emb(score).mean(1) + style_emb(style) ----
    cond = jnp.mean(score_ref[0], axis=0, keepdims=True) + style_ref[0]   # (1, D)
    tgt = posl_ref[...] + cond                                            # (T, D)

    # ---- encodec StreamingTransformerEncoder: norm_in + sinusoidal pos ----
    x = _layernorm(tgt, normin_ref[...]) + sinpos_ref[...]                # (T, D) f32

    # streaming mask: query at abs pos Hp+i, key at abs pos j,
    # valid iff 0 <= (Hp + i - j) <= past_context   (same for every layer)
    q_pos = jax.lax.broadcasted_iota(jnp.int32, (T, S), 0) + Hp
    k_pos = jax.lax.broadcasted_iota(jnp.int32, (T, S), 1)
    delta = q_pos - k_pos
    valid = jnp.logical_and(delta >= 0, delta <= past_context)            # (T, S)

    for l in range(num_layers):                    # static unroll (L=2, tiny)
        x_past = past_ref[l, 0]                                           # (Hp, D)

        # ---- pre-norm self-attention block (norm_first=True) ----
        sa_in = _layernorm(x, ln1_ref[l])                                 # (T, D)

        # new streaming state for this layer written with two direct slab
        # stores (no concatenate); the freshly written output block then
        # doubles as the VMEM KV-source buffer for this layer.
        newstate_ref[l, 0, :Hp, :] = x_past
        newstate_ref[l, 0, Hp:, :] = sa_in
        kv_bf = newstate_ref[l, 0].astype(jnp.bfloat16)                   # (S, D)
        sa_bf = sa_in.astype(jnp.bfloat16)

        # fused, lane-dense projections: one K=D matmul each
        q = jnp.dot(sa_bf, wq_ref[l],
                    preferred_element_type=jnp.float32) + bq_ref[l]       # (T, D)
        kv = jnp.dot(kv_bf, wkv_ref[l],
                     preferred_element_type=jnp.float32) + bkv_ref[l]     # (S, 2D)
        # NOTE: Q/K/V are rounded to bf16 after the f32 bias add (MXU
        # operands); tiny deviation vs an all-f32 reference attention.
        q_bf = q.astype(jnp.bfloat16)
        k_bf = kv[:, :D].astype(jnp.bfloat16)                             # (S, D)
        v_bf = kv[:, D:].astype(jnp.bfloat16)                             # (S, D)

        ctxs = []
        for h in range(num_heads):                 # static unroll over heads
            lo = h * hd
            qh = q_bf[:, lo:lo + hd]                                      # (T, hd)
            kh = k_bf[:, lo:lo + hd]                                      # (S, hd)
            vh = v_bf[:, lo:lo + hd]                                      # (S, hd)

            sc = jax.lax.dot_general(
                qh, kh, (((1,), (1,)), ((), ())),
                preferred_element_type=jnp.float32) * scale               # (T, S) f32
            sc = jnp.where(valid, sc, NEG_INF)

            # softmax in f32 with EUP reciprocal (no VPU divides)
            m = jnp.max(sc, axis=-1, keepdims=True)
            e = jnp.exp(sc - m)
            p = e * pl.reciprocal(jnp.sum(e, axis=-1, keepdims=True), approx=True)

            ctxs.append(jnp.dot(p.astype(jnp.bfloat16), vh,
                                preferred_element_type=jnp.float32))      # (T, hd)

        # lane-concat of the head contexts, then ONE K=D out-projection
        ctx = jnp.concatenate(ctxs, axis=-1)                              # (T, D)
        attn = jnp.dot(ctx.astype(jnp.bfloat16), wo_ref[l],
                       preferred_element_type=jnp.float32) + bo_ref[l]    # (T, D)
        x1 = x + attn

        # ---- pre-norm feed-forward block ----
        y = _layernorm(x1, ln2_ref[l])
        h1 = jnp.dot(y.astype(jnp.bfloat16), w1_ref[l],
                     preferred_element_type=jnp.float32) + b1_ref[l]
        # TODO(synk): PyTorch F.gelu is exact (erf); tanh approx used for Mosaic-safe lowering.
        h1 = jax.nn.gelu(h1, approximate=True)
        x = x1 + jnp.dot(h1.astype(jnp.bfloat16), w2_ref[l],
                         preferred_element_type=jnp.float32) + b2_ref[l]

    # ---- output projection (lane-dense V=128 last dim) ----
    logits_ref[0] = jnp.dot(x.astype(jnp.bfloat16), outw_ref[...],
                            preferred_element_type=jnp.float32) + outb_ref[...]


def guqin_fused_forward(score_embedded, style_feat, pos_slice, sin_pos,
                        params, past_states):
    L, B, Hp, D = past_states.shape
    Ts = score_embedded.shape[1]
    T = pos_slice.shape[0]
    V = params["out_w"].shape[-1]
    Dff = params["w1"].shape[-1]
    H = NUM_HEADS

    kernel = functools.partial(_fused_forward_kernel, num_heads=H,
                               num_layers=L, past_context=PAST_CONTEXT)

    def const(ndim):
        return lambda b, n=ndim: (0,) * n

    logits, new_states = pl.pallas_call(
        kernel,
        out_shape=(jax.ShapeDtypeStruct((B, T, V), jnp.float32),
                   jax.ShapeDtypeStruct((L, B, Hp + T, D), jnp.float32)),
        grid=(B,),
        in_specs=[
            pl.BlockSpec((1, Ts, D), lambda b: (b, 0, 0)),        # score_embedded
            pl.BlockSpec((1, 1, D), lambda b: (b, 0, 0)),         # style_feat
            pl.BlockSpec((T, D), const(2)),                       # learned pos slice
            pl.BlockSpec((T, D), const(2)),                       # sinusoidal pos
            pl.BlockSpec((2, D), const(2)),                       # norm_in
            pl.BlockSpec((L, 1, Hp, D), lambda b: (0, b, 0, 0)),  # past states
            pl.BlockSpec((L, 2, D), const(3)),                    # ln1
            pl.BlockSpec((L, 2, D), const(3)),                    # ln2
            pl.BlockSpec((L, D, D), const(3)),                    # wq (bf16)
            pl.BlockSpec((L, 1, D), const(3)),                    # bq
            pl.BlockSpec((L, D, 2 * D), const(3)),                # wkv (bf16)
            pl.BlockSpec((L, 1, 2 * D), const(3)),                # bkv
            pl.BlockSpec((L, D, D), const(3)),                    # wo (bf16)
            pl.BlockSpec((L, 1, D), const(3)),                    # bo
            pl.BlockSpec((L, D, Dff), const(3)),                  # w1 (bf16)
            pl.BlockSpec((L, 1, Dff), const(3)),                  # b1
            pl.BlockSpec((L, Dff, D), const(3)),                  # w2 (bf16)
            pl.BlockSpec((L, 1, D), const(3)),                    # b2
            pl.BlockSpec((D, V), const(2)),                       # out_w (bf16)
            pl.BlockSpec((1, V), const(2)),                       # out_b
        ],
        out_specs=(pl.BlockSpec((1, T, V), lambda b: (b, 0, 0)),
                   pl.BlockSpec((L, 1, Hp + T, D), lambda b: (0, b, 0, 0))),
        compiler_params=pltpu.CompilerParams(
            dimension_semantics=("parallel",),
            # explicit scoped-VMEM budget: safe on v5e/v6e/v7x and far above
            # what these small blocks need; re-derive at production shapes.
            vmem_limit_bytes=32 * 1024 * 1024,
        ),
    )(score_embedded, style_feat, pos_slice, sin_pos, params["norm_in"],
      past_states, params["ln1"], params["ln2"], params["wq"], params["bq"],
      params["wkv"], params["bkv"], params["wo"], params["bo"],
      params["w1"], params["b1"], params["w2"], params["b2"],
      params["out_w"], params["out_b"])
    return logits, new_states


# ------------------------------ plain-JAX glue --------------------------------
def create_sin_embedding(positions, dim, max_period=MAX_PERIOD):
    half = dim // 2
    adim = jnp.arange(half, dtype=jnp.float32)[None, :]
    phase = positions.astype(jnp.float32)[:, None] / (max_period ** (adim / (half - 1)))
    return jnp.concatenate([jnp.cos(phase), jnp.sin(phase)], axis=-1)   # (T, dim)


def init_params(key):
    ks = jax.random.split(key, 10)

    def nrm(k, shape, scale=0.02, dtype=jnp.float32):
        return (scale * jax.random.normal(k, shape, dtype=jnp.float32)).astype(dtype)

    L, H = NUM_LAYERS, NUM_HEADS
    D = D_MODEL
    dff = HIDDEN_SCALE * D
    ln_id = jnp.stack([jnp.ones((D,), jnp.float32),
                       jnp.zeros((D,), jnp.float32)])                  # (2, D)
    return {
        "score_emb": nrm(ks[0], (VOCAB_SCORE, D)),
        "style_emb": nrm(ks[1], (NUM_STYLES, D)),
        "pos_emb":   nrm(ks[2], (MAX_POS, D)),
        "out_w":     nrm(ks[3], (D, VOCAB_ACOUSTIC), dtype=jnp.bfloat16),
        "out_b":     jnp.zeros((1, VOCAB_ACOUSTIC), jnp.float32),
        "norm_in":   ln_id,
        "ln1":       jnp.tile(ln_id[None], (L, 1, 1)),                 # (L, 2, D)
        "ln2":       jnp.tile(ln_id[None], (L, 1, 1)),
        # lane-dense fused projection weights: Q is (L,D,D), K‖V is (L,D,2D)
        "wq":        nrm(ks[4], (L, D, D), dtype=jnp.bfloat16),
        "bq":        jnp.zeros((L, 1, D), jnp.float32),
        "wkv":       nrm(ks[5], (L, D, 2 * D), dtype=jnp.bfloat16),
        "bkv":       jnp.zeros((L, 1, 2 * D), jnp.float32),
        "wo":        nrm(ks[6], (L, D, D), dtype=jnp.bfloat16),
        "bo":        jnp.zeros((L, 1, D), jnp.float32),
        "w1":        nrm(ks[7], (L, D, dff), dtype=jnp.bfloat16),
        "b1":        jnp.zeros((L, 1, dff), jnp.float32),
        "w2":        nrm(ks[8], (L, dff, D), dtype=jnp.bfloat16),
        "b2":        jnp.zeros((L, 1, D), jnp.float32),
    }


def guqin_forward(params, score_tokens, style_labels, targets, states=None, offset=0):
    """Mirrors GuqinTransformerFromEncodec.forward; only targets.shape is used."""
    B, T = targets.shape
    D = D_MODEL
    pos_slice = params["pos_emb"][:T]                                 # torch.arange(T) indexing

    if score_tokens is not None and style_labels is not None:
        score_embedded = params["score_emb"][score_tokens]            # (B, Ts, D) gather (glue)
        style_feat = params["style_emb"][style_labels].reshape(B, 1, D)
    else:
        # zero conditioning -> tgt_feat = pos_emb only (matches reference branch)
        score_embedded = jnp.zeros((B, 1, D), jnp.float32)
        style_feat = jnp.zeros((B, 1, D), jnp.float32)

    if states is None:
        # one cached (normed-input) slot per layer, initialised to a single zero step
        states = [jnp.zeros((B, 1, D), jnp.float32) for _ in range(NUM_LAYERS)]
    past = jnp.stack(states, axis=0)                                  # (L, B, Hp, D)

    sin_pos = create_sin_embedding(jnp.arange(T) + offset, D)         # (T, D)

    logits, new_stacked = guqin_fused_forward(score_embedded, style_feat,
                                              pos_slice, sin_pos, params, past)

    new_states = [new_stacked[l] for l in range(NUM_LAYERS)]
    # TODO(synk): at production streaming shapes replace this full-cache
    #             re-slice with an input_output_aliases ring buffer so only the
    #             T new rows cross HBM per call.
    if new_states[0].shape[1] > PAST_CONTEXT:                         # static-shape truncation
        new_states = [s[:, -PAST_CONTEXT:] for s in new_states]
    return logits, new_states, offset + T


if __name__ == "__main__":
    key = jax.random.PRNGKey(0)
    pkey, k1, k2, k3 = jax.random.split(key, 4)
    params = init_params(pkey)

    B, T_SCORE, T_TARGET = 2, 16, 8
    score_tokens = jax.random.randint(k1, (B, T_SCORE), 0, VOCAB_SCORE)
    style_labels = jax.random.randint(k2, (B,), 0, NUM_STYLES)
    targets = jax.random.randint(k3, (B, T_TARGET), 0, VOCAB_ACOUSTIC)

    logits, states, offset = guqin_forward(params, score_tokens, style_labels, targets)
    jax.block_until_ready(logits)
    jax.block_until_ready(states)
    assert logits.shape == (B, T_TARGET, VOCAB_ACOUSTIC)
    assert len(states) == NUM_LAYERS and states[0].shape == (B, 1 + T_TARGET, D_MODEL)
    assert offset == T_TARGET
    print("KERNEL_OK")
</pallas_src>

<mosaic_0001>
module attributes {stable_mosaic.version = 11 : i64} {
  func.func @_fused_forward_kernel(%arg0: i32, %arg1: memref<1x16x32xf32, #tpu.memory_space<vmem>>, %arg2: memref<1x1x32xf32, #tpu.memory_space<vmem>>, %arg3: memref<8x32xf32, #tpu.memory_space<vmem>>, %arg4: memref<8x32xf32, #tpu.memory_space<vmem>>, %arg5: memref<2x32xf32, #tpu.memory_space<vmem>>, %arg6: memref<2x1x1x32xf32, #tpu.memory_space<vmem>>, %arg7: memref<2x2x32xf32, #tpu.memory_space<vmem>>, %arg8: memref<2x2x32xf32, #tpu.memory_space<vmem>>, %arg9: memref<2x32x32xbf16, #tpu.memory_space<vmem>>, %arg10: memref<2x1x32xf32, #tpu.memory_space<vmem>>, %arg11: memref<2x32x64xbf16, #tpu.memory_space<vmem>>, %arg12: memref<2x1x64xf32, #tpu.memory_space<vmem>>, %arg13: memref<2x32x32xbf16, #tpu.memory_space<vmem>>, %arg14: memref<2x1x32xf32, #tpu.memory_space<vmem>>, %arg15: memref<2x32x128xbf16, #tpu.memory_space<vmem>>, %arg16: memref<2x1x128xf32, #tpu.memory_space<vmem>>, %arg17: memref<2x128x32xbf16, #tpu.memory_space<vmem>>, %arg18: memref<2x1x32xf32, #tpu.memory_space<vmem>>, %arg19: memref<32x128xbf16, #tpu.memory_space<vmem>>, %arg20: memref<1x128xf32, #tpu.memory_space<vmem>>, %arg21: memref<1x8x128xf32, #tpu.memory_space<vmem>>, %arg22: memref<2x1x9x32xf32, #tpu.memory_space<vmem>>) attributes {dimension_semantics = [#tpu.dimension_semantics<parallel>], iteration_bounds = array<i64: 2>, scalar_prefetch = 0 : i64, scratch_operands = 0 : i64, tpu.core_type = #tpu.core_type<tc>, window_params = [{transform_indices = @transform_0, window_bounds = array<i64: 1, 16, 32>}, {transform_indices = @transform_1, window_bounds = array<i64: 1, 1, 32>}, {pipeline_mode = #tpu.pipeline_mode<synchronous>, transform_indices = @transform_2, window_bounds = array<i64: 8, 32>}, {pipeline_mode = #tpu.pipeline_mode<synchronous>, transform_indices = @transform_3, window_bounds = array<i64: 8, 32>}, {pipeline_mode = #tpu.pipeline_mode<synchronous>, transform_indices = @transform_4, window_bounds = array<i64: 2, 32>}, {transform_indices = @transform_5, window_bounds = array<i64: 2, 1, 1, 32>}, {pipeline_mode = #tpu.pipeline_mode<synchronous>, transform_indices = @transform_6, window_bounds = array<i64: 2, 2, 32>}, {pipeline_mode = #tpu.pipeline_mode<synchronous>, transform_indices = @transform_7, window_bounds = array<i64: 2, 2, 32>}, {pipeline_mode = #tpu.pipeline_mode<synchronous>, transform_indices = @transform_8, window_bounds = array<i64: 2, 32, 32>}, {pipeline_mode = #tpu.pipeline_mode<synchronous>, transform_indices = @transform_9, window_bounds = array<i64: 2, 1, 32>}, {pipeline_mode = #tpu.pipeline_mode<synchronous>, transform_indices = @transform_10, window_bounds = array<i64: 2, 32, 64>}, {pipeline_mode = #tpu.pipeline_mode<synchronous>, transform_indices = @transform_11, window_bounds = array<i64: 2, 1, 64>}, {pipeline_mode = #tpu.pipeline_mode<synchronous>, transform_indices = @transform_12, window_bounds = array<i64: 2, 32, 32>}, {pipeline_mode = #tpu.pipeline_mode<synchronous>, transform_indices = @transform_13, window_bounds = array<i64: 2, 1, 32>}, {pipeline_mode = #tpu.pipeline_mode<synchronous>, transform_indices = @transform_14, window_bounds = array<i64: 2, 32, 128>}, {pipeline_mode = #tpu.pipeline_mode<synchronous>, transform_indices = @transform_15, window_bounds = array<i64: 2, 1, 128>}, {pipeline_mode = #tpu.pipeline_mode<synchronous>, transform_indices = @transform_16, window_bounds = array<i64: 2, 128, 32>}, {pipeline_mode = #tpu.pipeline_mode<synchronous>, transform_indices = @transform_17, window_bounds = array<i64: 2, 1, 32>}, {pipeline_mode = #tpu.pipeline_mode<synchronous>, transform_indices = @transform_18, window_bounds = array<i64: 32, 128>}, {pipeline_mode = #tpu.pipeline_mode<synchronous>, transform_indices = @transform_19, window_bounds = array<i64: 1, 128>}, {transform_indices = @transform_20, window_bounds = array<i64: 1, 8, 128>}, {transform_indices = @transform_21, window_bounds = array<i64: 2, 1, 9, 32>}]} {
    %c0 = arith.constant 0 : index
    %c0_0 = arith.constant 0 : index
    %c0_1 = arith.constant 0 : index
    %0 = vector.load %arg1[%c0, %c0_0, %c0_1] : memref<1x16x32xf32, #tpu.memory_space<vmem>>, vector<1x16x32xf32>
    %1 = vector.shape_cast %0 : vector<1x16x32xf32> to vector<16x32xf32>
    %cst = arith.constant dense<0.000000e+00> : vector<32xf32>
    %2 = vector.multi_reduction <add>, %1, %cst [0] : vector<16x32xf32> to vector<32xf32>
    %3 = vector.shape_cast %2 : vector<32xf32> to vector<1x32xf32>
    %cst_2 = arith.constant 1.600000e+01 : f32
    %4 = vector.broadcast %cst_2 : f32 to vector<1x32xf32>
    %5 = arith.divf %3, %4 : vector<1x32xf32>
    %c0_3 = arith.constant 0 : index
    %c0_4 = arith.constant 0 : index
    %c0_5 = arith.constant 0 : index
    %6 = vector.load %arg2[%c0_3, %c0_4, %c0_5] : memref<1x1x32xf32, #tpu.memory_space<vmem>>, vector<1x1x32xf32>
    %7 = vector.shape_cast %6 : vector<1x1x32xf32> to vector<1x32xf32>
    %8 = arith.addf %5, %7 : vector<1x32xf32>
    %c0_6 = arith.constant 0 : index
    %c0_7 = arith.constant 0 : index
    %9 = vector.load %arg3[%c0_6, %c0_7] : memref<8x32xf32, #tpu.memory_space<vmem>>, vector<8x32xf32>
    %10 = vector.broadcast %8 : vector<1x32xf32> to vector<8x32xf32>
    %11 = arith.addf %9, %10 : vector<8x32xf32>
    %c0_8 = arith.constant 0 : index
    %c0_9 = arith.constant 0 : index
    %12 = vector.load %arg5[%c0_8, %c0_9] : memref<2x32xf32, #tpu.memory_space<vmem>>, vector<2x32xf32>
    %13 = vector.extract_strided_slice %12 {offsets = [0, 0], sizes = [1, 32], strides = [1, 1]} : vector<2x32xf32> to vector<1x32xf32>
    %14 = vector.extract_strided_slice %12 {offsets = [1, 0], sizes = [1, 32], strides = [1, 1]} : vector<2x32xf32> to vector<1x32xf32>
    %cst_10 = arith.constant dense<0.000000e+00> : vector<8xf32>
    %15 = vector.multi_reduction <add>, %11, %cst_10 [1] : vector<8x32xf32> to vector<8xf32>
    %16 = vector.shape_cast %15 : vector<8xf32> to vector<8x1xf32>
    %cst_11 = arith.constant 3.200000e+01 : f32
    %17 = vector.broadcast %cst_11 : f32 to vector<8x1xf32>
    %18 = arith.divf %16, %17 : vector<8x1xf32>
    %19 = vector.broadcast %18 : vector<8x1xf32> to vector<8x32xf32>
    %20 = arith.subf %11, %19 : vector<8x32xf32>
    %21 = arith.mulf %20, %20 : vector<8x32xf32>
    %cst_12 = arith.constant dense<0.000000e+00> : vector<8xf32>
    %22 = vector.multi_reduction <add>, %21, %cst_12 [1] : vector<8x32xf32> to vector<8xf32>
    %23 = vector.shape_cast %22 : vector<8xf32> to vector<8x1xf32>
    %cst_13 = arith.constant 3.200000e+01 : f32
    %24 = vector.broadcast %cst_13 : f32 to vector<8x1xf32>
    %25 = arith.divf %23, %24 : vector<8x1xf32>
    %26 = vector.broadcast %18 : vector<8x1xf32> to vector<8x32xf32>
    %27 = arith.subf %11, %26 : vector<8x32xf32>
    %cst_14 = arith.constant 9.99999974E-6 : f32
    %28 = vector.broadcast %cst_14 : f32 to vector<8x1xf32>
    %29 = arith.addf %25, %28 : vector<8x1xf32>
    %30 = math.rsqrt %29 : vector<8x1xf32>
    %31 = vector.broadcast %30 : vector<8x1xf32> to vector<8x32xf32>
    %32 = arith.mulf %27, %31 : vector<8x32xf32>
    %33 = vector.broadcast %13 : vector<1x32xf32> to vector<8x32xf32>
    %34 = arith.mulf %32, %33 : vector<8x32xf32>
    %35 = vector.broadcast %14 : vector<1x32xf32> to vector<8x32xf32>
    %36 = arith.addf %34, %35 : vector<8x32xf32>
    %c0_15 = arith.constant 0 : index
    %c0_16 = arith.constant 0 : index
    %37 = vector.load %arg4[%c0_15, %c0_16] : memref<8x32xf32, #tpu.memory_space<vmem>>, vector<8x32xf32>
    %38 = arith.addf %36, %37 : vector<8x32xf32>
    %39 = tpu.iota {dimensions = array<i32: 0>} : vector<8x9xi32>
    %c1_i32 = arith.constant 1 : i32
    %40 = vector.broadcast %c1_i32 : i32 to vector<8x9xi32>
    %41 = arith.addi %39, %40 : vector<8x9xi32>
    %42 = tpu.iota {dimensions = array<i32: 1>} : vector<8x9xi32>
    %43 = arith.subi %41, %42 : vector<8x9xi32>
    %c0_i32 = arith.constant 0 : i32
    %44 = vector.broadcast %c0_i32 : i32 to vector<8x9xi32>
    %45 = arith.cmpi sge, %43, %44 : vector<8x9xi32>
    %c1000_i32 = arith.constant 1000 : i32
    %46 = vector.broadcast %c1000_i32 : i32 to vector<8x9xi32>
    %47 = arith.cmpi sle, %43, %46 : vector<8x9xi32>
    %48 = arith.andi %45, %47 : vector<8x9xi1>
    %c0_17 = arith.constant 0 : index
    %c0_18 = arith.constant 0 : index
    %c0_19 = arith.constant 0 : index
    %c0_20 = arith.constant 0 : index
    %49 = vector.load %arg6[%c0_17, %c0_18, %c0_19, %c0_20] : memref<2x1x1x32xf32, #tpu.memory_space<vmem>>, vector<1x1x1x32xf32>
    %50 = vector.shape_cast %49 : vector<1x1x1x32xf32> to vector<1x32xf32>
    %c0_21 = arith.constant 0 : index
    %c0_22 = arith.constant 0 : index
    %c0_23 = arith.constant 0 : index
    %51 = vector.load %arg7[%c0_21, %c0_22, %c0_23] : memref<2x2x32xf32, #tpu.memory_space<vmem>>, vector<1x2x32xf32>
    %52 = vector.shape_cast %51 : vector<1x2x32xf32> to vector<2x32xf32>
    %53 = vector.extract_strided_slice %52 {offsets = [0, 0], sizes = [1, 32], strides = [1, 1]} : vector<2x32xf32> to vector<1x32xf32>
    %54 = vector.extract_strided_slice %52 {offsets = [1, 0], sizes = [1, 32], strides = [1, 1]} : vector<2x32xf32> to vector<1x32xf32>
    %cst_24 = arith.constant dense<0.000000e+00> : vector<8xf32>
    %55 = vector.multi_reduction <add>, %38, %cst_24 [1] : vector<8x32xf32> to vector<8xf32>
    %56 = vector.shape_cast %55 : vector<8xf32> to vector<8x1xf32>
    %cst_25 = arith.constant 3.200000e+01 : f32
    %57 = vector.broadcast %cst_25 : f32 to vector<8x1xf32>
    %58 = arith.divf %56, %57 : vector<8x1xf32>
    %59 = vector.broadcast %58 : vector<8x1xf32> to vector<8x32xf32>
    %60 = arith.subf %38, %59 : vector<8x32xf32>
    %61 = arith.mulf %60, %60 : vector<8x32xf32>
    %cst_26 = arith.constant dense<0.000000e+00> : vector<8xf32>
    %62 = vector.multi_reduction <add>, %61, %cst_26 [1] : vector<8x32xf32> to vector<8xf32>
    %63 = vector.shape_cast %62 : vector<8xf32> to vector<8x1xf32>
    %cst_27 = arith.constant 3.200000e+01 : f32
    %64 = vector.broadcast %cst_27 : f32 to vector<8x1xf32>
    %65 = arith.divf %63, %64 : vector<8x1xf32>
    %66 = vector.broadcast %58 : vector<8x1xf32> to vector<8x32xf32>
    %67 = arith.subf %38, %66 : vector<8x32xf32>
    %cst_28 = arith.constant 9.99999974E-6 : f32
    %68 = vector.broadcast %cst_28 : f32 to vector<8x1xf32>
    %69 = arith.addf %65, %68 : vector<8x1xf32>
    %70 = math.rsqrt %69 : vector<8x1xf32>
    %71 = vector.broadcast %70 : vector<8x1xf32> to vector<8x32xf32>
    %72 = arith.mulf %67, %71 : vector<8x32xf32>
    %73 = vector.broadcast %53 : vector<1x32xf32> to vector<8x32xf32>
    %74 = arith.mulf %72, %73 : vector<8x32xf32>
    %75 = vector.broadcast %54 : vector<1x32xf32> to vector<8x32xf32>
    %76 = arith.addf %74, %75 : vector<8x32xf32>
    %c0_29 = arith.constant 0 : index
    %c0_30 = arith.constant 0 : index
    %c0_31 = arith.constant 0 : index
    %c0_32 = arith.constant 0 : index
    %77 = vector.load %arg22[%c0_29, %c0_30, %c0_31, %c0_32] : memref<2x1x9x32xf32, #tpu.memory_space<vmem>>, vector<1x1x1x32xf32>
    %78 = vector.shape_cast %77 : vector<1x1x1x32xf32> to vector<1x32xf32>
    %79 = vector.shape_cast %50 : vector<1x32xf32> to vector<1x1x1x32xf32>
    tpu.vector_store %arg22[%c0_29, %c0_30, %c0_31, %c0_32], %79 {strides = array<i32>} : memref<2x1x9x32xf32, #tpu.memory_space<vmem>>, vector<1x1x1x32xf32>,
    %c0_33 = arith.constant 0 : index
    %c0_34 = arith.constant 0 : index
    %c1 = arith.constant 1 : index
    %c0_35 = arith.constant 0 : index
    %80 = vector.load %arg22[%c0_33, %c0_34, %c1, %c0_35] : memref<2x1x9x32xf32, #tpu.memory_space<vmem>>, vector<1x1x8x32xf32>
    %81 = vector.shape_cast %80 : vector<1x1x8x32xf32> to vector<8x32xf32>
    %82 = vector.shape_cast %76 : vector<8x32xf32> to vector<1x1x8x32xf32>
    tpu.vector_store %arg22[%c0_33, %c0_34, %c1, %c0_35], %82 {strides = array<i32>} : memref<2x1x9x32xf32, #tpu.memory_space<vmem>>, vector<1x1x8x32xf32>,
    %c0_36 = arith.constant 0 : index
    %c0_37 = arith.constant 0 : index
    %c0_38 = arith.constant 0 : index
    %c0_39 = arith.constant 0 : index
    %83 = vector.load %arg22[%c0_36, %c0_37, %c0_38, %c0_39] : memref<2x1x9x32xf32, #tpu.memory_space<vmem>>, vector<1x1x9x32xf32>
    %84 = vector.shape_cast %83 : vector<1x1x9x32xf32> to vector<9x32xf32>
    %85 = arith.truncf %84 : vector<9x32xf32> to vector<9x32xbf16>
    %86 = arith.truncf %76 : vector<8x32xf32> to vector<8x32xbf16>
    %c0_40 = arith.constant 0 : index
    %c0_41 = arith.constant 0 : index
    %c0_42 = arith.constant 0 : index
    %87 = vector.load %arg9[%c0_40, %c0_41, %c0_42] : memref<2x32x32xbf16, #tpu.memory_space<vmem>>, vector<1x32x32xbf16>
    %88 = vector.shape_cast %87 : vector<1x32x32xbf16> to vector<32x32xbf16>
    %cst_43 = arith.constant dense<0.000000e+00> : vector<8x32xf32>
    %89 = tpu.matmul %86, %88, %cst_43 {dimension_numbers = #tpu.dot_dimension_numbers<[1], [0], [0], [1], [0, 0, 1, 1], [], []>} : vector<8x32xbf16>, vector<32x32xbf16>, vector<8x32xf32> -> vector<8x32xf32>
    %c0_44 = arith.constant 0 : index
    %c0_45 = arith.constant 0 : index
    %c0_46 = arith.constant 0 : index
    %90 = vector.load %arg10[%c0_44, %c0_45, %c0_46] : memref<2x1x32xf32, #tpu.memory_space<vmem>>, vector<1x1x32xf32>
    %91 = vector.shape_cast %90 : vector<1x1x32xf32> to vector<1x32xf32>
    %92 = vector.broadcast %91 : vector<1x32xf32> to vector<8x32xf32>
    %93 = arith.addf %89, %92 : vector<8x32xf32>
    %c0_47 = arith.constant 0 : index
    %c0_48 = arith.constant 0 : index
    %c0_49 = arith.constant 0 : index
    %94 = vector.load %arg11[%c0_47, %c0_48, %c0_49] : memref<2x32x64xbf16, #tpu.memory_space<vmem>>, vector<1x32x64xbf16>
    %95 = vector.shape_cast %94 : vector<1x32x64xbf16> to vector<32x64xbf16>
    %cst_50 = arith.constant dense<0.000000e+00> : vector<9x64xf32>
    %96 = tpu.matmul %85, %95, %cst_50 {dimension_numbers = #tpu.dot_dimension_numbers<[1], [0], [0], [1], [0, 0, 1, 1], [], []>} : vector<9x32xbf16>, vector<32x64xbf16>, vector<9x64xf32> -> vector<9x64xf32>
    %c0_51 = arith.constant 0 : index
    %c0_52 = arith.constant 0 : index
    %c0_53 = arith.constant 0 : index
    %97 = vector.load %arg12[%c0_51, %c0_52, %c0_53] : memref<2x1x64xf32, #tpu.memory_space<vmem>>, vector<1x1x64xf32>
    %98 = vector.shape_cast %97 : vector<1x1x64xf32> to vector<1x64xf32>
    %99 = vector.broadcast %98 : vector<1x64xf32> to vector<9x64xf32>
    %100 = arith.addf %96, %99 : vector<9x64xf32>
    %101 = arith.truncf %93 : vector<8x32xf32> to vector<8x32xbf16>
    %102 = vector.extract_strided_slice %100 {offsets = [0, 0], sizes = [9, 32], strides = [1, 1]} : vector<9x64xf32> to vector<9x32xf32>
    %103 = arith.truncf %102 : vector<9x32xf32> to vector<9x32xbf16>
    %104 = vector.extract_strided_slice %100 {offsets = [0, 32], sizes = [9, 32], strides = [1, 1]} : vector<9x64xf32> to vector<9x32xf32>
    %105 = arith.truncf %104 : vector<9x32xf32> to vector<9x32xbf16>
    %106 = vector.extract_strided_slice %101 {offsets = [0, 0], sizes = [8, 8], strides = [1, 1]} : vector<8x32xbf16> to vector<8x8xbf16>
    %107 = vector.extract_strided_slice %103 {offsets = [0, 0], sizes = [9, 8], strides = [1, 1]} : vector<9x32xbf16> to vector<9x8xbf16>
    %108 = vector.extract_strided_slice %105 {offsets = [0, 0], sizes = [9, 8], strides = [1, 1]} : vector<9x32xbf16> to vector<9x8xbf16>
    %cst_54 = arith.constant dense<0.000000e+00> : vector<8x9xf32>
    %109 = tpu.matmul %106, %107, %cst_54 {dimension_numbers = #tpu.dot_dimension_numbers<[1], [1], [0], [0], [0, 0, 1, 0], [], []>} : vector<8x8xbf16>, vector<9x8xbf16>, vector<8x9xf32> -> vector<8x9xf32>
    %cst_55 = arith.constant 0.353553385 : f32
    %110 = vector.broadcast %cst_55 : f32 to vector<8x9xf32>
    %111 = arith.mulf %109, %110 : vector<8x9xf32>
    %cst_56 = arith.constant -1.000000e+30 : f32
    %112 = vector.broadcast %cst_56 : f32 to vector<8x9xf32>
    %113 = arith.select %48, %111, %112 : vector<8x9xi1>, vector<8x9xf32>
    %cst_57 = arith.constant dense<0xFF800000> : vector<8xf32>
    %114 = vector.multi_reduction <maximumf>, %113, %cst_57 [1] : vector<8x9xf32> to vector<8xf32>
    %115 = vector.shape_cast %114 : vector<8xf32> to vector<8x1xf32>
    %116 = vector.broadcast %115 : vector<8x1xf32> to vector<8x9xf32>
    %117 = arith.subf %113, %116 : vector<8x9xf32>
    %118 = math.exp %117 : vector<8x9xf32>
    %cst_58 = arith.constant dense<0.000000e+00> : vector<8xf32>
    %119 = vector.multi_reduction <add>, %118, %cst_58 [1] : vector<8x9xf32> to vector<8xf32>
    %120 = vector.shape_cast %119 : vector<8xf32> to vector<8x1xf32>
    %121 = tpu.reciprocal %120 {approx = true} : vector<8x1xf32> -> vector<8x1xf32>
    %122 = vector.broadcast %121 : vector<8x1xf32> to vector<8x9xf32>
    %123 = arith.mulf %118, %122 : vector<8x9xf32>
    %124 = arith.truncf %123 : vector<8x9xf32> to vector<8x9xbf16>
    %cst_59 = arith.constant dense<0.000000e+00> : vector<8x8xf32>
    %125 = tpu.matmul %124, %108, %cst_59 {dimension_numbers = #tpu.dot_dimension_numbers<[1], [0], [0], [1], [0, 0, 1, 1], [], []>} : vector<8x9xbf16>, vector<9x8xbf16>, vector<8x8xf32> -> vector<8x8xf32>
    %126 = vector.extract_strided_slice %101 {offsets = [0, 8], sizes = [8, 8], strides = [1, 1]} : vector<8x32xbf16> to vector<8x8xbf16>
    %127 = vector.extract_strided_slice %103 {offsets = [0, 8], sizes = [9, 8], strides = [1, 1]} : vector<9x32xbf16> to vector<9x8xbf16>
    %128 = vector.extract_strided_slice %105 {offsets = [0, 8], sizes = [9, 8], strides = [1, 1]} : vector<9x32xbf16> to vector<9x8xbf16>
    %cst_60 = arith.constant dense<0.000000e+00> : vector<8x9xf32>
    %129 = tpu.matmul %126, %127, %cst_60 {dimension_numbers = #tpu.dot_dimension_numbers<[1], [1], [0], [0], [0, 0, 1, 0], [], []>} : vector<8x8xbf16>, vector<9x8xbf16>, vector<8x9xf32> -> vector<8x9xf32>
    %cst_61 = arith.constant 0.353553385 : f32
    %130 = vector.broadcast %cst_61 : f32 to vector<8x9xf32>
    %131 = arith.mulf %129, %130 : vector<8x9xf32>
    %cst_62 = arith.constant -1.000000e+30 : f32
    %132 = vector.broadcast %cst_62 : f32 to vector<8x9xf32>
    %133 = arith.select %48, %131, %132 : vector<8x9xi1>, vector<8x9xf32>
    %cst_63 = arith.constant dense<0xFF800000> : vector<8xf32>
    %134 = vector.multi_reduction <maximumf>, %133, %cst_63 [1] : vector<8x9xf32> to vector<8xf32>
    %135 = vector.shape_cast %134 : vector<8xf32> to vector<8x1xf32>
    %136 = vector.broadcast %135 : vector<8x1xf32> to vector<8x9xf32>
    %137 = arith.subf %133, %136 : vector<8x9xf32>
    %138 = math.exp %137 : vector<8x9xf32>
    %cst_64 = arith.constant dense<0.000000e+00> : vector<8xf32>
    %139 = vector.multi_reduction <add>, %138, %cst_64 [1] : vector<8x9xf32> to vector<8xf32>
    %140 = vector.shape_cast %139 : vector<8xf32> to vector<8x1xf32>
    %141 = tpu.reciprocal %140 {approx = true} : vector<8x1xf32> -> vector<8x1xf32>
    %142 = vector.broadcast %141 : vector<8x1xf32> to vector<8x9xf32>
    %143 = arith.mulf %138, %142 : vector<8x9xf32>
    %144 = arith.truncf %143 : vector<8x9xf32> to vector<8x9xbf16>
    %cst_65 = arith.constant dense<0.000000e+00> : vector<8x8xf32>
    %145 = tpu.matmul %144, %128, %cst_65 {dimension_numbers = #tpu.dot_dimension_numbers<[1], [0], [0], [1], [0, 0, 1, 1], [], []>} : vector<8x9xbf16>, vector<9x8xbf16>, vector<8x8xf32> -> vector<8x8xf32>
    %146 = vector.extract_strided_slice %101 {offsets = [0, 16], sizes = [8, 8], strides = [1, 1]} : vector<8x32xbf16> to vector<8x8xbf16>
    %147 = vector.extract_strided_slice %103 {offsets = [0, 16], sizes = [9, 8], strides = [1, 1]} : vector<9x32xbf16> to vector<9x8xbf16>
    %148 = vector.extract_strided_slice %105 {offsets = [0, 16], sizes = [9, 8], strides = [1, 1]} : vector<9x32xbf16> to vector<9x8xbf16>
    %cst_66 = arith.constant dense<0.000000e+00> : vector<8x9xf32>
    %149 = tpu.matmul %146, %147, %cst_66 {dimension_numbers = #tpu.dot_dimension_numbers<[1], [1], [0], [0], [0, 0, 1, 0], [], []>} : vector<8x8xbf16>, vector<9x8xbf16>, vector<8x9xf32> -> vector<8x9xf32>
    %cst_67 = arith.constant 0.353553385 : f32
    %150 = vector.broadcast %cst_67 : f32 to vector<8x9xf32>
    %151 = arith.mulf %149, %150 : vector<8x9xf32>
    %cst_68 = arith.constant -1.000000e+30 : f32
    %152 = vector.broadcast %cst_68 : f32 to vector<8x9xf32>
    %153 = arith.select %48, %151, %152 : vector<8x9xi1>, vector<8x9xf32>
    %cst_69 = arith.constant dense<0xFF800000> : vector<8xf32>
    %154 = vector.multi_reduction <maximumf>, %153, %cst_69 [1] : vector<8x9xf32> to vector<8xf32>
    %155 = vector.shape_cast %154 : vector<8xf32> to vector<8x1xf32>
    %156 = vector.broadcast %155 : vector<8x1xf32> to vector<8x9xf32>
    %157 = arith.subf %153, %156 : vector<8x9xf32>
    %158 = math.exp %157 : vector<8x9xf32>
    %cst_70 = arith.constant dense<0.000000e+00> : vector<8xf32>
    %159 = vector.multi_reduction <add>, %158, %cst_70 [1] : vector<8x9xf32> to vector<8xf32>
    %160 = vector.shape_cast %159 : vector<8xf32> to vector<8x1xf32>
    %161 = tpu.reciprocal %160 {approx = true} : vector<8x1xf32> -> vector<8x1xf32>
    %162 = vector.broadcast %161 : vector<8x1xf32> to vector<8x9xf32>
    %163 = arith.mulf %158, %162 : vector<8x9xf32>
    %164 = arith.truncf %163 : vector<8x9xf32> to vector<8x9xbf16>
    %cst_71 = arith.constant dense<0.000000e+00> : vector<8x8xf32>
    %165 = tpu.matmul %164, %148, %cst_71 {dimension_numbers = #tpu.dot_dimension_numbers<[1], [0], [0], [1], [0, 0, 1, 1], [], []>} : vector<8x9xbf16>, vector<9x8xbf16>, vector<8x8xf32> -> vector<8x8xf32>
    %166 = vector.extract_strided_slice %101 {offsets = [0, 24], sizes = [8, 8], strides = [1, 1]} : vector<8x32xbf16> to vector<8x8xbf16>
    %167 = vector.extract_strided_slice %103 {offsets = [0, 24], sizes = [9, 8], strides = [1, 1]} : vector<9x32xbf16> to vector<9x8xbf16>
    %168 = vector.extract_strided_slice %105 {offsets = [0, 24], sizes = [9, 8], strides = [1, 1]} : vector<9x32xbf16> to vector<9x8xbf16>
    %cst_72 = arith.constant dense<0.000000e+00> : vector<8x9xf32>
    %169 = tpu.matmul %166, %167, %cst_72 {dimension_numbers = #tpu.dot_dimension_numbers<[1], [1], [0], [0], [0, 0, 1, 0], [], []>} : vector<8x8xbf16>, vector<9x8xbf16>, vector<8x9xf32> -> vector<8x9xf32>
    %cst_73 = arith.constant 0.353553385 : f32
    %170 = vector.broadcast %cst_73 : f32 to vector<8x9xf32>
    %171 = arith.mulf %169, %170 : vector<8x9xf32>
    %cst_74 = arith.constant -1.000000e+30 : f32
    %172 = vector.broadcast %cst_74 : f32 to vector<8x9xf32>
    %173 = arith.select %48, %171, %172 : vector<8x9xi1>, vector<8x9xf32>
    %cst_75 = arith.constant dense<0xFF800000> : vector<8xf32>
    %174 = vector.multi_reduction <maximumf>, %173, %cst_75 [1] : vector<8x9xf32> to vector<8xf32>
    %175 = vector.shape_cast %174 : vector<8xf32> to vector<8x1xf32>
    %176 = vector.broadcast %175 : vector<8x1xf32> to vector<8x9xf32>
    %177 = arith.subf %173, %176 : vector<8x9xf32>
    %178 = math.exp %177 : vector<8x9xf32>
    %cst_76 = arith.constant dense<0.000000e+00> : vector<8xf32>
    %179 = vector.multi_reduction <add>, %178, %cst_76 [1] : vector<8x9xf32> to vector<8xf32>
    %180 = vector.shape_cast %179 : vector<8xf32> to vector<8x1xf32>
    %181 = tpu.reciprocal %180 {approx = true} : vector<8x1xf32> -> vector<8x1xf32>
    %182 = vector.broadcast %181 : vector<8x1xf32> to vector<8x9xf32>
    %183 = arith.mulf %178, %182 : vector<8x9xf32>
    %184 = arith.truncf %183 : vector<8x9xf32> to vector<8x9xbf16>
    %cst_77 = arith.constant dense<0.000000e+00> : vector<8x8xf32>
    %185 = tpu.matmul %184, %168, %cst_77 {dimension_numbers = #tpu.dot_dimension_numbers<[1], [0], [0], [1], [0, 0, 1, 1], [], []>} : vector<8x9xbf16>, vector<9x8xbf16>, vector<8x8xf32> -> vector<8x8xf32>
    %186 = tpu.concatenate %125, %145, %165, %185 in 1 : vector<8x8xf32>, vector<8x8xf32>, vector<8x8xf32>, vector<8x8xf32> -> vector<8x32xf32>
    %187 = arith.truncf %186 : vector<8x32xf32> to vector<8x32xbf16>
    %c0_78 = arith.constant 0 : index
    %c0_79 = arith.constant 0 : index
    %c0_80 = arith.constant 0 : index
    %188 = vector.load %arg13[%c0_78, %c0_79, %c0_80] : memref<2x32x32xbf16, #tpu.memory_space<vmem>>, vector<1x32x32xbf16>
    %189 = vector.shape_cast %188 : vector<1x32x32xbf16> to vector<32x32xbf16>
    %cst_81 = arith.constant dense<0.000000e+00> : vector<8x32xf32>
    %190 = tpu.matmul %187, %189, %cst_81 {dimension_numbers = #tpu.dot_dimension_numbers<[1], [0], [0], [1], [0, 0, 1, 1], [], []>} : vector<8x32xbf16>, vector<32x32xbf16>, vector<8x32xf32> -> vector<8x32xf32>
    %c0_82 = arith.constant 0 : index
    %c0_83 = arith.constant 0 : index
    %c0_84 = arith.constant 0 : index
    %191 = vector.load %arg14[%c0_82, %c0_83, %c0_84] : memref<2x1x32xf32, #tpu.memory_space<vmem>>, vector<1x1x32xf32>
    %192 = vector.shape_cast %191 : vector<1x1x32xf32> to vector<1x32xf32>
    %193 = vector.broadcast %192 : vector<1x32xf32> to vector<8x32xf32>
    %194 = arith.addf %190, %193 : vector<8x32xf32>
    %195 = arith.addf %38, %194 : vector<8x32xf32>
    %c0_85 = arith.constant 0 : index
    %c0_86 = arith.constant 0 : index
    %c0_87 = arith.constant 0 : index
    %196 = vector.load %arg8[%c0_85, %c0_86, %c0_87] : memref<2x2x32xf32, #tpu.memory_space<vmem>>, vector<1x2x32xf32>
    %197 = vector.shape_cast %196 : vector<1x2x32xf32> to vector<2x32xf32>
    %198 = vector.extract_strided_slice %197 {offsets = [0, 0], sizes = [1, 32], strides = [1, 1]} : vector<2x32xf32> to vector<1x32xf32>
    %199 = vector.extract_strided_slice %197 {offsets = [1, 0], sizes = [1, 32], strides = [1, 1]} : vector<2x32xf32> to vector<1x32xf32>
    %cst_88 = arith.constant dense<0.000000e+00> : vector<8xf32>
    %200 = vector.multi_reduction <add>, %195, %cst_88 [1] : vector<8x32xf32> to vector<8xf32>
    %201 = vector.shape_cast %200 : vector<8xf32> to vector<8x1xf32>
    %cst_89 = arith.constant 3.200000e+01 : f32
    %202 = vector.broadcast %cst_89 : f32 to vector<8x1xf32>
    %203 = arith.divf %201, %202 : vector<8x1xf32>
    %204 = vector.broadcast %203 : vector<8x1xf32> to vector<8x32xf32>
    %205 = arith.subf %195, %204 : vector<8x32xf32>
    %206 = arith.mulf %205, %205 : vector<8x32xf32>
    %cst_90 = arith.constant dense<0.000000e+00> : vector<8xf32>
    %207 = vector.multi_reduction <add>, %206, %cst_90 [1] : vector<8x32xf32> to vector<8xf32>
    %208 = vector.shape_cast %207 : vector<8xf32> to vector<8x1xf32>
    %cst_91 = arith.constant 3.200000e+01 : f32
    %209 = vector.broadcast %cst_91 : f32 to vector<8x1xf32>
    %210 = arith.divf %208, %209 : vector<8x1xf32>
    %211 = vector.broadcast %203 : vector<8x1xf32> to vector<8x32xf32>
    %212 = arith.subf %195, %211 : vector<8x32xf32>
    %cst_92 = arith.constant 9.99999974E-6 : f32
    %213 = vector.broadcast %cst_92 : f32 to vector<8x1xf32>
    %214 = arith.addf %210, %213 : vector<8x1xf32>
    %215 = math.rsqrt %214 : vector<8x1xf32>
    %216 = vector.broadcast %215 : vector<8x1xf32> to vector<8x32xf32>
    %217 = arith.mulf %212, %216 : vector<8x32xf32>
    %218 = vector.broadcast %198 : vector<1x32xf32> to vector<8x32xf32>
    %219 = arith.mulf %217, %218 : vector<8x32xf32>
    %220 = vector.broadcast %199 : vector<1x32xf32> to vector<8x32xf32>
    %221 = arith.addf %219, %220 : vector<8x32xf32>
    %222 = arith.truncf %221 : vector<8x32xf32> to vector<8x32xbf16>
    %c0_93 = arith.constant 0 : index
    %c0_94 = arith.constant 0 : index
    %c0_95 = arith.constant 0 : index
    %223 = vector.load %arg15[%c0_93, %c0_94, %c0_95] : memref<2x32x128xbf16, #tpu.memory_space<vmem>>, vector<1x32x128xbf16>
    %224 = vector.shape_cast %223 : vector<1x32x128xbf16> to vector<32x128xbf16>
    %cst_96 = arith.constant dense<0.000000e+00> : vector<8x128xf32>
    %225 = tpu.matmul %222, %224, %cst_96 {dimension_numbers = #tpu.dot_dimension_numbers<[1], [0], [0], [1], [0, 0, 1, 1], [], []>} : vector<8x32xbf16>, vector<32x128xbf16>, vector<8x128xf32> -> vector<8x128xf32>
    %c0_97 = arith.constant 0 : index
    %c0_98 = arith.constant 0 : index
    %c0_99 = arith.constant 0 : index
    %226 = vector.load %arg16[%c0_97, %c0_98, %c0_99] : memref<2x1x128xf32, #tpu.memory_space<vmem>>, vector<1x1x128xf32>
    %227 = vector.shape_cast %226 : vector<1x1x128xf32> to vector<1x128xf32>
    %228 = vector.broadcast %227 : vector<1x128xf32> to vector<8x128xf32>
    %229 = arith.addf %225, %228 : vector<8x128xf32>
    %230 = arith.mulf %229, %229 : vector<8x128xf32>
    %231 = arith.mulf %229, %230 : vector<8x128xf32>
    %cst_100 = arith.constant 4.471500e-02 : f32
    %232 = vector.broadcast %cst_100 : f32 to vector<8x128xf32>
    %233 = arith.mulf %232, %231 : vector<8x128xf32>
    %234 = arith.addf %229, %233 : vector<8x128xf32>
    %cst_101 = arith.constant 0.797884583 : f32
    %235 = vector.broadcast %cst_101 : f32 to vector<8x128xf32>
    %236 = arith.mulf %235, %234 : vector<8x128xf32>
    %237 = math.tanh %236 : vector<8x128xf32>
    %cst_102 = arith.constant 1.000000e+00 : f32
    %238 = vector.broadcast %cst_102 : f32 to vector<8x128xf32>
    %239 = arith.addf %238, %237 : vector<8x128xf32>
    %cst_103 = arith.constant 5.000000e-01 : f32
    %240 = vector.broadcast %cst_103 : f32 to vector<8x128xf32>
    %241 = arith.mulf %240, %239 : vector<8x128xf32>
    %242 = arith.mulf %229, %241 : vector<8x128xf32>
    %243 = arith.truncf %242 : vector<8x128xf32> to vector<8x128xbf16>
    %c0_104 = arith.constant 0 : index
    %c0_105 = arith.constant 0 : index
    %c0_106 = arith.constant 0 : index
    %244 = vector.load %arg17[%c0_104, %c0_105, %c0_106] : memref<2x128x32xbf16, #tpu.memory_space<vmem>>, vector<1x128x32xbf16>
    %245 = vector.shape_cast %244 : vector<1x128x32xbf16> to vector<128x32xbf16>
    %cst_107 = arith.constant dense<0.000000e+00> : vector<8x32xf32>
    %246 = tpu.matmul %243, %245, %cst_107 {dimension_numbers = #tpu.dot_dimension_numbers<[1], [0], [0], [1], [0, 0, 1, 1], [], []>} : vector<8x128xbf16>, vector<128x32xbf16>, vector<8x32xf32> -> vector<8x32xf32>
    %247 = arith.addf %195, %246 : vector<8x32xf32>
    %c0_108 = arith.constant 0 : index
    %c0_109 = arith.constant 0 : index
    %c0_110 = arith.constant 0 : index
    %248 = vector.load %arg18[%c0_108, %c0_109, %c0_110] : memref<2x1x32xf32, #tpu.memory_space<vmem>>, vector<1x1x32xf32>
    %249 = vector.shape_cast %248 : vector<1x1x32xf32> to vector<1x32xf32>
    %250 = vector.broadcast %249 : vector<1x32xf32> to vector<8x32xf32>
    %251 = arith.addf %247, %250 : vector<8x32xf32>
    %c1_111 = arith.constant 1 : index
    %c0_112 = arith.constant 0 : index
    %c0_113 = arith.constant 0 : index
    %c0_114 = arith.constant 0 : index
    %252 = vector.load %arg6[%c1_111, %c0_112, %c0_113, %c0_114] : memref<2x1x1x32xf32, #tpu.memory_space<vmem>>, vector<1x1x1x32xf32>
    %253 = vector.shape_cast %252 : vector<1x1x1x32xf32> to vector<1x32xf32>
    %c1_115 = arith.constant 1 : index
    %c0_116 = arith.constant 0 : index
    %c0_117 = arith.constant 0 : index
    %254 = vector.load %arg7[%c1_115, %c0_116, %c0_117] : memref<2x2x32xf32, #tpu.memory_space<vmem>>, vector<1x2x32xf32>
    %255 = vector.shape_cast %254 : vector<1x2x32xf32> to vector<2x32xf32>
    %256 = vector.extract_strided_slice %255 {offsets = [0, 0], sizes = [1, 32], strides = [1, 1]} : vector<2x32xf32> to vector<1x32xf32>
    %257 = vector.extract_strided_slice %255 {offsets = [1, 0], sizes = [1, 32], strides = [1, 1]} : vector<2x32xf32> to vector<1x32xf32>
    %cst_118 = arith.constant dense<0.000000e+00> : vector<8xf32>
    %258 = vector.multi_reduction <add>, %251, %cst_118 [1] : vector<8x32xf32> to vector<8xf32>
    %259 = vector.shape_cast %258 : vector<8xf32> to vector<8x1xf32>
    %cst_119 = arith.constant 3.200000e+01 : f32
    %260 = vector.broadcast %cst_119 : f32 to vector<8x1xf32>
    %261 = arith.divf %259, %260 : vector<8x1xf32>
    %262 = vector.broadcast %261 : vector<8x1xf32> to vector<8x32xf32>
    %263 = arith.subf %251, %262 : vector<8x32xf32>
    %264 = arith.mulf %263, %263 : vector<8x32xf32>
    %cst_120 = arith.constant dense<0.000000e+00> : vector<8xf32>
    %265 = vector.multi_reduction <add>, %264, %cst_120 [1] : vector<8x32xf32> to vector<8xf32>
    %266 = vector.shape_cast %265 : vector<8xf32> to vector<8x1xf32>
    %cst_121 = arith.constant 3.200000e+01 : f32
    %267 = vector.broadcast %cst_121 : f32 to vector<8x1xf32>
    %268 = arith.divf %266, %267 : vector<8x1xf32>
    %269 = vector.broadcast %261 : vector<8x1xf32> to vector<8x32xf32>
    %270 = arith.subf %251, %269 : vector<8x32xf32>
    %cst_122 = arith.constant 9.99999974E-6 : f32
    %271 = vector.broadcast %cst_122 : f32 to vector<8x1xf32>
    %272 = arith.addf %268, %271 : vector<8x1xf32>
    %273 = math.rsqrt %272 : vector<8x1xf32>
    %274 = vector.broadcast %273 : vector<8x1xf32> to vector<8x32xf32>
    %275 = arith.mulf %270, %274 : vector<8x32xf32>
    %276 = vector.broadcast %256 : vector<1x32xf32> to vector<8x32xf32>
    %277 = arith.mulf %275, %276 : vector<8x32xf32>
    %278 = vector.broadcast %257 : vector<1x32xf32> to vector<8x32xf32>
    %279 = arith.addf %277, %278 : vector<8x32xf32>
    %c1_123 = arith.constant 1 : index
    %c0_124 = arith.constant 0 : index
    %c0_125 = arith.constant 0 : index
    %c0_126 = arith.constant 0 : index
    %280 = vector.load %arg22[%c1_123, %c0_124, %c0_125, %c0_126] : memref<2x1x9x32xf32, #tpu.memory_space<vmem>>, vector<1x1x1x32xf32>
    %281 = vector.shape_cast %280 : vector<1x1x1x32xf32> to vector<1x32xf32>
    %282 = vector.shape_cast %253 : vector<1x32xf32> to vector<1x1x1x32xf32>
    tpu.vector_store %arg22[%c1_123, %c0_124, %c0_125, %c0_126], %282 {strides = array<i32>} : memref<2x1x9x32xf32, #tpu.memory_space<vmem>>, vector<1x1x1x32xf32>,
    %c1_127 = arith.constant 1 : index
    %c0_128 = arith.constant 0 : index
    %c1_129 = arith.constant 1 : index
    %c0_130 = arith.constant 0 : index
    %283 = vector.load %arg22[%c1_127, %c0_128, %c1_129, %c0_130] : memref<2x1x9x32xf32, #tpu.memory_space<vmem>>, vector<1x1x8x32xf32>
    %284 = vector.shape_cast %283 : vector<1x1x8x32xf32> to vector<8x32xf32>
    %285 = vector.shape_cast %279 : vector<8x32xf32> to vector<1x1x8x32xf32>
    tpu.vector_store %arg22[%c1_127, %c0_128, %c1_129, %c0_130], %285 {strides = array<i32>} : memref<2x1x9x32xf32, #tpu.memory_space<vmem>>, vector<1x1x8x32xf32>,
    %c1_131 = arith.constant 1 : index
    %c0_132 = arith.constant 0 : index
    %c0_133 = arith.constant 0 : index
    %c0_134 = arith.constant 0 : index
    %286 = vector.load %arg22[%c1_131, %c0_132, %c0_133, %c0_134] : memref<2x1x9x32xf32, #tpu.memory_space<vmem>>, vector<1x1x9x32xf32>
    %287 = vector.shape_cast %286 : vector<1x1x9x32xf32> to vector<9x32xf32>
    %288 = arith.truncf %287 : vector<9x32xf32> to vector<9x32xbf16>
    %289 = arith.truncf %279 : vector<8x32xf32> to vector<8x32xbf16>
    %c1_135 = arith.constant 1 : index
    %c0_136 = arith.constant 0 : index
    %c0_137 = arith.constant 0 : index
    %290 = vector.load %arg9[%c1_135, %c0_136, %c0_137] : memref<2x32x32xbf16, #tpu.memory_space<vmem>>, vector<1x32x32xbf16>
    %291 = vector.shape_cast %290 : vector<1x32x32xbf16> to vector<32x32xbf16>
    %cst_138 = arith.constant dense<0.000000e+00> : vector<8x32xf32>
    %292 = tpu.matmul %289, %291, %cst_138 {dimension_numbers = #tpu.dot_dimension_numbers<[1], [0], [0], [1], [0, 0, 1, 1], [], []>} : vector<8x32xbf16>, vector<32x32xbf16>, vector<8x32xf32> -> vector<8x32xf32>
    %c1_139 = arith.constant 1 : index
    %c0_140 = arith.constant 0 : index
    %c0_141 = arith.constant 0 : index
    %293 = vector.load %arg10[%c1_139, %c0_140, %c0_141] : memref<2x1x32xf32, #tpu.memory_space<vmem>>, vector<1x1x32xf32>
    %294 = vector.shape_cast %293 : vector<1x1x32xf32> to vector<1x32xf32>
    %295 = vector.broadcast %294 : vector<1x32xf32> to vector<8x32xf32>
    %296 = arith.addf %292, %295 : vector<8x32xf32>
    %c1_142 = arith.constant 1 : index
    %c0_143 = arith.constant 0 : index
    %c0_144 = arith.constant 0 : index
    %297 = vector.load %arg11[%c1_142, %c0_143, %c0_144] : memref<2x32x64xbf16, #tpu.memory_space<vmem>>, vector<1x32x64xbf16>
    %298 = vector.shape_cast %297 : vector<1x32x64xbf16> to vector<32x64xbf16>
    %cst_145 = arith.constant dense<0.000000e+00> : vector<9x64xf32>
    %299 = tpu.matmul %288, %298, %cst_145 {dimension_numbers = #tpu.dot_dimension_numbers<[1], [0], [0], [1], [0, 0, 1, 1], [], []>} : vector<9x32xbf16>, vector<32x64xbf16>, vector<9x64xf32> -> vector<9x64xf32>
    %c1_146 = arith.constant 1 : index
    %c0_147 = arith.constant 0 : index
    %c0_148 = arith.constant 0 : index
    %300 = vector.load %arg12[%c1_146, %c0_147, %c0_148] : memref<2x1x64xf32, #tpu.memory_space<vmem>>, vector<1x1x64xf32>
    %301 = vector.shape_cast %300 : vector<1x1x64xf32> to vector<1x64xf32>
    %302 = vector.broadcast %301 : vector<1x64xf32> to vector<9x64xf32>
    %303 = arith.addf %299, %302 : vector<9x64xf32>
    %304 = arith.truncf %296 : vector<8x32xf32> to vector<8x32xbf16>
    %305 = vector.extract_strided_slice %303 {offsets = [0, 0], sizes = [9, 32], strides = [1, 1]} : vector<9x64xf32> to vector<9x32xf32>
    %306 = arith.truncf %305 : vector<9x32xf32> to vector<9x32xbf16>
    %307 = vector.extract_strided_slice %303 {offsets = [0, 32], sizes = [9, 32], strides = [1, 1]} : vector<9x64xf32> to vector<9x32xf32>
    %308 = arith.truncf %307 : vector<9x32xf32> to vector<9x32xbf16>
    %309 = vector.extract_strided_slice %304 {offsets = [0, 0], sizes = [8, 8], strides = [1, 1]} : vector<8x32xbf16> to vector<8x8xbf16>
    %310 = vector.extract_strided_slice %306 {offsets = [0, 0], sizes = [9, 8], strides = [1, 1]} : vector<9x32xbf16> to vector<9x8xbf16>
    %311 = vector.extract_strided_slice %308 {offsets = [0, 0], sizes = [9, 8], strides = [1, 1]} : vector<9x32xbf16> to vector<9x8xbf16>
    %cst_149 = arith.constant dense<0.000000e+00> : vector<8x9xf32>
    %312 = tpu.matmul %309, %310, %cst_149 {dimension_numbers = #tpu.dot_dimension_numbers<[1], [1], [0], [0], [0, 0, 1, 0], [], []>} : vector<8x8xbf16>, vector<9x8xbf16>, vector<8x9xf32> -> vector<8x9xf32>
    %cst_150 = arith.constant 0.353553385 : f32
    %313 = vector.broadcast %cst_150 : f32 to vector<8x9xf32>
    %314 = arith.mulf %312, %313 : vector<8x9xf32>
    %cst_151 = arith.constant -1.000000e+30 : f32
    %315 = vector.broadcast %cst_151 : f32 to vector<8x9xf32>
    %316 = arith.select %48, %314, %315 : vector<8x9xi1>, vector<8x9xf32>
    %cst_152 = arith.constant dense<0xFF800000> : vector<8xf32>
    %317 = vector.multi_reduction <maximumf>, %316, %cst_152 [1] : vector<8x9xf32> to vector<8xf32>
    %318 = vector.shape_cast %317 : vector<8xf32> to vector<8x1xf32>
    %319 = vector.broadcast %318 : vector<8x1xf32> to vector<8x9xf32>
    %320 = arith.subf %316, %319 : vector<8x9xf32>
    %321 = math.exp %320 : vector<8x9xf32>
    %cst_153 = arith.constant dense<0.000000e+00> : vector<8xf32>
    %322 = vector.multi_reduction <add>, %321, %cst_153 [1] : vector<8x9xf32> to vector<8xf32>
    %323 = vector.shape_cast %322 : vector<8xf32> to vector<8x1xf32>
    %324 = tpu.reciprocal %323 {approx = true} : vector<8x1xf32> -> vector<8x1xf32>
    %325 = vector.broadcast %324 : vector<8x1xf32> to vector<8x9xf32>
    %326 = arith.mulf %321, %325 : vector<8x9xf32>
    %327 = arith.truncf %326 : vector<8x9xf32> to vector<8x9xbf16>
    %cst_154 = arith.constant dense<0.000000e+00> : vector<8x8xf32>
    %328 = tpu.matmul %327, %311, %cst_154 {dimension_numbers = #tpu.dot_dimension_numbers<[1], [0], [0], [1], [0, 0, 1, 1], [], []>} : vector<8x9xbf16>, vector<9x8xbf16>, vector<8x8xf32> -> vector<8x8xf32>
    %329 = vector.extract_strided_slice %304 {offsets = [0, 8], sizes = [8, 8], strides = [1, 1]} : vector<8x32xbf16> to vector<8x8xbf16>
    %330 = vector.extract_strided_slice %306 {offsets = [0, 8], sizes = [9, 8], strides = [1, 1]} : vector<9x32xbf16> to vector<9x8xbf16>
    %331 = vector.extract_strided_slice %308 {offsets = [0, 8], sizes = [9, 8], strides = [1, 1]} : vector<9x32xbf16> to vector<9x8xbf16>
    %cst_155 = arith.constant dense<0.000000e+00> : vector<8x9xf32>
    %332 = tpu.matmul %329, %330, %cst_155 {dimension_numbers = #tpu.dot_dimension_numbers<[1], [1], [0], [0], [0, 0, 1, 0], [], []>} : vector<8x8xbf16>, vector<9x8xbf16>, vector<8x9xf32> -> vector<8x9xf32>
    %cst_156 = arith.constant 0.353553385 : f32
    %333 = vector.broadcast %cst_156 : f32 to vector<8x9xf32>
    %334 = arith.mulf %332, %333 : vector<8x9xf32>
    %cst_157 = arith.constant -1.000000e+30 : f32
    %335 = vector.broadcast %cst_157 : f32 to vector<8x9xf32>
    %336 = arith.select %48, %334, %335 : vector<8x9xi1>, vector<8x9xf32>
    %cst_158 = arith.constant dense<0xFF800000> : vector<8xf32>
    %337 = vector.multi_reduction <maximumf>, %336, %cst_158 [1] : vector<8x9xf32> to vector<8xf32>
    %338 = vector.shape_cast %337 : vector<8xf32> to vector<8x1xf32>
    %339 = vector.broadcast %338 : vector<8x1xf32> to vector<8x9xf32>
    %340 = arith.subf %336, %339 : vector<8x9xf32>
    %341 = math.exp %340 : vector<8x9xf32>
    %cst_159 = arith.constant dense<0.000000e+00> : vector<8xf32>
    %342 = vector.multi_reduction <add>, %341, %cst_159 [1] : vector<8x9xf32> to vector<8xf32>
    %343 = vector.shape_cast %342 : vector<8xf32> to vector<8x1xf32>
    %344 = tpu.reciprocal %343 {approx = true} : vector<8x1xf32> -> vector<8x1xf32>
    %345 = vector.broadcast %344 : vector<8x1xf32> to vector<8x9xf32>
    %346 = arith.mulf %341, %345 : vector<8x9xf32>
    %347 = arith.truncf %346 : vector<8x9xf32> to vector<8x9xbf16>
    %cst_160 = arith.constant dense<0.000000e+00> : vector<8x8xf32>
    %348 = tpu.matmul %347, %331, %cst_160 {dimension_numbers = #tpu.dot_dimension_numbers<[1], [0], [0], [1], [0, 0, 1, 1], [], []>} : vector<8x9xbf16>, vector<9x8xbf16>, vector<8x8xf32> -> vector<8x8xf32>
    %349 = vector.extract_strided_slice %304 {offsets = [0, 16], sizes = [8, 8], strides = [1, 1]} : vector<8x32xbf16> to vector<8x8xbf16>
    %350 = vector.extract_strided_slice %306 {offsets = [0, 16], sizes = [9, 8], strides = [1, 1]} : vector<9x32xbf16> to vector<9x8xbf16>
    %351 = vector.extract_strided_slice %308 {offsets = [0, 16], sizes = [9, 8], strides = [1, 1]} : vector<9x32xbf16> to vector<9x8xbf16>
    %cst_161 = arith.constant dense<0.000000e+00> : vector<8x9xf32>
    %352 = tpu.matmul %349, %350, %cst_161 {dimension_numbers = #tpu.dot_dimension_numbers<[1], [1], [0], [0], [0, 0, 1, 0], [], []>} : vector<8x8xbf16>, vector<9x8xbf16>, vector<8x9xf32> -> vector<8x9xf32>
    %cst_162 = arith.constant 0.353553385 : f32
    %353 = vector.broadcast %cst_162 : f32 to vector<8x9xf32>
    %354 = arith.mulf %352, %353 : vector<8x9xf32>
    %cst_163 = arith.constant -1.000000e+30 : f32
    %355 = vector.broadcast %cst_163 : f32 to vector<8x9xf32>
    %356 = arith.select %48, %354, %355 : vector<8x9xi1>, vector<8x9xf32>
    %cst_164 = arith.constant dense<0xFF800000> : vector<8xf32>
    %357 = vector.multi_reduction <maximumf>, %356, %cst_164 [1] : vector<8x9xf32> to vector<8xf32>
    %358 = vector.shape_cast %357 : vector<8xf32> to vector<8x1xf32>
    %359 = vector.broadcast %358 : vector<8x1xf32> to vector<8x9xf32>
    %360 = arith.subf %356, %359 : vector<8x9xf32>
    %361 = math.exp %360 : vector<8x9xf32>
    %cst_165 = arith.constant dense<0.000000e+00> : vector<8xf32>
    %362 = vector.multi_reduction <add>, %361, %cst_165 [1] : vector<8x9xf32> to vector<8xf32>
    %363 = vector.shape_cast %362 : vector<8xf32> to vector<8x1xf32>
    %364 = tpu.reciprocal %363 {approx = true} : vector<8x1xf32> -> vector<8x1xf32>
    %365 = vector.broadcast %364 : vector<8x1xf32> to vector<8x9xf32>
    %366 = arith.mulf %361, %365 : vector<8x9xf32>
    %367 = arith.truncf %366 : vector<8x9xf32> to vector<8x9xbf16>
    %cst_166 = arith.constant dense<0.000000e+00> : vector<8x8xf32>
    %368 = tpu.matmul %367, %351, %cst_166 {dimension_numbers = #tpu.dot_dimension_numbers<[1], [0], [0], [1], [0, 0, 1, 1], [], []>} : vector<8x9xbf16>, vector<9x8xbf16>, vector<8x8xf32> -> vector<8x8xf32>
    %369 = vector.extract_strided_slice %304 {offsets = [0, 24], sizes = [8, 8], strides = [1, 1]} : vector<8x32xbf16> to vector<8x8xbf16>
    %370 = vector.extract_strided_slice %306 {offsets = [0, 24], sizes = [9, 8], strides = [1, 1]} : vector<9x32xbf16> to vector<9x8xbf16>
    %371 = vector.extract_strided_slice %308 {offsets = [0, 24], sizes = [9, 8], strides = [1, 1]} : vector<9x32xbf16> to vector<9x8xbf16>
    %cst_167 = arith.constant dense<0.000000e+00> : vector<8x9xf32>
    %372 = tpu.matmul %369, %370, %cst_167 {dimension_numbers = #tpu.dot_dimension_numbers<[1], [1], [0], [0], [0, 0, 1, 0], [], []>} : vector<8x8xbf16>, vector<9x8xbf16>, vector<8x9xf32> -> vector<8x9xf32>
    %cst_168 = arith.constant 0.353553385 : f32
    %373 = vector.broadcast %cst_168 : f32 to vector<8x9xf32>
    %374 = arith.mulf %372, %373 : vector<8x9xf32>
    %cst_169 = arith.constant -1.000000e+30 : f32
    %375 = vector.broadcast %cst_169 : f32 to vector<8x9xf32>
    %376 = arith.select %48, %374, %375 : vector<8x9xi1>, vector<8x9xf32>
    %cst_170 = arith.constant dense<0xFF800000> : vector<8xf32>
    %377 = vector.multi_reduction <maximumf>, %376, %cst_170 [1] : vector<8x9xf32> to vector<8xf32>
    %378 = vector.shape_cast %377 : vector<8xf32> to vector<8x1xf32>
    %379 = vector.broadcast %378 : vector<8x1xf32> to vector<8x9xf32>
    %380 = arith.subf %376, %379 : vector<8x9xf32>
    %381 = math.exp %380 : vector<8x9xf32>
    %cst_171 = arith.constant dense<0.000000e+00> : vector<8xf32>
    %382 = vector.multi_reduction <add>, %381, %cst_171 [1] : vector<8x9xf32> to vector<8xf32>
    %383 = vector.shape_cast %382 : vector<8xf32> to vector<8x1xf32>
    %384 = tpu.reciprocal %383 {approx = true} : vector<8x1xf32> -> vector<8x1xf32>
    %385 = vector.broadcast %384 : vector<8x1xf32> to vector<8x9xf32>
    %386 = arith.mulf %381, %385 : vector<8x9xf32>
    %387 = arith.truncf %386 : vector<8x9xf32> to vector<8x9xbf16>
    %cst_172 = arith.constant dense<0.000000e+00> : vector<8x8xf32>
    %388 = tpu.matmul %387, %371, %cst_172 {dimension_numbers = #tpu.dot_dimension_numbers<[1], [0], [0], [1], [0, 0, 1, 1], [], []>} : vector<8x9xbf16>, vector<9x8xbf16>, vector<8x8xf32> -> vector<8x8xf32>
    %389 = tpu.concatenate %328, %348, %368, %388 in 1 : vector<8x8xf32>, vector<8x8xf32>, vector<8x8xf32>, vector<8x8xf32> -> vector<8x32xf32>
    %390 = arith.truncf %389 : vector<8x32xf32> to vector<8x32xbf16>
    %c1_173 = arith.constant 1 : index
    %c0_174 = arith.constant 0 : index
    %c0_175 = arith.constant 0 : index
    %391 = vector.load %arg13[%c1_173, %c0_174, %c0_175] : memref<2x32x32xbf16, #tpu.memory_space<vmem>>, vector<1x32x32xbf16>
    %392 = vector.shape_cast %391 : vector<1x32x32xbf16> to vector<32x32xbf16>
    %cst_176 = arith.constant dense<0.000000e+00> : vector<8x32xf32>
    %393 = tpu.matmul %390, %392, %cst_176 {dimension_numbers = #tpu.dot_dimension_numbers<[1], [0], [0], [1], [0, 0, 1, 1], [], []>} : vector<8x32xbf16>, vector<32x32xbf16>, vector<8x32xf32> -> vector<8x32xf32>
    %c1_177 = arith.constant 1 : index
    %c0_178 = arith.constant 0 : index
    %c0_179 = arith.constant 0 : index
    %394 = vector.load %arg14[%c1_177, %c0_178, %c0_179] : memref<2x1x32xf32, #tpu.memory_space<vmem>>, vector<1x1x32xf32>
    %395 = vector.shape_cast %394 : vector<1x1x32xf32> to vector<1x32xf32>
    %396 = vector.broadcast %395 : vector<1x32xf32> to vector<8x32xf32>
    %397 = arith.addf %393, %396 : vector<8x32xf32>
    %398 = arith.addf %251, %397 : vector<8x32xf32>
    %c1_180 = arith.constant 1 : index
    %c0_181 = arith.constant 0 : index
    %c0_182 = arith.constant 0 : index
    %399 = vector.load %arg8[%c1_180, %c0_181, %c0_182] : memref<2x2x32xf32, #tpu.memory_space<vmem>>, vector<1x2x32xf32>
    %400 = vector.shape_cast %399 : vector<1x2x32xf32> to vector<2x32xf32>
    %401 = vector.extract_strided_slice %400 {offsets = [0, 0], sizes = [1, 32], strides = [1, 1]} : vector<2x32xf32> to vector<1x32xf32>
    %402 = vector.extract_strided_slice %400 {offsets = [1, 0], sizes = [1, 32], strides = [1, 1]} : vector<2x32xf32> to vector<1x32xf32>
    %cst_183 = arith.constant dense<0.000000e+00> : vector<8xf32>
    %403 = vector.multi_reduction <add>, %398, %cst_183 [1] : vector<8x32xf32> to vector<8xf32>
    %404 = vector.shape_cast %403 : vector<8xf32> to vector<8x1xf32>
    %cst_184 = arith.constant 3.200000e+01 : f32
    %405 = vector.broadcast %cst_184 : f32 to vector<8x1xf32>
    %406 = arith.divf %404, %405 : vector<8x1xf32>
    %407 = vector.broadcast %406 : vector<8x1xf32> to vector<8x32xf32>
    %408 = arith.subf %398, %407 : vector<8x32xf32>
    %409 = arith.mulf %408, %408 : vector<8x32xf32>
    %cst_185 = arith.constant dense<0.000000e+00> : vector<8xf32>
    %410 = vector.multi_reduction <add>, %409, %cst_185 [1] : vector<8x32xf32> to vector<8xf32>
    %411 = vector.shape_cast %410 : vector<8xf32> to vector<8x1xf32>
    %cst_186 = arith.constant 3.200000e+01 : f32
    %412 = vector.broadcast %cst_186 : f32 to vector<8x1xf32>
    %413 = arith.divf %411, %412 : vector<8x1xf32>
    %414 = vector.broadcast %406 : vector<8x1xf32> to vector<8x32xf32>
    %415 = arith.subf %398, %414 : vector<8x32xf32>
    %cst_187 = arith.constant 9.99999974E-6 : f32
    %416 = vector.broadcast %cst_187 : f32 to vector<8x1xf32>
    %417 = arith.addf %413, %416 : vector<8x1xf32>
    %418 = math.rsqrt %417 : vector<8x1xf32>
    %419 = vector.broadcast %418 : vector<8x1xf32> to vector<8x32xf32>
    %420 = arith.mulf %415, %419 : vector<8x32xf32>
    %421 = vector.broadcast %401 : vector<1x32xf32> to vector<8x32xf32>
    %422 = arith.mulf %420, %421 : vector<8x32xf32>
    %423 = vector.broadcast %402 : vector<1x32xf32> to vector<8x32xf32>
    %424 = arith.addf %422, %423 : vector<8x32xf32>
    %425 = arith.truncf %424 : vector<8x32xf32> to vector<8x32xbf16>
    %c1_188 = arith.constant 1 : index
    %c0_189 = arith.constant 0 : index
    %c0_190 = arith.constant 0 : index
    %426 = vector.load %arg15[%c1_188, %c0_189, %c0_190] : memref<2x32x128xbf16, #tpu.memory_space<vmem>>, vector<1x32x128xbf16>
    %427 = vector.shape_cast %426 : vector<1x32x128xbf16> to vector<32x128xbf16>
    %cst_191 = arith.constant dense<0.000000e+00> : vector<8x128xf32>
    %428 = tpu.matmul %425, %427, %cst_191 {dimension_numbers = #tpu.dot_dimension_numbers<[1], [0], [0], [1], [0, 0, 1, 1], [], []>} : vector<8x32xbf16>, vector<32x128xbf16>, vector<8x128xf32> -> vector<8x128xf32>
    %c1_192 = arith.constant 1 : index
    %c0_193 = arith.constant 0 : index
    %c0_194 = arith.constant 0 : index
    %429 = vector.load %arg16[%c1_192, %c0_193, %c0_194] : memref<2x1x128xf32, #tpu.memory_space<vmem>>, vector<1x1x128xf32>
    %430 = vector.shape_cast %429 : vector<1x1x128xf32> to vector<1x128xf32>
    %431 = vector.broadcast %430 : vector<1x128xf32> to vector<8x128xf32>
    %432 = arith.addf %428, %431 : vector<8x128xf32>
    %433 = arith.mulf %432, %432 : vector<8x128xf32>
    %434 = arith.mulf %432, %433 : vector<8x128xf32>
    %cst_195 = arith.constant 4.471500e-02 : f32
    %435 = vector.broadcast %cst_195 : f32 to vector<8x128xf32>
    %436 = arith.mulf %435, %434 : vector<8x128xf32>
    %437 = arith.addf %432, %436 : vector<8x128xf32>
    %cst_196 = arith.constant 0.797884583 : f32
    %438 = vector.broadcast %cst_196 : f32 to vector<8x128xf32>
    %439 = arith.mulf %438, %437 : vector<8x128xf32>
    %440 = math.tanh %439 : vector<8x128xf32>
    %cst_197 = arith.constant 1.000000e+00 : f32
    %441 = vector.broadcast %cst_197 : f32 to vector<8x128xf32>
    %442 = arith.addf %441, %440 : vector<8x128xf32>
    %cst_198 = arith.constant 5.000000e-01 : f32
    %443 = vector.broadcast %cst_198 : f32 to vector<8x128xf32>
    %444 = arith.mulf %443, %442 : vector<8x128xf32>
    %445 = arith.mulf %432, %444 : vector<8x128xf32>
    %446 = arith.truncf %445 : vector<8x128xf32> to vector<8x128xbf16>
    %c1_199 = arith.constant 1 : index
    %c0_200 = arith.constant 0 : index
    %c0_201 = arith.constant 0 : index
    %447 = vector.load %arg17[%c1_199, %c0_200, %c0_201] : memref<2x128x32xbf16, #tpu.memory_space<vmem>>, vector<1x128x32xbf16>
    %448 = vector.shape_cast %447 : vector<1x128x32xbf16> to vector<128x32xbf16>
    %cst_202 = arith.constant dense<0.000000e+00> : vector<8x32xf32>
    %449 = tpu.matmul %446, %448, %cst_202 {dimension_numbers = #tpu.dot_dimension_numbers<[1], [0], [0], [1], [0, 0, 1, 1], [], []>} : vector<8x128xbf16>, vector<128x32xbf16>, vector<8x32xf32> -> vector<8x32xf32>
    %450 = arith.addf %398, %449 : vector<8x32xf32>
    %c1_203 = arith.constant 1 : index
    %c0_204 = arith.constant 0 : index
    %c0_205 = arith.constant 0 : index
    %451 = vector.load %arg18[%c1_203, %c0_204, %c0_205] : memref<2x1x32xf32, #tpu.memory_space<vmem>>, vector<1x1x32xf32>
    %452 = vector.shape_cast %451 : vector<1x1x32xf32> to vector<1x32xf32>
    %453 = vector.broadcast %452 : vector<1x32xf32> to vector<8x32xf32>
    %454 = arith.addf %450, %453 : vector<8x32xf32>
    %455 = arith.truncf %454 : vector<8x32xf32> to vector<8x32xbf16>
    %c0_206 = arith.constant 0 : index
    %c0_207 = arith.constant 0 : index
    %456 = vector.load %arg19[%c0_206, %c0_207] : memref<32x128xbf16, #tpu.memory_space<vmem>>, vector<32x128xbf16>
    %cst_208 = arith.constant dense<0.000000e+00> : vector<8x128xf32>
    %457 = tpu.matmul %455, %456, %cst_208 {dimension_numbers = #tpu.dot_dimension_numbers<[1], [0], [0], [1], [0, 0, 1, 1], [], []>} : vector<8x32xbf16>, vector<32x128xbf16>, vector<8x128xf32> -> vector<8x128xf32>
    %c0_209 = arith.constant 0 : index
    %c0_210 = arith.constant 0 : index
    %458 = vector.load %arg20[%c0_209, %c0_210] : memref<1x128xf32, #tpu.memory_space<vmem>>, vector<1x128xf32>
    %459 = vector.broadcast %458 : vector<1x128xf32> to vector<8x128xf32>
    %460 = arith.addf %457, %459 : vector<8x128xf32>
    %c0_211 = arith.constant 0 : index
    %c0_212 = arith.constant 0 : index
    %c0_213 = arith.constant 0 : index
    %461 = vector.load %arg21[%c0_211, %c0_212, %c0_213] : memref<1x8x128xf32, #tpu.memory_space<vmem>>, vector<1x8x128xf32>
    %462 = vector.shape_cast %461 : vector<1x8x128xf32> to vector<8x128xf32>
    %463 = vector.shape_cast %460 : vector<8x128xf32> to vector<1x8x128xf32>
    tpu.vector_store %arg21[%c0_211, %c0_212, %c0_213], %463 {strides = array<i32>} : memref<1x8x128xf32, #tpu.memory_space<vmem>>, vector<1x8x128xf32>,
    return
  }
  func.func @transform_0(%arg0: i32) -> (i32, i32, i32) {
    %c0_i32 = arith.constant 0 : i32
    %c0_i32_0 = arith.constant 0 : i32
    %c0_i32_1 = arith.constant 0 : i32
    return %arg0, %c0_i32, %c0_i32_0 : i32, i32, i32
  }
  func.func @transform_1(%arg0: i32) -> (i32, i32, i32) {
    %c0_i32 = arith.constant 0 : i32
    %c0_i32_0 = arith.constant 0 : i32
    %c0_i32_1 = arith.constant 0 : i32
    return %arg0, %c0_i32, %c0_i32_0 : i32, i32, i32
  }
  func.func @transform_2(%arg0: i32) -> (i32, i32) {
    %c0_i32 = arith.constant 0 : i32
    %c0_i32_0 = arith.constant 0 : i32
    %c0_i32_1 = arith.constant 0 : i32
    return %c0_i32, %c0_i32_0 : i32, i32
  }
  func.func @transform_3(%arg0: i32) -> (i32, i32) {
    %c0_i32 = arith.constant 0 : i32
    %c0_i32_0 = arith.constant 0 : i32
    %c0_i32_1 = arith.constant 0 : i32
    return %c0_i32, %c0_i32_0 : i32, i32
  }
  func.func @transform_4(%arg0: i32) -> (i32, i32) {
    %c0_i32 = arith.constant 0 : i32
    %c0_i32_0 = arith.constant 0 : i32
    %c0_i32_1 = arith.constant 0 : i32
    return %c0_i32, %c0_i32_0 : i32, i32
  }
  func.func @transform_5(%arg0: i32) -> (i32, i32, i32, i32) {
    %c0_i32 = arith.constant 0 : i32
    %c0_i32_0 = arith.constant 0 : i32
    %c0_i32_1 = arith.constant 0 : i32
    %c0_i32_2 = arith.constant 0 : i32
    return %c0_i32, %arg0, %c0_i32_0, %c0_i32_1 : i32, i32, i32, i32
  }
  func.func @transform_6(%arg0: i32) -> (i32, i32, i32) {
    %c0_i32 = arith.constant 0 : i32
    %c0_i32_0 = arith.constant 0 : i32
    %c0_i32_1 = arith.constant 0 : i32
    %c0_i32_2 = arith.constant 0 : i32
    return %c0_i32, %c0_i32_0, %c0_i32_1 : i32, i32, i32
  }
  func.func @transform_7(%arg0: i32) -> (i32, i32, i32) {
    %c0_i32 = arith.constant 0 : i32
    %c0_i32_0 = arith.constant 0 : i32
    %c0_i32_1 = arith.constant 0 : i32
    %c0_i32_2 = arith.constant 0 : i32
    return %c0_i32, %c0_i32_0, %c0_i32_1 : i32, i32, i32
  }
  func.func @transform_8(%arg0: i32) -> (i32, i32, i32) {
    %c0_i32 = arith.constant 0 : i32
    %c0_i32_0 = arith.constant 0 : i32
    %c0_i32_1 = arith.constant 0 : i32
    %c0_i32_2 = arith.constant 0 : i32
    return %c0_i32, %c0_i32_0, %c0_i32_1 : i32, i32, i32
  }
  func.func @transform_9(%arg0: i32) -> (i32, i32, i32) {
    %c0_i32 = arith.constant 0 : i32
    %c0_i32_0 = arith.constant 0 : i32
    %c0_i32_1 = arith.constant 0 : i32
    %c0_i32_2 = arith.constant 0 : i32
    return %c0_i32, %c0_i32_0, %c0_i32_1 : i32, i32, i32
  }
  func.func @transform_10(%arg0: i32) -> (i32, i32, i32) {
    %c0_i32 = arith.constant 0 : i32
    %c0_i32_0 = arith.constant 0 : i32
    %c0_i32_1 = arith.constant 0 : i32
    %c0_i32_2 = arith.constant 0 : i32
    return %c0_i32, %c0_i32_0, %c0_i32_1 : i32, i32, i32
  }
  func.func @transform_11(%arg0: i32) -> (i32, i32, i32) {
    %c0_i32 = arith.constant 0 : i32
    %c0_i32_0 = arith.constant 0 : i32
    %c0_i32_1 = arith.constant 0 : i32
    %c0_i32_2 = arith.constant 0 : i32
    return %c0_i32, %c0_i32_0, %c0_i32_1 : i32, i32, i32
  }
  func.func @transform_12(%arg0: i32) -> (i32, i32, i32) {
    %c0_i32 = arith.constant 0 : i32
    %c0_i32_0 = arith.constant 0 : i32
    %c0_i32_1 = arith.constant 0 : i32
    %c0_i32_2 = arith.constant 0 : i32
    return %c0_i32, %c0_i32_0, %c0_i32_1 : i32, i32, i32
  }
  func.func @transform_13(%arg0: i32) -> (i32, i32, i32) {
    %c0_i32 = arith.constant 0 : i32
    %c0_i32_0 = arith.constant 0 : i32
    %c0_i32_1 = arith.constant 0 : i32
    %c0_i32_2 = arith.constant 0 : i32
    return %c0_i32, %c0_i32_0, %c0_i32_1 : i32, i32, i32
  }
  func.func @transform_14(%arg0: i32) -> (i32, i32, i32) {
    %c0_i32 = arith.constant 0 : i32
    %c0_i32_0 = arith.constant 0 : i32
    %c0_i32_1 = arith.constant 0 : i32
    %c0_i32_2 = arith.constant 0 : i32
    return %c0_i32, %c0_i32_0, %c0_i32_1 : i32, i32, i32
  }
  func.func @transform_15(%arg0: i32) -> (i32, i32, i32) {
    %c0_i32 = arith.constant 0 : i32
    %c0_i32_0 = arith.constant 0 : i32
    %c0_i32_1 = arith.constant 0 : i32
    %c0_i32_2 = arith.constant 0 : i32
    return %c0_i32, %c0_i32_0, %c0_i32_1 : i32, i32, i32
  }
  func.func @transform_16(%arg0: i32) -> (i32, i32, i32) {
    %c0_i32 = arith.constant 0 : i32
    %c0_i32_0 = arith.constant 0 : i32
    %c0_i32_1 = arith.constant 0 : i32
    %c0_i32_2 = arith.constant 0 : i32
    return %c0_i32, %c0_i32_0, %c0_i32_1 : i32, i32, i32
  }
  func.func @transform_17(%arg0: i32) -> (i32, i32, i32) {
    %c0_i32 = arith.constant 0 : i32
    %c0_i32_0 = arith.constant 0 : i32
    %c0_i32_1 = arith.constant 0 : i32
    %c0_i32_2 = arith.constant 0 : i32
    return %c0_i32, %c0_i32_0, %c0_i32_1 : i32, i32, i32
  }
  func.func @transform_18(%arg0: i32) -> (i32, i32) {
    %c0_i32 = arith.constant 0 : i32
    %c0_i32_0 = arith.constant 0 : i32
    %c0_i32_1 = arith.constant 0 : i32
    return %c0_i32, %c0_i32_0 : i32, i32
  }
  func.func @transform_19(%arg0: i32) -> (i32, i32) {
    %c0_i32 = arith.constant 0 : i32
    %c0_i32_0 = arith.constant 0 : i32
    %c0_i32_1 = arith.constant 0 : i32
    return %c0_i32, %c0_i32_0 : i32, i32
  }
  func.func @transform_20(%arg0: i32) -> (i32, i32, i32) {
    %c0_i32 = arith.constant 0 : i32
    %c0_i32_0 = arith.constant 0 : i32
    %c0_i32_1 = arith.constant 0 : i32
    return %arg0, %c0_i32, %c0_i32_0 : i32, i32, i32
  }
  func.func @transform_21(%arg0: i32) -> (i32, i32, i32, i32) {
    %c0_i32 = arith.constant 0 : i32
    %c0_i32_0 = arith.constant 0 : i32
    %c0_i32_1 = arith.constant 0 : i32
    %c0_i32_2 = arith.constant 0 : i32
    return %c0_i32, %arg0, %c0_i32_0, %c0_i32_1 : i32, i32, i32, i32
  }
}

</mosaic_0001>

<llo_original>
// kernel: tpu_custom_call.1
$region0: #{tpu_custom_call.1}
  #allocation0 [shape = 'u32[]', space=smem, size = 0x4, offset = 0x4, fixed_abs, tag = 'smem constant byte address 0x4 - core index']
  #allocation1 [shape = 'u32[144,128]{1,0:T(1,128)}', space=vmem, size = 0x12000, scoped, tag = 'internal scratch']
  %s0 = inlined_call_operand.vmem [shape: f32[2,16,32], index: 0, kind: input, shape index: {}]
  %s1 = inlined_call_operand.hbm [shape: f32[2,1,32], index: 1, kind: input, shape index: {}]
  %s2 = inlined_call_operand.hbm [shape: f32[8,32], index: 2, kind: input, shape index: {}]
  %s3 = inlined_call_operand.hbm [shape: f32[8,32], index: 3, kind: input, shape index: {}]
  %s4 = inlined_call_operand.vmem [shape: f32[2,32], index: 4, kind: input, shape index: {}]
  %s5 = inlined_call_operand.hbm [shape: f32[2,2,1,32], index: 5, kind: input, shape index: {}]
  %s6 = inlined_call_operand.hbm [shape: f32[2,2,32], index: 6, kind: input, shape index: {}]
  %s7 = inlined_call_operand.hbm [shape: f32[2,2,32], index: 7, kind: input, shape index: {}]
  %s8 = inlined_call_operand.vmem [shape: bf16[2,32,32], index: 8, kind: input, shape index: {}]
  %s9 = inlined_call_operand.hbm [shape: f32[2,1,32], index: 9, kind: input, shape index: {}]
  %s10 = inlined_call_operand.vmem [shape: bf16[2,32,64], index: 10, kind: input, shape index: {}]
  %s11 = inlined_call_operand.vmem [shape: f32[2,1,64], index: 11, kind: input, shape index: {}]
  %s12 = inlined_call_operand.vmem [shape: bf16[2,32,32], index: 12, kind: input, shape index: {}]
  %s13 = inlined_call_operand.hbm [shape: f32[2,1,32], index: 13, kind: input, shape index: {}]
  %s14 = inlined_call_operand.vmem [shape: bf16[2,32,128], index: 14, kind: input, shape index: {}]
  %s15 = inlined_call_operand.vmem [shape: f32[2,1,128], index: 15, kind: input, shape index: {}]
  %s16 = inlined_call_operand.vmem [shape: bf16[2,128,32], index: 16, kind: input, shape index: {}]
  %s17 = inlined_call_operand.vmem [shape: f32[2,1,32], index: 17, kind: input, shape index: {}]
  %s18 = inlined_call_operand.vmem [shape: bf16[32,128], index: 18, kind: input, shape index: {}]
  %s19 = inlined_call_operand.vmem [shape: f32[1,128], index: 19, kind: input, shape index: {}]
  %s20 = inlined_call_operand.hbm [shape: f32[2,8,128], index: 20, kind: output, shape index: {0}]
  %s21 = inlined_call_operand.vmem [shape: f32[2,2,9,32], index: 21, kind: output, shape index: {1}]
  %22 = xla_tuple %s20, %s21
  %s23 = sld [smem:[#allocation0]]
  $region187: #{tpu_custom_call.1} parent=0
    _
  %s25 = ssub.s32 1, %s23
  %s26 = scalar_select 0, %s25, %s23
  $region1: #{tpu_custom_call.1} parent=0
    #allocation2 [shape = 'u8[1024]{0}', space=vmem, size = 0x400, scoped, tag = 'input window, operand 1']
    #allocation3 [shape = 's32[2]{0}', space=sflag, size = 0x8, scoped, tag = 'scoped memory for tpu_custom_call.1']
    #allocation4 [shape = 's32[2]{0}', space=sflag, size = 0x8, scoped, tag = 'scoped memory for tpu_custom_call.1']
    #allocation5 [shape = 'u8[4096]{0}', space=vmem, size = 0x1000, scoped, tag = 'input window, operand 2, single buffered']
    #allocation6 [shape = 's32[1]{0}', space=sflag, size = 0x4, scoped, tag = 'scoped memory for tpu_custom_call.1']
    #allocation7 [shape = 'u8[4096]{0}', space=vmem, size = 0x1000, scoped, tag = 'input window, operand 3, single buffered']
    #allocation8 [shape = 'u8[2048]{0}', space=vmem, size = 0x800, scoped, tag = 'input window, operand 5']
    #allocation9 [shape = 's32[2]{0}', space=sflag, size = 0x8, scoped, tag = 'scoped memory for tpu_custom_call.1']
    #allocation10 [shape = 'u8[2048]{0}', space=vmem, size = 0x800, scoped, tag = 'input window, operand 6, single buffered']
    #allocation11 [shape = 'u8[2048]{0}', space=vmem, size = 0x800, scoped, tag = 'input window, operand 7, single buffered']
    #allocation12 [shape = 's32[1]{0}', space=sflag, size = 0x4, scoped, tag = 'scoped memory for tpu_custom_call.1']
    #allocation13 [shape = 'u8[1024]{0}', space=vmem, size = 0x400, scoped, tag = 'input window, operand 9, single buffered']
    #allocation14 [shape = 'u8[1024]{0}', space=vmem, size = 0x400, scoped, tag = 'input window, operand 13, single buffered']
    #allocation15 [shape = 's32[1]{0}', space=sflag, size = 0x4, scoped, tag = 'scoped memory for tpu_custom_call.1']
    #allocation16 [shape = 'u8[8192]{0}', space=vmem, size = 0x2000, scoped, tag = 'output window, operand 0']
    #allocation17 [shape = 'u8[32768]{0}', space=vmem, size = 0x8000, scoped, tag = 'output window, operand 1']
    %27 = vsyncpa [#allocation3], 0
    %s28 = scalar_lea.sflag [#allocation3], 1
    %29 = vsyncpa %s28, 0
    %30 = vsyncpa [#allocation6], 0
    %31 = vsyncpa [#allocation9], 0
    %s32 = scalar_lea.sflag [#allocation9], 1
    %33 = vsyncpa %s32, 0
    %34 = vsyncpa [#allocation12], 0
    %35 = vsyncpa [#allocation15], 0
    %36 = vsyncpa [#allocation4], 0
    %s37 = scalar_lea.sflag [#allocation4], 1
    %38 = vsyncpa %s37, 0
    loop: start=0, step=1, limit=4
    $region2: #{tpu_custom_call.1} parent=1 // loop_pre_header
      _
    $region3: #{tpu_custom_call.1} parent=1 // loop_header
      %s40 = sphi 0, %s44
      %p41 = scmp.ge.s32.totalorder %s40, 4
      %s50 = sphi 0, %s52
      %s53 = sphi 0, %s50
      %s54 = sphi 0, %s53
      %s70 = sphi 0, %s54
      %s76 = sphi 0, %s78
      %s79 = sphi 0, %s76
      %s80 = sphi 0, %s79
      %s96 = sphi 0, %s80
      %s100 = sphi 0, %s100
      %s102 = sphi 0, %s100
      %s103 = sphi 0, %s102
      %s117 = sphi 0, %s103
      %s121 = sphi 0, %s121
      %s123 = sphi 0, %s121
      %s124 = sphi 0, %s123
      %s138 = sphi 0, %s124
      %s142 = sphi 0, %s142
      %s144 = sphi 0, %s142
      %s145 = sphi 0, %s144
      %s159 = sphi 0, %s145
      %s165 = sphi 0, %s167
      %s168 = sphi 0, %s165
      %s169 = sphi 0, %s168
      %s185 = sphi 0, %s169
      %s189 = sphi 0, %s189
      %s191 = sphi 0, %s189
      %s192 = sphi 0, %s191
      %s206 = sphi 0, %s192
      %s210 = sphi 0, %s210
      %s212 = sphi 0, %s210
      %s213 = sphi 0, %s212
      %s227 = sphi 0, %s213
      %s231 = sphi 0, %s231
      %s233 = sphi 0, %s231
      %s234 = sphi 0, %s233
      %s248 = sphi 0, %s234
      %s252 = sphi 0, %s252
      %s254 = sphi 0, %s252
      %s255 = sphi 0, %s254
      %s269 = sphi 0, %s255
      %s273 = sphi 0, %s273
      %s275 = sphi 0, %s273
      %s276 = sphi 0, %s275
      %s290 = sphi 0, %s276
      %s294 = sphi 0, %s294
      %s296 = sphi 0, %s294
      %s297 = sphi 0, %s296
      %s311 = sphi 0, %s297
      %s315 = sphi 0, %s315
      %s317 = sphi 0, %s315
      %s318 = sphi 0, %s317
      %s332 = sphi 0, %s318
      %s336 = sphi 0, %s336
      %s338 = sphi 0, %s336
      %s339 = sphi 0, %s338
      %s353 = sphi 0, %s339
      %s357 = sphi 0, %s357
      %s359 = sphi 0, %s357
      %s360 = sphi 0, %s359
      %s374 = sphi 0, %s360
      %s378 = sphi 0, %s378
      %s380 = sphi 0, %s378
      %s381 = sphi 0, %s380
      %s395 = sphi 0, %s381
      %s399 = sphi 0, %s399
      %s401 = sphi 0, %s399
      %s402 = sphi 0, %s401
      %s416 = sphi 0, %s402
      %s420 = sphi 0, %s420
      %s422 = sphi 0, %s420
      %s423 = sphi 0, %s422
      %s437 = sphi 0, %s423
      %s441 = sphi 0, %s441
      %s443 = sphi 0, %s441
      %s444 = sphi 0, %s443
      %s458 = sphi 0, %s444
      %s462 = sphi 0, %s462
      %s464 = sphi 0, %s462
      %s465 = sphi 0, %s464
      %s479 = sphi 0, %s465
      %s485 = sphi 0, %s487
      %s488 = sphi 0, %s485
      %s489 = sphi 0, %s488
      %s505 = sphi 0, %s489
      %s511 = sphi 0, %s513
      %s514 = sphi 0, %s511
      %s515 = sphi 0, %s514
      %s531 = sphi 0, %s515
    $region4: #{tpu_custom_call.1} parent=1 // loop_header_branch
      %43 = sbr.rel (%p41) target = $region8
    $region5: #{tpu_custom_call.1} parent=1 // loop_body
      %s45 = ssub.s32 %s40, 1
      %s46 = ssub.s32 %s40, 2
      %s47 = sadd.s32 %s40, 1
      %s48 = ssub.s32 %s40, %s47
      %p49 = scmp.eq.s32.totalorder %s48, 0
      %s51 = sadd.s32 %s50, 1
      %s52 = scalar_select %p49, %s50, %s51
      %p55 = pneg %p49
      %p56 = scmp.eq.s32.totalorder %s40, 1
      %p57 = por %p55, %p56
      %p58 = scmp.ne.s32.totalorder %s50, %s53
      %p59 = scmp.eq.s32.totalorder %s40, 0
      %p60 = por %p58, %p59
      %p61 = scmp.ne.s32.totalorder %s50, %s53
      %p62 = scmp.eq.s32.totalorder %s45, 1
      %p63 = por %p61, %p62
      %p64 = scmp.ne.s32.totalorder %s53, %s54
      %p65 = scmp.eq.s32.totalorder %s45, 0
      %p66 = por %p64, %p65
      %p67 = scmp.ne.s32.totalorder %s53, %s54
      %p68 = scmp.eq.s32.totalorder %s46, 1
      %p69 = por %p67, %p68
      %p71 = scmp.ne.s32.totalorder %s54, %s70
      %p72 = scmp.eq.s32.totalorder %s46, 0
      %p73 = por %p71, %p72
      %s74 = ssub.s32 %s40, %s47
      %p75 = scmp.eq.s32.totalorder %s74, 0
      %s77 = sadd.s32 %s76, 1
      %s78 = scalar_select %p75, %s76, %s77
      %p81 = pneg %p75
      %p82 = scmp.eq.s32.totalorder %s40, 1
      %p83 = por %p81, %p82
      %p84 = scmp.ne.s32.totalorder %s76, %s79
      %p85 = scmp.eq.s32.totalorder %s40, 0
      %p86 = por %p84, %p85
      %p87 = scmp.ne.s32.totalorder %s76, %s79
      %p88 = scmp.eq.s32.totalorder %s45, 1
      %p89 = por %p87, %p88
      %p90 = scmp.ne.s32.totalorder %s79, %s80
      %p91 = scmp.eq.s32.totalorder %s45, 0
      %p92 = por %p90, %p91
      %p93 = scmp.ne.s32.totalorder %s79, %s80
      %p94 = scmp.eq.s32.totalorder %s46, 1
      %p95 = por %p93, %p94
      %p97 = scmp.ne.s32.totalorder %s80, %s96
      %p98 = scmp.eq.s32.totalorder %s46, 0
      %p99 = por %p97, %p98
      %s101 = sadd.s32 %s100, 1
      %p104 = scmp.eq.s32.totalorder %s40, 1
      %p105 = scmp.ne.s32.totalorder %s100, %s102
      %p106 = scmp.eq.s32.totalorder %s40, 0
      %p107 = por %p105, %p106
      %p108 = scmp.ne.s32.totalorder %s100, %s102
      %p109 = scmp.eq.s32.totalorder %s45, 1
      %p110 = por %p108, %p109
      %p111 = scmp.ne.s32.totalorder %s102, %s103
      %p112 = scmp.eq.s32.totalorder %s45, 0
      %p113 = por %p111, %p112
      %p114 = scmp.ne.s32.totalorder %s102, %s103
      %p115 = scmp.eq.s32.totalorder %s46, 1
      %p116 = por %p114, %p115
      %p118 = scmp.ne.s32.totalorder %s103, %s117
      %p119 = scmp.eq.s32.totalorder %s46, 0
      %p120 = por %p118, %p119
      %s122 = sadd.s32 %s121, 1
      %p125 = scmp.eq.s32.totalorder %s40, 1
      %p126 = scmp.ne.s32.totalorder %s121, %s123
      %p127 = scmp.eq.s32.totalorder %s40, 0
      %p128 = por %p126, %p127
      %p129 = scmp.ne.s32.totalorder %s121, %s123
      %p130 = scmp.eq.s32.totalorder %s45, 1
      %p131 = por %p129, %p130
      %p132 = scmp.ne.s32.totalorder %s123, %s124
      %p133 = scmp.eq.s32.totalorder %s45, 0
      %p134 = por %p132, %p133
      %p135 = scmp.ne.s32.totalorder %s123, %s124
      %p136 = scmp.eq.s32.totalorder %s46, 1
      %p137 = por %p135, %p136
      %p139 = scmp.ne.s32.totalorder %s124, %s138
      %p140 = scmp.eq.s32.totalorder %s46, 0
      %p141 = por %p139, %p140
      %s143 = sadd.s32 %s142, 1
      %p146 = scmp.eq.s32.totalorder %s40, 1
      %p147 = scmp.ne.s32.totalorder %s142, %s144
      %p148 = scmp.eq.s32.totalorder %s40, 0
      %p149 = por %p147, %p148
      %p150 = scmp.ne.s32.totalorder %s142, %s144
      %p151 = scmp.eq.s32.totalorder %s45, 1
      %p152 = por %p150, %p151
      %p153 = scmp.ne.s32.totalorder %s144, %s145
      %p154 = scmp.eq.s32.totalorder %s45, 0
      %p155 = por %p153, %p154
      %p156 = scmp.ne.s32.totalorder %s144, %s145
      %p157 = scmp.eq.s32.totalorder %s46, 1
      %p158 = por %p156, %p157
      %p160 = scmp.ne.s32.totalorder %s145, %s159
      %p161 = scmp.eq.s32.totalorder %s46, 0
      %p162 = por %p160, %p161
      %s163 = ssub.s32 %s40, %s47
      %p164 = scmp.eq.s32.totalorder %s163, 0
      %s166 = sadd.s32 %s165, 1
      %s167 = scalar_select %p164, %s165, %s166
      %p170 = pneg %p164
      %p171 = scmp.eq.s32.totalorder %s40, 1
      %p172 = por %p170, %p171
      %p173 = scmp.ne.s32.totalorder %s165, %s168
      %p174 = scmp.eq.s32.totalorder %s40, 0
      %p175 = por %p173, %p174
      %p176 = scmp.ne.s32.totalorder %s165, %s168
      %p177 = scmp.eq.s32.totalorder %s45, 1
      %p178 = por %p176, %p177
      %p179 = scmp.ne.s32.totalorder %s168, %s169
      %p180 = scmp.eq.s32.totalorder %s45, 0
      %p181 = por %p179, %p180
      %p182 = scmp.ne.s32.totalorder %s168, %s169
      %p183 = scmp.eq.s32.totalorder %s46, 1
      %p184 = por %p182, %p183
      %p186 = scmp.ne.s32.totalorder %s169, %s185
      %p187 = scmp.eq.s32.totalorder %s46, 0
      %p188 = por %p186, %p187
      %s190 = sadd.s32 %s189, 1
      %p193 = scmp.eq.s32.totalorder %s40, 1
      %p194 = scmp.ne.s32.totalorder %s189, %s191
      %p195 = scmp.eq.s32.totalorder %s40, 0
      %p196 = por %p194, %p195
      %p197 = scmp.ne.s32.totalorder %s189, %s191
      %p198 = scmp.eq.s32.totalorder %s45, 1
      %p199 = por %p197, %p198
      %p200 = scmp.ne.s32.totalorder %s191, %s192
      %p201 = scmp.eq.s32.totalorder %s45, 0
      %p202 = por %p200, %p201
      %p203 = scmp.ne.s32.totalorder %s191, %s192
      %p204 = scmp.eq.s32.totalorder %s46, 1
      %p205 = por %p203, %p204
      %p207 = scmp.ne.s32.totalorder %s192, %s206
      %p208 = scmp.eq.s32.totalorder %s46, 0
      %p209 = por %p207, %p208
      %s211 = sadd.s32 %s210, 1
      %p214 = scmp.eq.s32.totalorder %s40, 1
      %p215 = scmp.ne.s32.totalorder %s210, %s212
      %p216 = scmp.eq.s32.totalorder %s40, 0
      %p217 = por %p215, %p216
      %p218 = scmp.ne.s32.totalorder %s210, %s212
      %p219 = scmp.eq.s32.totalorder %s45, 1
      %p220 = por %p218, %p219
      %p221 = scmp.ne.s32.totalorder %s212, %s213
      %p222 = scmp.eq.s32.totalorder %s45, 0
      %p223 = por %p221, %p222
      %p224 = scmp.ne.s32.totalorder %s212, %s213
      %p225 = scmp.eq.s32.totalorder %s46, 1
      %p226 = por %p224, %p225
      %p228 = scmp.ne.s32.totalorder %s213, %s227
      %p229 = scmp.eq.s32.totalorder %s46, 0
      %p230 = por %p228, %p229
      %s232 = sadd.s32 %s231, 1
      %p235 = scmp.eq.s32.totalorder %s40, 1
      %p236 = scmp.ne.s32.totalorder %s231, %s233
      %p237 = scmp.eq.s32.totalorder %s40, 0
      %p238 = por %p236, %p237
      %p239 = scmp.ne.s32.totalorder %s231, %s233
      %p240 = scmp.eq.s32.totalorder %s45, 1
      %p241 = por %p239, %p240
      %p242 = scmp.ne.s32.totalorder %s233, %s234
      %p243 = scmp.eq.s32.totalorder %s45, 0
      %p244 = por %p242, %p243
      %p245 = scmp.ne.s32.totalorder %s233, %s234
      %p246 = scmp.eq.s32.totalorder %s46, 1
      %p247 = por %p245, %p246
      %p249 = scmp.ne.s32.totalorder %s234, %s248
      %p250 = scmp.eq.s32.totalorder %s46, 0
      %p251 = por %p249, %p250
      %s253 = sadd.s32 %s252, 1
      %p256 = scmp.eq.s32.totalorder %s40, 1
      %p257 = scmp.ne.s32.totalorder %s252, %s254
      %p258 = scmp.eq.s32.totalorder %s40, 0
      %p259 = por %p257, %p258
      %p260 = scmp.ne.s32.totalorder %s252, %s254
      %p261 = scmp.eq.s32.totalorder %s45, 1
      %p262 = por %p260, %p261
      %p263 = scmp.ne.s32.totalorder %s254, %s255
      %p264 = scmp.eq.s32.totalorder %s45, 0
      %p265 = por %p263, %p264
      %p266 = scmp.ne.s32.totalorder %s254, %s255
      %p267 = scmp.eq.s32.totalorder %s46, 1
      %p268 = por %p266, %p267
      %p270 = scmp.ne.s32.totalorder %s255, %s269
      %p271 = scmp.eq.s32.totalorder %s46, 0
      %p272 = por %p270, %p271
      %s274 = sadd.s32 %s273, 1
      %p277 = scmp.eq.s32.totalorder %s40, 1
      %p278 = scmp.ne.s32.totalorder %s273, %s275
      %p279 = scmp.eq.s32.totalorder %s40, 0
      %p280 = por %p278, %p279
      %p281 = scmp.ne.s32.totalorder %s273, %s275
      %p282 = scmp.eq.s32.totalorder %s45, 1
      %p283 = por %p281, %p282
      %p284 = scmp.ne.s32.totalorder %s275, %s276
      %p285 = scmp.eq.s32.totalorder %s45, 0
      %p286 = por %p284, %p285
      %p287 = scmp.ne.s32.totalorder %s275, %s276
      %p288 = scmp.eq.s32.totalorder %s46, 1
      %p289 = por %p287, %p288
      %p291 = scmp.ne.s32.totalorder %s276, %s290
      %p292 = scmp.eq.s32.totalorder %s46, 0
      %p293 = por %p291, %p292
      %s295 = sadd.s32 %s294, 1
      %p298 = scmp.eq.s32.totalorder %s40, 1
      %p299 = scmp.ne.s32.totalorder %s294, %s296
      %p300 = scmp.eq.s32.totalorder %s40, 0
      %p301 = por %p299, %p300
      %p302 = scmp.ne.s32.totalorder %s294, %s296
      %p303 = scmp.eq.s32.totalorder %s45, 1
      %p304 = por %p302, %p303
      %p305 = scmp.ne.s32.totalorder %s296, %s297
      %p306 = scmp.eq.s32.totalorder %s45, 0
      %p307 = por %p305, %p306
      %p308 = scmp.ne.s32.totalorder %s296, %s297
      %p309 = scmp.eq.s32.totalorder %s46, 1
      %p310 = por %p308, %p309
      %p312 = scmp.ne.s32.totalorder %s297, %s311
      %p313 = scmp.eq.s32.totalorder %s46, 0
      %p314 = por %p312, %p313
      %s316 = sadd.s32 %s315, 1
      %p319 = scmp.eq.s32.totalorder %s40, 1
      %p320 = scmp.ne.s32.totalorder %s315, %s317
      %p321 = scmp.eq.s32.totalorder %s40, 0
      %p322 = por %p320, %p321
      %p323 = scmp.ne.s32.totalorder %s315, %s317
      %p324 = scmp.eq.s32.totalorder %s45, 1
      %p325 = por %p323, %p324
      %p326 = scmp.ne.s32.totalorder %s317, %s318
      %p327 = scmp.eq.s32.totalorder %s45, 0
      %p328 = por %p326, %p327
      %p329 = scmp.ne.s32.totalorder %s317, %s318
      %p330 = scmp.eq.s32.totalorder %s46, 1
      %p331 = por %p329, %p330
      %p333 = scmp.ne.s32.totalorder %s318, %s332
      %p334 = scmp.eq.s32.totalorder %s46, 0
      %p335 = por %p333, %p334
      %s337 = sadd.s32 %s336, 1
      %p340 = scmp.eq.s32.totalorder %s40, 1
      %p341 = scmp.ne.s32.totalorder %s336, %s338
      %p342 = scmp.eq.s32.totalorder %s40, 0
      %p343 = por %p341, %p342
      %p344 = scmp.ne.s32.totalorder %s336, %s338
      %p345 = scmp.eq.s32.totalorder %s45, 1
      %p346 = por %p344, %p345
      %p347 = scmp.ne.s32.totalorder %s338, %s339
      %p348 = scmp.eq.s32.totalorder %s45, 0
      %p349 = por %p347, %p348
      %p350 = scmp.ne.s32.totalorder %s338, %s339
      %p351 = scmp.eq.s32.totalorder %s46, 1
      %p352 = por %p350, %p351
      %p354 = scmp.ne.s32.totalorder %s339, %s353
      %p355 = scmp.eq.s32.totalorder %s46, 0
      %p356 = por %p354, %p355
      %s358 = sadd.s32 %s357, 1
      %p361 = scmp.eq.s32.totalorder %s40, 1
      %p362 = scmp.ne.s32.totalorder %s357, %s359
      %p363 = scmp.eq.s32.totalorder %s40, 0
      %p364 = por %p362, %p363
      %p365 = scmp.ne.s32.totalorder %s357, %s359
      %p366 = scmp.eq.s32.totalorder %s45, 1
      %p367 = por %p365, %p366
      %p368 = scmp.ne.s32.totalorder %s359, %s360
      %p369 = scmp.eq.s32.totalorder %s45, 0
      %p370 = por %p368, %p369
      %p371 = scmp.ne.s32.totalorder %s359, %s360
      %p372 = scmp.eq.s32.totalorder %s46, 1
      %p373 = por %p371, %p372
      %p375 = scmp.ne.s32.totalorder %s360, %s374
      %p376 = scmp.eq.s32.totalorder %s46, 0
      %p377 = por %p375, %p376
      %s379 = sadd.s32 %s378, 1
      %p382 = scmp.eq.s32.totalorder %s40, 1
      %p383 = scmp.ne.s32.totalorder %s378, %s380
      %p384 = scmp.eq.s32.totalorder %s40, 0
      %p385 = por %p383, %p384
      %p386 = scmp.ne.s32.totalorder %s378, %s380
      %p387 = scmp.eq.s32.totalorder %s45, 1
      %p388 = por %p386, %p387
      %p389 = scmp.ne.s32.totalorder %s380, %s381
      %p390 = scmp.eq.s32.totalorder %s45, 0
      %p391 = por %p389, %p390
      %p392 = scmp.ne.s32.totalorder %s380, %s381
      %p393 = scmp.eq.s32.totalorder %s46, 1
      %p394 = por %p392, %p393
      %p396 = scmp.ne.s32.totalorder %s381, %s395
      %p397 = scmp.eq.s32.totalorder %s46, 0
      %p398 = por %p396, %p397
      %s400 = sadd.s32 %s399, 1
      %p403 = scmp.eq.s32.totalorder %s40, 1
      %p404 = scmp.ne.s32.totalorder %s399, %s401
      %p405 = scmp.eq.s32.totalorder %s40, 0
      %p406 = por %p404, %p405
      %p407 = scmp.ne.s32.totalorder %s399, %s401
      %p408 = scmp.eq.s32.totalorder %s45, 1
      %p409 = por %p407, %p408
      %p410 = scmp.ne.s32.totalorder %s401, %s402
      %p411 = scmp.eq.s32.totalorder %s45, 0
      %p412 = por %p410, %p411
      %p413 = scmp.ne.s32.totalorder %s401, %s402
      %p414 = scmp.eq.s32.totalorder %s46, 1
      %p415 = por %p413, %p414
      %p417 = scmp.ne.s32.totalorder %s402, %s416
      %p418 = scmp.eq.s32.totalorder %s46, 0
      %p419 = por %p417, %p418
      %s421 = sadd.s32 %s420, 1
      %p424 = scmp.eq.s32.totalorder %s40, 1
      %p425 = scmp.ne.s32.totalorder %s420, %s422
      %p426 = scmp.eq.s32.totalorder %s40, 0
      %p427 = por %p425, %p426
      %p428 = scmp.ne.s32.totalorder %s420, %s422
      %p429 = scmp.eq.s32.totalorder %s45, 1
      %p430 = por %p428, %p429
      %p431 = scmp.ne.s32.totalorder %s422, %s423
      %p432 = scmp.eq.s32.totalorder %s45, 0
      %p433 = por %p431, %p432
      %p434 = scmp.ne.s32.totalorder %s422, %s423
      %p435 = scmp.eq.s32.totalorder %s46, 1
      %p436 = por %p434, %p435
      %p438 = scmp.ne.s32.totalorder %s423, %s437
      %p439 = scmp.eq.s32.totalorder %s46, 0
      %p440 = por %p438, %p439
      %s442 = sadd.s32 %s441, 1
      %p445 = scmp.eq.s32.totalorder %s40, 1
      %p446 = scmp.ne.s32.totalorder %s441, %s443
      %p447 = scmp.eq.s32.totalorder %s40, 0
      %p448 = por %p446, %p447
      %p449 = scmp.ne.s32.totalorder %s441, %s443
      %p450 = scmp.eq.s32.totalorder %s45, 1
      %p451 = por %p449, %p450
      %p452 = scmp.ne.s32.totalorder %s443, %s444
      %p453 = scmp.eq.s32.totalorder %s45, 0
      %p454 = por %p452, %p453
      %p455 = scmp.ne.s32.totalorder %s443, %s444
      %p456 = scmp.eq.s32.totalorder %s46, 1
      %p457 = por %p455, %p456
      %p459 = scmp.ne.s32.totalorder %s444, %s458
      %p460 = scmp.eq.s32.totalorder %s46, 0
      %p461 = por %p459, %p460
      %s463 = sadd.s32 %s462, 1
      %p466 = scmp.eq.s32.totalorder %s40, 1
      %p467 = scmp.ne.s32.totalorder %s462, %s464
      %p468 = scmp.eq.s32.totalorder %s40, 0
      %p469 = por %p467, %p468
      %p470 = scmp.ne.s32.totalorder %s462, %s464
      %p471 = scmp.eq.s32.totalorder %s45, 1
      %p472 = por %p470, %p471
      %p473 = scmp.ne.s32.totalorder %s464, %s465
      %p474 = scmp.eq.s32.totalorder %s45, 0
      %p475 = por %p473, %p474
      %p476 = scmp.ne.s32.totalorder %s464, %s465
      %p477 = scmp.eq.s32.totalorder %s46, 1
      %p478 = por %p476, %p477
      %p480 = scmp.ne.s32.totalorder %s465, %s479
      %p481 = scmp.eq.s32.totalorder %s46, 0
      %p482 = por %p480, %p481
      %s483 = ssub.s32 %s40, %s47
      %p484 = scmp.eq.s32.totalorder %s483, 0
      %s486 = sadd.s32 %s485, 1
      %s487 = scalar_select %p484, %s485, %s486
      %p490 = pneg %p484
      %p491 = scmp.eq.s32.totalorder %s40, 1
      %p492 = por %p490, %p491
      %p493 = scmp.ne.s32.totalorder %s485, %s488
      %p494 = scmp.eq.s32.totalorder %s40, 0
      %p495 = por %p493, %p494
      %p496 = scmp.ne.s32.totalorder %s485, %s488
      %p497 = scmp.eq.s32.totalorder %s45, 1
      %p498 = por %p496, %p497
      %p499 = scmp.ne.s32.totalorder %s488, %s489
      %p500 = scmp.eq.s32.totalorder %s45, 0
      %p501 = por %p499, %p500
      %p502 = scmp.ne.s32.totalorder %s488, %s489
      %p503 = scmp.eq.s32.totalorder %s46, 1
      %p504 = por %p502, %p503
      %p506 = scmp.ne.s32.totalorder %s489, %s505
      %p507 = scmp.eq.s32.totalorder %s46, 0
      %p508 = por %p506, %p507
      %s509 = ssub.s32 %s40, %s47
      %p510 = scmp.eq.s32.totalorder %s509, 0
      %s512 = sadd.s32 %s511, 1
      %s513 = scalar_select %p510, %s511, %s512
      %p516 = pneg %p510
      %p517 = scmp.eq.s32.totalorder %s40, 1
      %p518 = por %p516, %p517
      %p519 = scmp.ne.s32.totalorder %s511, %s514
      %p520 = scmp.eq.s32.totalorder %s40, 0
      %p521 = por %p519, %p520
      %p522 = scmp.ne.s32.totalorder %s511, %s514
      %p523 = scmp.eq.s32.totalorder %s45, 1
      %p524 = por %p522, %p523
      %p525 = scmp.ne.s32.totalorder %s514, %s515
      %p526 = scmp.eq.s32.totalorder %s45, 0
      %p527 = por %p525, %p526
      %p528 = scmp.ne.s32.totalorder %s514, %s515
      %p529 = scmp.eq.s32.totalorder %s46, 1
      %p530 = por %p528, %p529
      %p532 = scmp.ne.s32.totalorder %s515, %s531
      %p533 = scmp.eq.s32.totalorder %s46, 0
      %p534 = por %p532, %p533
      %p535 = scmp.le.s32.totalorder 1, %s40
      %p536 = scmp.lt.s32.totalorder %s40, 3
      %p537 = pnand %p535, %p536
      %p538 = pneg %p537
      // Predicated region
      $region9: #{tpu_custom_call.1} parent=5 // pred_check
        _
      $region10: #{tpu_custom_call.1} parent=5 // pred_check_branch
        %540 = sbr.rel (%p537) target = $region12
      $region11: #{tpu_custom_call.1} parent=5 // pred_region
        %s541 = ssub.s32 %s40, 1
        // Predicated region
        $region13: #{tpu_custom_call.1} parent=11 // pred_check
          %p542 = pneg %p113
        $region14: #{tpu_custom_call.1} parent=11 // pred_check_branch
          %544 = sbr.rel (%p542) target = $region16
        $region15: #{tpu_custom_call.1} parent=11 // pred_region
          %s546 = ssub.s32 128, 128
          %547 = vsyncadd [#allocation6], %s546
          %s549 = sshll.u32 [#allocation5], 4
          %s550 = int_to_ptr.vmem [resolvable:$true] %s549
          %552 = dma.hbm_to_vmem [thread:$0]  %s2, 128, %s550, [#allocation6]
        $region16: #{tpu_custom_call.1} parent=11 // pred_fallthru
          _
        // Predicated region
        $region17: #{tpu_custom_call.1} parent=11 // pred_check
          %p553 = pneg %p134
        $region18: #{tpu_custom_call.1} parent=11 // pred_check_branch
          %555 = sbr.rel (%p553) target = $region20
        $region19: #{tpu_custom_call.1} parent=11 // pred_region
          %s557 = ssub.s32 128, 128
          %558 = vsyncadd [#allocation6], %s557
          %s560 = sshll.u32 [#allocation7], 4
          %s561 = int_to_ptr.vmem [resolvable:$true] %s560
          %563 = dma.hbm_to_vmem [thread:$0]  %s3, 128, %s561, [#allocation6]
        $region20: #{tpu_custom_call.1} parent=11 // pred_fallthru
          _
        // Predicated region
        $region21: #{tpu_custom_call.1} parent=11 // pred_check
          %p564 = pneg %p155
        $region22: #{tpu_custom_call.1} parent=11 // pred_check_branch
          %566 = sbr.rel (%p564) target = $region24
        $region23: #{tpu_custom_call.1} parent=11 // pred_region
          _
        $region24: #{tpu_custom_call.1} parent=11 // pred_fallthru
          _
        // Predicated region
        $region25: #{tpu_custom_call.1} parent=11 // pred_check
          %p567 = pneg %p202
        $region26: #{tpu_custom_call.1} parent=11 // pred_check_branch
          %569 = sbr.rel (%p567) target = $region28
        $region27: #{tpu_custom_call.1} parent=11 // pred_region
          %s571 = ssub.s32 64, 64
          %572 = vsyncadd [#allocation9], %s571
          %s573 = sshll.u32 [#allocation10], 4
          %s574 = int_to_ptr.vmem [resolvable:$true] %s573
          %579 = dma.hbm_to_vmem [thread:$0]  %s6, 64, %s574, [#allocation9], 32, 32, 2
        $region28: #{tpu_custom_call.1} parent=11 // pred_fallthru
          _
        // Predicated region
        $region29: #{tpu_custom_call.1} parent=11 // pred_check
          %p580 = pneg %p223
        $region30: #{tpu_custom_call.1} parent=11 // pred_check_branch
          %582 = sbr.rel (%p580) target = $region32
        $region31: #{tpu_custom_call.1} parent=11 // pred_region
          %s584 = ssub.s32 64, 64
          %585 = vsyncadd [#allocation12], %s584
          %s586 = sshll.u32 [#allocation11], 4
          %s587 = int_to_ptr.vmem [resolvable:$true] %s586
          %592 = dma.hbm_to_vmem [thread:$0]  %s7, 64, %s587, [#allocation12], 32, 32, 2
        $region32: #{tpu_custom_call.1} parent=11 // pred_fallthru
          _
        // Predicated region
        $region33: #{tpu_custom_call.1} parent=11 // pred_check
          %p593 = pneg %p244
        $region34: #{tpu_custom_call.1} parent=11 // pred_check_branch
          %595 = sbr.rel (%p593) target = $region36
        $region35: #{tpu_custom_call.1} parent=11 // pred_region
          _
        $region36: #{tpu_custom_call.1} parent=11 // pred_fallthru
          _
        // Predicated region
        $region37: #{tpu_custom_call.1} parent=11 // pred_check
          %p596 = pneg %p265
        $region38: #{tpu_custom_call.1} parent=11 // pred_check_branch
          %598 = sbr.rel (%p596) target = $region40
        $region39: #{tpu_custom_call.1} parent=11 // pred_region
          %s600 = ssub.s32 32, 32
          %601 = vsyncadd [#allocation12], %s600
          %s602 = sshll.u32 [#allocation13], 4
          %s603 = int_to_ptr.vmem [resolvable:$true] %s602
          %608 = dma.hbm_to_vmem [thread:$0]  %s9, 32, %s603, [#allocation12], 16, 16, 1
        $region40: #{tpu_custom_call.1} parent=11 // pred_fallthru
          _
        // Predicated region
        $region41: #{tpu_custom_call.1} parent=11 // pred_check
          %p609 = pneg %p286
        $region42: #{tpu_custom_call.1} parent=11 // pred_check_branch
          %611 = sbr.rel (%p609) target = $region44
        $region43: #{tpu_custom_call.1} parent=11 // pred_region
          _
        $region44: #{tpu_custom_call.1} parent=11 // pred_fallthru
          _
        // Predicated region
        $region45: #{tpu_custom_call.1} parent=11 // pred_check
          %p612 = pneg %p307
        $region46: #{tpu_custom_call.1} parent=11 // pred_check_branch
          %614 = sbr.rel (%p612) target = $region48
        $region47: #{tpu_custom_call.1} parent=11 // pred_region
          _
        $region48: #{tpu_custom_call.1} parent=11 // pred_fallthru
          _
        // Predicated region
        $region49: #{tpu_custom_call.1} parent=11 // pred_check
          %p615 = pneg %p328
        $region50: #{tpu_custom_call.1} parent=11 // pred_check_branch
          %617 = sbr.rel (%p615) target = $region52
        $region51: #{tpu_custom_call.1} parent=11 // pred_region
          _
        $region52: #{tpu_custom_call.1} parent=11 // pred_fallthru
          _
        // Predicated region
        $region53: #{tpu_custom_call.1} parent=11 // pred_check
          %p618 = pneg %p349
        $region54: #{tpu_custom_call.1} parent=11 // pred_check_branch
          %620 = sbr.rel (%p618) target = $region56
        $region55: #{tpu_custom_call.1} parent=11 // pred_region
          %s622 = ssub.s32 32, 32
          %623 = vsyncadd [#allocation15], %s622
          %s624 = sshll.u32 [#allocation14], 4
          %s625 = int_to_ptr.vmem [resolvable:$true] %s624
          %630 = dma.hbm_to_vmem [thread:$0]  %s13, 32, %s625, [#allocation15], 16, 16, 1
        $region56: #{tpu_custom_call.1} parent=11 // pred_fallthru
          _
        // Predicated region
        $region57: #{tpu_custom_call.1} parent=11 // pred_check
          %p631 = pneg %p370
        $region58: #{tpu_custom_call.1} parent=11 // pred_check_branch
          %633 = sbr.rel (%p631) target = $region60
        $region59: #{tpu_custom_call.1} parent=11 // pred_region
          _
        $region60: #{tpu_custom_call.1} parent=11 // pred_fallthru
          _
        // Predicated region
        $region61: #{tpu_custom_call.1} parent=11 // pred_check
          %p634 = pneg %p391
        $region62: #{tpu_custom_call.1} parent=11 // pred_check_branch
          %636 = sbr.rel (%p634) target = $region64
        $region63: #{tpu_custom_call.1} parent=11 // pred_region
          _
        $region64: #{tpu_custom_call.1} parent=11 // pred_fallthru
          _
        // Predicated region
        $region65: #{tpu_custom_call.1} parent=11 // pred_check
          %p637 = pneg %p412
        $region66: #{tpu_custom_call.1} parent=11 // pred_check_branch
          %639 = sbr.rel (%p637) target = $region68
        $region67: #{tpu_custom_call.1} parent=11 // pred_region
          _
        $region68: #{tpu_custom_call.1} parent=11 // pred_fallthru
          _
        // Predicated region
        $region69: #{tpu_custom_call.1} parent=11 // pred_check
          %p640 = pneg %p433
        $region70: #{tpu_custom_call.1} parent=11 // pred_check_branch
          %642 = sbr.rel (%p640) target = $region72
        $region71: #{tpu_custom_call.1} parent=11 // pred_region
          _
        $region72: #{tpu_custom_call.1} parent=11 // pred_fallthru
          _
        // Predicated region
        $region73: #{tpu_custom_call.1} parent=11 // pred_check
          %p643 = pneg %p454
        $region74: #{tpu_custom_call.1} parent=11 // pred_check_branch
          %645 = sbr.rel (%p643) target = $region76
        $region75: #{tpu_custom_call.1} parent=11 // pred_region
          _
        $region76: #{tpu_custom_call.1} parent=11 // pred_fallthru
          _
        // Predicated region
        $region77: #{tpu_custom_call.1} parent=11 // pred_check
          %p646 = pneg %p475
        $region78: #{tpu_custom_call.1} parent=11 // pred_check_branch
          %648 = sbr.rel (%p646) target = $region80
        $region79: #{tpu_custom_call.1} parent=11 // pred_region
          _
        $region80: #{tpu_custom_call.1} parent=11 // pred_fallthru
          _
      $region12: #{tpu_custom_call.1} parent=5 // pred_fallthru
        _
      %p649 = scmp.lt.s32.totalorder %s40, 2
      // Predicated region
      $region81: #{tpu_custom_call.1} parent=5 // pred_check
        %p650 = pneg %p649
      $region82: #{tpu_custom_call.1} parent=5 // pred_check_branch
        %652 = sbr.rel (%p650) target = $region84
      $region83: #{tpu_custom_call.1} parent=5 // pred_region
        // Predicated region
        $region85: #{tpu_custom_call.1} parent=83 // pred_check
          %p653 = pneg %p60
        $region86: #{tpu_custom_call.1} parent=83 // pred_check_branch
          %655 = sbr.rel (%p653) target = $region88
        $region87: #{tpu_custom_call.1} parent=83 // pred_region
          %p656 = scmp.lt.s32.totalorder %s40, 1
          %s657 = scalar_select %p656, %s40, 1
          %s658 = smul.addr %s657, 2
          %s659 = smul.addr %s658, 8
          %s660 = scalar_lea.vmem %s0, %s659
        $region88: #{tpu_custom_call.1} parent=83 // pred_fallthru
          _
        // Predicated region
        $region89: #{tpu_custom_call.1} parent=83 // pred_check
          %p661 = pneg %p86
        $region90: #{tpu_custom_call.1} parent=83 // pred_check_branch
          %663 = sbr.rel (%p661) target = $region92
        $region91: #{tpu_custom_call.1} parent=83 // pred_region
          %s664 = sand.u32 %s76, 1
          %s665 = scalar_lea.sflag [#allocation3], %s664
          %s666 = sand.u32 %s76, 1
          %s667 = scalar_lea.vmem [#allocation2], %s666
          %s669 = ssub.s32 16, 16
          %670 = vsyncadd %s665, %s669
          %s671 = smul.addr %s40, 16
          %s672 = scalar_lea.hbm %s1, %s671
          %s674 = sshll.u32 %s667, 4
          %s675 = int_to_ptr.vmem [resolvable:$true] %s674
          %677 = dma.hbm_to_vmem [thread:$0]  %s672, 16, %s675, %s665
        $region92: #{tpu_custom_call.1} parent=83 // pred_fallthru
          _
        // Predicated region
        $region93: #{tpu_custom_call.1} parent=83 // pred_check
          %p678 = pneg %p175
        $region94: #{tpu_custom_call.1} parent=83 // pred_check_branch
          %680 = sbr.rel (%p678) target = $region96
        $region95: #{tpu_custom_call.1} parent=83 // pred_region
          %s681 = sand.u32 %s40, 1
          %s682 = scalar_lea.sflag [#allocation9], %s681
          %s683 = sand.u32 %s165, 1
          %s684 = smul.addr %s683, 2
          %s685 = scalar_lea.vmem [#allocation8], %s684
          %s687 = ssub.s32 32, 32
          %688 = vsyncadd %s682, %s687
          %s689 = smul.addr %s40, 16
          %s690 = scalar_lea.hbm %s5, %s689
          %s691 = sshll.u32 %s685, 4
          %s692 = int_to_ptr.vmem [resolvable:$true] %s691
          %697 = dma.hbm_to_vmem [thread:$0]  %s690, 32, %s692, %s682, 32, 16, 1
        $region96: #{tpu_custom_call.1} parent=83 // pred_fallthru
          _
      $region84: #{tpu_custom_call.1} parent=5 // pred_fallthru
        _
      %p698 = scmp.le.s32.totalorder 1, %s40
      %p699 = scmp.lt.s32.totalorder %s40, 3
      %p700 = pnand %p698, %p699
      %p701 = pneg %p700
      // Predicated region
      $region97: #{tpu_custom_call.1} parent=5 // pred_check
        _
      $region98: #{tpu_custom_call.1} parent=5 // pred_check_branch
        %703 = sbr.rel (%p700) target = $region100
      $region99: #{tpu_custom_call.1} parent=5 // pred_region
        %s704 = ssub.s32 %s40, 1
        %s705 = sand.u32 %s79, 1
        %s706 = scalar_lea.sflag [#allocation3], %s705
        %s707 = sand.u32 %s79, 1
        %s708 = scalar_lea.vmem [#allocation2], %s707
        // Predicated region
        $region101: #{tpu_custom_call.1} parent=99 // pred_check
          %p709 = pneg %p92
        $region102: #{tpu_custom_call.1} parent=99 // pred_check_branch
          %711 = sbr.rel (%p709) target = $region104
        $region103: #{tpu_custom_call.1} parent=99 // pred_region
          %712 = dma.done %s706, 16
        $region104: #{tpu_custom_call.1} parent=99 // pred_fallthru
          _
        // Predicated region
        $region105: #{tpu_custom_call.1} parent=99 // pred_check
          %p713 = pneg %p113
        $region106: #{tpu_custom_call.1} parent=99 // pred_check_branch
          %715 = sbr.rel (%p713) target = $region108
        $region107: #{tpu_custom_call.1} parent=99 // pred_region
          %716 = dma.done [#allocation6], 128
        $region108: #{tpu_custom_call.1} parent=99 // pred_fallthru
          _
        // Predicated region
        $region109: #{tpu_custom_call.1} parent=99 // pred_check
          %p717 = pneg %p134
        $region110: #{tpu_custom_call.1} parent=99 // pred_check_branch
          %719 = sbr.rel (%p717) target = $region112
        $region111: #{tpu_custom_call.1} parent=99 // pred_region
          %720 = dma.done [#allocation6], 128
        $region112: #{tpu_custom_call.1} parent=99 // pred_fallthru
          _
        %s721 = sand.u32 %s45, 1
        %s722 = scalar_lea.sflag [#allocation9], %s721
        %s723 = sand.u32 %s168, 1
        %s724 = smul.addr %s723, 2
        %s725 = scalar_lea.vmem [#allocation8], %s724
        // Predicated region
        $region113: #{tpu_custom_call.1} parent=99 // pred_check
          %p726 = pneg %p181
        $region114: #{tpu_custom_call.1} parent=99 // pred_check_branch
          %728 = sbr.rel (%p726) target = $region116
        $region115: #{tpu_custom_call.1} parent=99 // pred_region
          %729 = dma.done %s722, 32
        $region116: #{tpu_custom_call.1} parent=99 // pred_fallthru
          _
        // Predicated region
        $region117: #{tpu_custom_call.1} parent=99 // pred_check
          %p730 = pneg %p202
        $region118: #{tpu_custom_call.1} parent=99 // pred_check_branch
          %732 = sbr.rel (%p730) target = $region120
        $region119: #{tpu_custom_call.1} parent=99 // pred_region
          %733 = dma.done [#allocation9], 64
        $region120: #{tpu_custom_call.1} parent=99 // pred_fallthru
          _
        // Predicated region
        $region121: #{tpu_custom_call.1} parent=99 // pred_check
          %p734 = pneg %p223
        $region122: #{tpu_custom_call.1} parent=99 // pred_check_branch
          %736 = sbr.rel (%p734) target = $region124
        $region123: #{tpu_custom_call.1} parent=99 // pred_region
          %737 = dma.done [#allocation12], 64
        $region124: #{tpu_custom_call.1} parent=99 // pred_fallthru
          _
        // Predicated region
        $region125: #{tpu_custom_call.1} parent=99 // pred_check
          %p738 = pneg %p265
        $region126: #{tpu_custom_call.1} parent=99 // pred_check_branch
          %740 = sbr.rel (%p738) target = $region128
        $region127: #{tpu_custom_call.1} parent=99 // pred_region
          %741 = dma.done [#allocation12], 32
        $region128: #{tpu_custom_call.1} parent=99 // pred_fallthru
          _
        // Predicated region
        $region129: #{tpu_custom_call.1} parent=99 // pred_check
          %p742 = pneg %p349
        $region130: #{tpu_custom_call.1} parent=99 // pred_check_branch
          %744 = sbr.rel (%p742) target = $region132
        $region131: #{tpu_custom_call.1} parent=99 // pred_region
          %745 = dma.done [#allocation15], 32
        $region132: #{tpu_custom_call.1} parent=99 // pred_fallthru
          _
        %p746 = scmp.lt.s32.totalorder %s45, 1
        %s747 = scalar_select %p746, %s45, 1
        %s748 = smul.addr %s747, 2
        %s749 = smul.addr %s748, 8
        %s750 = scalar_lea.vmem %s0, %s749
        %p751 = pneg %p66
        %p752 = pneg %p63
        %s753 = sand.u32 %s79, 1
        %s754 = scalar_lea.sflag [#allocation3], %s753
        %s755 = sand.u32 %s79, 1
        %s756 = scalar_lea.vmem [#allocation2], %s755
        %p757 = pneg %p92
        %p758 = pneg %p89
        %p759 = pneg %p113
        %p760 = pneg %p110
        %p761 = pneg %p134
        %p762 = pneg %p131
        %p763 = pneg %p155
        %p764 = pneg %p152
        %s765 = sand.u32 %s45, 1
        %s766 = scalar_lea.sflag [#allocation9], %s765
        %s767 = sand.u32 %s168, 1
        %s768 = smul.addr %s767, 2
        %s769 = scalar_lea.vmem [#allocation8], %s768
        %p770 = pneg %p181
        %p771 = pneg %p178
        %p772 = pneg %p202
        %p773 = pneg %p199
        %p774 = pneg %p223
        %p775 = pneg %p220
        %p776 = pneg %p244
        %p777 = pneg %p241
        %p778 = pneg %p265
        %p779 = pneg %p262
        %p780 = pneg %p286
        %p781 = pneg %p283
        %p782 = pneg %p307
        %p783 = pneg %p304
        %p784 = pneg %p328
        %p785 = pneg %p325
        %p786 = pneg %p349
        %p787 = pneg %p346
        %p788 = pneg %p370
        %p789 = pneg %p367
        %p790 = pneg %p391
        %p791 = pneg %p388
        %p792 = pneg %p412
        %p793 = pneg %p409
        %p794 = pneg %p433
        %p795 = pneg %p430
        %p796 = pneg %p454
        %p797 = pneg %p451
        %p798 = pneg %p475
        %p799 = pneg %p472
        %p800 = pneg %p501
        %p801 = pneg %p498
        %s802 = sand.u32 %s488, 1
        %s803 = scalar_lea.sflag [#allocation4], %s802
        %s804 = sand.u32 %s488, 1
        %s805 = smul.addr %s804, 8
        %s806 = scalar_lea.vmem [#allocation16], %s805
        %p807 = pneg %p527
        %p808 = pneg %p524
        %s809 = sand.u32 %s514, 1
        %s810 = sand.u32 %s514, 1
        %s811 = smul.addr %s810, 32
        %s812 = scalar_lea.vmem [#allocation17], %s811
        %p813 = scmp.lt.s32.totalorder %s45, 1
        %s814 = scalar_select %p813, %s45, 1
        %s815 = smul.addr %s814, 2
        %s816 = smul.addr %s815, 8
        %s817 = scalar_lea.vmem %s0, %s816
        %v819 = vld [vmem:[%s817] sm:$0xff]
        %v820 = vld [vmem:[%s817 + $0x8] sm:$0xff]
        %vm821 = vcmask 261120
        %v822 = vsel %vm821, %v819, 0.0
        %v823 = vsel %vm821, %v820, 0.0
        %v824 = vadd.f32 %v822, %v823
        %v825 = vrot.slane %v824, 4
        %v826 = vadd.f32 %v824, %v825
        %v827 = vrot.slane %v826, 2
        %v828 = vadd.f32 %v826, %v827
        %v829 = vrot.slane %v828, 1
        %v830 = vadd.f32 %v828, %v829
        %v831 = vrcp.pop 16.0
        %v832 = vmul.f32 %v830, %v831
        %v833 = vld [vmem:[%s708] sm:$0x1]
        %v834 = vadd.f32 %v832, %v833
        %v835 = vld [vmem:[#allocation5] sm:$0xff]
        %v836 = vlaneseq
        %v837 = vshrl.u32 %v836, 7
        %v838 = vsub.s32 0, %v837
        %v839 = vrot.slane %v834, %v838
        %v840 = vadd.f32 %v835, %v839
        %v841 = vld [vmem:[%s4] sm:$0x3]
        %v842 = vsel %vm821, %v840, 0.0
        %843 = vadd.xlane.f32.xlu0 %v842
        %v844 = vpop.xlane.xlu0 %843
        %v845 = vrcp.pop 32.0
        %v846 = vmul.f32 %v844, %v845
        %v847 = vsub.f32 %v840, %v846
        %v848 = vmul.f32 %v847, %v847
        %v849 = vsel %vm821, %v848, 0.0
        %850 = vadd.xlane.f32.xlu0 %v849
        %v851 = vpop.xlane.xlu0 %850
        %v852 = vmul.f32 %v851, %v845
        %v853 = vadd.f32 %v852, 1e-05
        %v854 = vrsqrt.pop %v853
        %v855 = vmul.f32 %v847, %v854
        %v856 = vlaneseq
        %v857 = vshrl.u32 %v856, 7
        %v858 = vsub.s32 0, %v857
        %v859 = vrot.slane %v841, %v858
        %v860 = vmul.f32 %v855, %v859
        %v861 = vlaneseq
        %v862 = vshrl.u32 %v861, 7
        %v863 = vsub.s32 1, %v862
        %v864 = vrot.slane %v841, %v863
        %v865 = vadd.f32 %v860, %v864
        %v866 = vld [vmem:[#allocation7] sm:$0xff]
        %v867 = vadd.f32 %v865, %v866
        %v868 = vlaneseq
        %v869 = vshrl.u32 %v868, 7
        %v870 = vadd.s32 %v869, 1
        %v871 = vlaneseq
        %v872 = vand.u32 %v871, 127
        %v873 = vsub.s32 %v870, %v872
        %vm874 = vcmp.ge.s32.totalorder %v873, 0
        %vm875 = vcmp.le.s32.totalorder %v873, 1000
        %vm876 = vmand %vm874, %vm875
        %v877 = vld [vmem:[%s725] sm:$0x1]
        %v878 = vld [vmem:[#allocation10] sm:$0x3]
        %v879 = vsel %vm821, %v867, 0.0
        %880 = vadd.xlane.f32.xlu0 %v879
        %v881 = vpop.xlane.xlu0 %880
        %v882 = vmul.f32 %v881, %v845
        %v883 = vsub.f32 %v867, %v882
        %v884 = vmul.f32 %v883, %v883
        %v885 = vsel %vm821, %v884, 0.0
        %886 = vadd.xlane.f32.xlu0 %v885
        %v887 = vpop.xlane.xlu0 %886
        %v888 = vmul.f32 %v887, %v845
        %v889 = vadd.f32 %v888, 1e-05
        %v890 = vrsqrt.pop %v889
        %v891 = vmul.f32 %v883, %v890
        %v892 = vlaneseq
        %v893 = vshrl.u32 %v892, 7
        %v894 = vsub.s32 0, %v893
        %v895 = vrot.slane %v878, %v894
        %v896 = vmul.f32 %v891, %v895
        %v897 = vlaneseq
        %v898 = vshrl.u32 %v897, 7
        %v899 = vsub.s32 1, %v898
        %v900 = vrot.slane %v878, %v899
        %v901 = vadd.f32 %v896, %v900
        %vm902 = vcmask 253952
        %903 = vst.msk [vmem:[%s812] sm:$0x1] %vm902, %v877
        %904 = vst.msk [vmem:[%s812 + $0x1] sm:$0xff] %vm821, %v901
        %v905 = vld [vmem:[%s812] sm:$0xff]
        %v906 = vld [vmem:[%s812 + $0x8] sm:$0x1]
        %v907 = vpack.c.bf16 %v906, %v905
        %v908 = vpack.c.bf16 %v901, %v901
        %v909 = vld [vmem:[%s8] sm:$0xf]
        %v910 = vld [vmem:[%s8 + $0x4] sm:$0xf]
        %v911 = vld [vmem:[%s8 + $0x8] sm:$0xf]
        %v912 = vld [vmem:[%s8 + $0xc] sm:$0xf]
        %v913 = vld [vmem:[#allocation13] sm:$0x1]
        %v915 = vlaneseq
        %v916 = vshrl.u32 %v915, 7
        %v917 = vsub.s32 0, %v916
        %v918 = vrot.slane %v913, %v917
        %v924 = vunpack.c.l.b16 %v909
        %v925 = vunpack.c.l.b16 %v910
        %v926 = vunpack.c.l.b16 %v911
        %v927 = vunpack.c.l.b16 %v912
        %v928 = vpack.c.b16 %v925, %v924
        %v929 = vpack.c.b16 %v927, %v926
        %v933 = vsel %vm821, %v908, 0
        %935 = vmatprep.subr.bf16.mxu0 0
        %936 = vmatpush1.bf16.msra.mxu0 0
        %937 = vmatprep.subr.bf16.mxu0 0
        %938 = vmatpush1.bf16.msra.mxu0 0
        %939 = vmatprep.subr.bf16.mxu0 0
        %940 = vmatpush1.bf16.msra.mxu0 0
        %941 = vmatprep.subr.bf16.mxu0 0
        %942 = vmatpush1.bf16.msra.mxu0 0
        %943 = vmatprep.subr.bf16.mxu0 0
        %944 = vmatpush1.bf16.msra.mxu0 0
        %945 = vmatprep.subr.bf16.mxu0 0
        %946 = vmatpush1.bf16.msra.mxu0 0
        %947 = vmatprep.subr.bf16.mxu0 0
        %948 = vmatpush1.bf16.msra.mxu0 %v929
        %949 = vmatprep.subr.bf16.mxu0 0
        %950 = vmatpush1.bf16.msra.mxu0 %v928
        %951 = vmatprep.subr.bf16.mxu0 0
        %952 = vmatpush2.bf16.msra.mxu0 0
        %953 = vmatprep.subr.bf16.mxu0 0
        %954 = vmatpush2.bf16.msra.mxu0 0
        %955 = vmatprep.subr.bf16.mxu0 0
        %956 = vmatpush2.bf16.msra.mxu0 0
        %957 = vmatprep.subr.bf16.mxu0 0
        %958 = vmatpush2.bf16.msra.mxu0 0
        %959 = vmatprep.subr.bf16.mxu0 0
        %960 = vmatpush2.bf16.msra.mxu0 0
        %961 = vmatprep.subr.bf16.mxu0 0
        %962 = vmatpush2.bf16.msra.mxu0 0
        %963 = vmatprep.subr.bf16.mxu0 0
        %964 = vmatpush2.bf16.msra.mxu0 0
        %965 = vmatprep.subr.bf16.mxu0 0
        %966 = vmatpush2.bf16.msra.mxu0 0
        %967 = vmatprep.mubr.bf16.mxu0 0
        %968 = vmatmul.mubr.bf16.gmra.mxu0 %v933
        %v969 = vpop.f32.mrf.mxu0
        %v970 = vadd.f32 %v918, %v969
        %v971 = vpop.f32.mrf.mxu0
        %v972 = vpop.f32.mrf.mxu0
        %v973 = vpop.f32.mrf.mxu0
        %974 = vdwg.mxu0
        %v975 = vld [vmem:[%s10] sm:$0xf]
        %v976 = vld [vmem:[%s10 + $0x4] sm:$0xf]
        %v977 = vld [vmem:[%s10 + $0x8] sm:$0xf]
        %v978 = vld [vmem:[%s10 + $0xc] sm:$0xf]
        %v979 = vld [vmem:[%s11] sm:$0x1]
        %v981 = vlaneseq
        %v982 = vshrl.u32 %v981, 7
        %v983 = vsub.s32 0, %v982
        %v984 = vrot.slane %v979, %v983
        %v990 = vunpack.c.l.b16 %v975
        %v991 = vunpack.c.l.b16 %v976
        %v992 = vunpack.c.l.b16 %v977
        %v993 = vunpack.c.l.b16 %v978
        %v994 = vpack.c.b16 %v991, %v990
        %v995 = vpack.c.b16 %v993, %v992
        %v999 = vsel %vm821, %v907, 0
        %1001 = vmatprep.subr.bf16.mxu0 0
        %1002 = vmatpush1.bf16.msra.mxu0 0
        %1003 = vmatprep.subr.bf16.mxu0 0
        %1004 = vmatpush1.bf16.msra.mxu0 0
        %1005 = vmatprep.subr.bf16.mxu0 0
        %1006 = vmatpush1.bf16.msra.mxu0 0
        %1007 = vmatprep.subr.bf16.mxu0 0
        %1008 = vmatpush1.bf16.msra.mxu0 0
        %1009 = vmatprep.subr.bf16.mxu0 0
        %1010 = vmatpush1.bf16.msra.mxu0 0
        %1011 = vmatprep.subr.bf16.mxu0 0
        %1012 = vmatpush1.bf16.msra.mxu0 0
        %1013 = vmatprep.subr.bf16.mxu0 0
        %1014 = vmatpush1.bf16.msra.mxu0 %v995
        %1015 = vmatprep.subr.bf16.mxu0 0
        %1016 = vmatpush1.bf16.msra.mxu0 %v994
        %1017 = vmatprep.subr.bf16.mxu0 0
        %1018 = vmatpush2.bf16.msra.mxu0 0
        %1019 = vmatprep.subr.bf16.mxu0 0
        %1020 = vmatpush2.bf16.msra.mxu0 0
        %1021 = vmatprep.subr.bf16.mxu0 0
        %1022 = vmatpush2.bf16.msra.mxu0 0
        %1023 = vmatprep.subr.bf16.mxu0 0
        %1024 = vmatpush2.bf16.msra.mxu0 0
        %1025 = vmatprep.subr.bf16.mxu0 0
        %1026 = vmatpush2.bf16.msra.mxu0 0
        %1027 = vmatprep.subr.bf16.mxu0 0
        %1028 = vmatpush2.bf16.msra.mxu0 0
        %1029 = vmatprep.subr.bf16.mxu0 0
        %1030 = vmatpush2.bf16.msra.mxu0 0
        %1031 = vmatprep.subr.bf16.mxu0 0
        %1032 = vmatpush2.bf16.msra.mxu0 0
        %1033 = vmatprep.mubr.bf16.mxu0 0
        %1034 = vmatmul.mubr.bf16.gmra.mxu0 %v999
        %v1035 = vpop.f32.mrf.mxu0
        %v1036 = vadd.f32 %v984, %v1035
        %v1037 = vpop.f32.mrf.mxu0
        %v1038 = vpop.f32.mrf.mxu0
        %v1039 = vadd.f32 %v984, %v1038
        %v1040 = vpop.f32.mrf.mxu0
        %1041 = vdwg.mxu0
        %v1042 = vpack.c.bf16 %v970, %v970
        %v1043 = vpack.c.bf16 %v1039, %v1036
        %vm1044 = vcmask 64512
        %v1046 = vsel %vm1044, %v1042, 0
        %v1049 = vsel %vm1044, %v1043, 0
        %1051 = vmatprep.subr.bf16.mxu0 0
        %1052 = vmatpush1.bf16.xpose.msra.mxu0 0
        %1053 = vmatprep.subr.bf16.mxu0 0
        %1054 = vmatpush1.bf16.xpose.msra.mxu0 0
        %1055 = vmatprep.subr.bf16.mxu0 0
        %1056 = vmatpush1.bf16.xpose.msra.mxu0 0
        %1057 = vmatprep.subr.bf16.mxu0 0
        %1058 = vmatpush1.bf16.xpose.msra.mxu0 0
        %1059 = vmatprep.subr.bf16.mxu0 0
        %1060 = vmatpush1.bf16.xpose.msra.mxu0 0
        %1061 = vmatprep.subr.bf16.mxu0 0
        %1062 = vmatpush1.bf16.xpose.msra.mxu0 0
        %1063 = vmatprep.subr.bf16.mxu0 0
        %1064 = vmatpush1.bf16.xpose.msra.mxu0 0
        %1065 = vmatprep.subr.bf16.mxu0 0
        %1066 = vmatpush1.bf16.xpose.msra.mxu0 %v1049
        %1067 = vmatprep.subr.bf16.mxu0 0
        %1068 = vmatpush2.bf16.xpose.msra.mxu0 0
        %1069 = vmatprep.subr.bf16.mxu0 0
        %1070 = vmatpush2.bf16.xpose.msra.mxu0 0
        %1071 = vmatprep.subr.bf16.mxu0 0
        %1072 = vmatpush2.bf16.xpose.msra.mxu0 0
        %1073 = vmatprep.subr.bf16.mxu0 0
        %1074 = vmatpush2.bf16.xpose.msra.mxu0 0
        %1075 = vmatprep.subr.bf16.mxu0 0
        %1076 = vmatpush2.bf16.xpose.msra.mxu0 0
        %1077 = vmatprep.subr.bf16.mxu0 0
        %1078 = vmatpush2.bf16.xpose.msra.mxu0 0
        %1079 = vmatprep.subr.bf16.mxu0 0
        %1080 = vmatpush2.bf16.xpose.msra.mxu0 0
        %1081 = vmatprep.subr.bf16.mxu0 0
        %1082 = vmatpush2.bf16.xpose.msra.mxu0 0
        %1083 = vmatprep.mubr.bf16.mxu0 0
        %1084 = vmatmul.mubr.bf16.gmra.mxu0 %v1046
        %v1085 = vpop.f32.mrf.mxu0
        %v1086 = vadd.f32 0.0, %v1085
        %v1087 = vpop.f32.mrf.mxu0
        %v1088 = vpop.f32.mrf.mxu0
        %v1089 = vpop.f32.mrf.mxu0
        %1090 = vdwg.mxu0
        %v1091 = vmul.f32 %v1086, 0.35355338
        %v1092 = vsel %vm876, %v1091, -1e+30
        %vm1093 = vcmask 72704
        %v1094 = vsel %vm1093, %v1092, -inf
        %1095 = vmax.xlane.f32.xlu0 %v1094
        %v1096 = vpop.xlane.xlu0 %1095
        %v1097 = vsub.f32 %v1092, %v1096
        %v1098 = vmul.f32 %v1097, 1.442695
        %v1099 = vpow.pop %v1098
        %v1100 = vsel %vm1093, %v1099, 0.0
        %1101 = vadd.xlane.f32.xlu0 %v1100
        %v1102 = vpop.xlane.xlu0 %1101
        %v1103 = vrcp.pop %v1102
        %v1104 = vmul.f32 %v1099, %v1103
        %v1105 = vpack.c.bf16 %v1104, %v1104
        %1107 = vrot.lane.b32.xlu0 %v1043, 96
        %v1108 = vpop.permute.xlu0 %1107
        %v1110 = vsel %vm1093, %v1105, 0
        %vm1112 = vcmask 1043456
        %vm1113 = vcmask 1044480
        %v1114 = vsel %vm1112, 4294967295, 65535
        %v1115 = vsel %vm1113, %v1114, 0
        %v1117 = vand.u32 %v1108, %v1115
        %1119 = vmatprep.subr.bf16.mxu0 0
        %1120 = vmatpush1.bf16.msra.mxu0 0
        %1121 = vmatprep.subr.bf16.mxu0 0
        %1122 = vmatpush1.bf16.msra.mxu0 0
        %1123 = vmatprep.subr.bf16.mxu0 0
        %1124 = vmatpush1.bf16.msra.mxu0 0
        %1125 = vmatprep.subr.bf16.mxu0 0
        %1126 = vmatpush1.bf16.msra.mxu0 0
        %1127 = vmatprep.subr.bf16.mxu0 0
        %1128 = vmatpush1.bf16.msra.mxu0 0
        %1129 = vmatprep.subr.bf16.mxu0 0
        %1130 = vmatpush1.bf16.msra.mxu0 0
        %1131 = vmatprep.subr.bf16.mxu0 0
        %1132 = vmatpush1.bf16.msra.mxu0 0
        %1133 = vmatprep.subr.bf16.mxu0 0
        %1134 = vmatpush1.bf16.msra.mxu0 %v1117
        %1135 = vmatprep.subr.bf16.mxu0 0
        %1136 = vmatpush2.bf16.msra.mxu0 0
        %1137 = vmatprep.subr.bf16.mxu0 0
        %1138 = vmatpush2.bf16.msra.mxu0 0
        %1139 = vmatprep.subr.bf16.mxu0 0
        %1140 = vmatpush2.bf16.msra.mxu0 0
        %1141 = vmatprep.subr.bf16.mxu0 0
        %1142 = vmatpush2.bf16.msra.mxu0 0
        %1143 = vmatprep.subr.bf16.mxu0 0
        %1144 = vmatpush2.bf16.msra.mxu0 0
        %1145 = vmatprep.subr.bf16.mxu0 0
        %1146 = vmatpush2.bf16.msra.mxu0 0
        %1147 = vmatprep.subr.bf16.mxu0 0
        %1148 = vmatpush2.bf16.msra.mxu0 0
        %1149 = vmatprep.subr.bf16.mxu0 0
        %1150 = vmatpush2.bf16.msra.mxu0 0
        %1151 = vmatprep.mubr.bf16.mxu0 0
        %1152 = vmatmul.mubr.bf16.gmra.mxu0 %v1110
        %v1153 = vpop.f32.mrf.mxu0
        %v1154 = vadd.f32 0.0, %v1153
        %v1155 = vpop.f32.mrf.mxu0
        %v1156 = vpop.f32.mrf.mxu0
        %v1157 = vpop.f32.mrf.mxu0
        %1158 = vdwg.mxu0
        %1160 = vrot.lane.b32.xlu0 %v1042, 120
        %v1161 = vpop.permute.xlu0 %1160
        %1162 = vrot.lane.b32.xlu0 %v1043, 120
        %v1163 = vpop.permute.xlu0 %1162
        %v1165 = vsel %vm1044, %v1161, 0
        %v1168 = vsel %vm1044, %v1163, 0
        %1170 = vmatprep.subr.bf16.mxu0 0
        %1171 = vmatpush1.bf16.xpose.msra.mxu0 0
        %1172 = vmatprep.subr.bf16.mxu0 0
        %1173 = vmatpush1.bf16.xpose.msra.mxu0 0
        %1174 = vmatprep.subr.bf16.mxu0 0
        %1175 = vmatpush1.bf16.xpose.msra.mxu0 0
        %1176 = vmatprep.subr.bf16.mxu0 0
        %1177 = vmatpush1.bf16.xpose.msra.mxu0 0
        %1178 = vmatprep.subr.bf16.mxu0 0
        %1179 = vmatpush1.bf16.xpose.msra.mxu0 0
        %1180 = vmatprep.subr.bf16.mxu0 0
        %1181 = vmatpush1.bf16.xpose.msra.mxu0 0
        %1182 = vmatprep.subr.bf16.mxu0 0
        %1183 = vmatpush1.bf16.xpose.msra.mxu0 0
        %1184 = vmatprep.subr.bf16.mxu0 0
        %1185 = vmatpush1.bf16.xpose.msra.mxu0 %v1168
        %1186 = vmatprep.subr.bf16.mxu0 0
        %1187 = vmatpush2.bf16.xpose.msra.mxu0 0
        %1188 = vmatprep.subr.bf16.mxu0 0
        %1189 = vmatpush2.bf16.xpose.msra.mxu0 0
        %1190 = vmatprep.subr.bf16.mxu0 0
        %1191 = vmatpush2.bf16.xpose.msra.mxu0 0
        %1192 = vmatprep.subr.bf16.mxu0 0
        %1193 = vmatpush2.bf16.xpose.msra.mxu0 0
        %1194 = vmatprep.subr.bf16.mxu0 0
        %1195 = vmatpush2.bf16.xpose.msra.mxu0 0
        %1196 = vmatprep.subr.bf16.mxu0 0
        %1197 = vmatpush2.bf16.xpose.msra.mxu0 0
        %1198 = vmatprep.subr.bf16.mxu0 0
        %1199 = vmatpush2.bf16.xpose.msra.mxu0 0
        %1200 = vmatprep.subr.bf16.mxu0 0
        %1201 = vmatpush2.bf16.xpose.msra.mxu0 0
        %1202 = vmatprep.mubr.bf16.mxu0 0
        %1203 = vmatmul.mubr.bf16.gmra.mxu0 %v1165
        %v1204 = vpop.f32.mrf.mxu0
        %v1205 = vadd.f32 0.0, %v1204
        %v1206 = vpop.f32.mrf.mxu0
        %v1207 = vpop.f32.mrf.mxu0
        %v1208 = vpop.f32.mrf.mxu0
        %1209 = vdwg.mxu0
        %v1210 = vmul.f32 %v1205, 0.35355338
        %v1211 = vsel %vm876, %v1210, -1e+30
        %v1212 = vsel %vm1093, %v1211, -inf
        %1213 = vmax.xlane.f32.xlu0 %v1212
        %v1214 = vpop.xlane.xlu0 %1213
        %v1215 = vsub.f32 %v1211, %v1214
        %v1216 = vmul.f32 %v1215, 1.442695
        %v1217 = vpow.pop %v1216
        %v1218 = vsel %vm1093, %v1217, 0.0
        %1219 = vadd.xlane.f32.xlu0 %v1218
        %v1220 = vpop.xlane.xlu0 %1219
        %v1221 = vrcp.pop %v1220
        %v1222 = vmul.f32 %v1217, %v1221
        %v1223 = vpack.c.bf16 %v1222, %v1222
        %1224 = vrot.lane.b32.xlu0 %v1043, 88
        %v1225 = vpop.permute.xlu0 %1224
        %v1227 = vsel %vm1093, %v1223, 0
        %v1230 = vand.u32 %v1225, %v1115
        %1232 = vmatprep.subr.bf16.mxu0 0
        %1233 = vmatpush1.bf16.msra.mxu0 0
        %1234 = vmatprep.subr.bf16.mxu0 0
        %1235 = vmatpush1.bf16.msra.mxu0 0
        %1236 = vmatprep.subr.bf16.mxu0 0
        %1237 = vmatpush1.bf16.msra.mxu0 0
        %1238 = vmatprep.subr.bf16.mxu0 0
        %1239 = vmatpush1.bf16.msra.mxu0 0
        %1240 = vmatprep.subr.bf16.mxu0 0
        %1241 = vmatpush1.bf16.msra.mxu0 0
        %1242 = vmatprep.subr.bf16.mxu0 0
        %1243 = vmatpush1.bf16.msra.mxu0 0
        %1244 = vmatprep.subr.bf16.mxu0 0
        %1245 = vmatpush1.bf16.msra.mxu0 0
        %1246 = vmatprep.subr.bf16.mxu0 0
        %1247 = vmatpush1.bf16.msra.mxu0 %v1230
        %1248 = vmatprep.subr.bf16.mxu0 0
        %1249 = vmatpush2.bf16.msra.mxu0 0
        %1250 = vmatprep.subr.bf16.mxu0 0
        %1251 = vmatpush2.bf16.msra.mxu0 0
        %1252 = vmatprep.subr.bf16.mxu0 0
        %1253 = vmatpush2.bf16.msra.mxu0 0
        %1254 = vmatprep.subr.bf16.mxu0 0
        %1255 = vmatpush2.bf16.msra.mxu0 0
        %1256 = vmatprep.subr.bf16.mxu0 0
        %1257 = vmatpush2.bf16.msra.mxu0 0
        %1258 = vmatprep.subr.bf16.mxu0 0
        %1259 = vmatpush2.bf16.msra.mxu0 0
        %1260 = vmatprep.subr.bf16.mxu0 0
        %1261 = vmatpush2.bf16.msra.mxu0 0
        %1262 = vmatprep.subr.bf16.mxu0 0
        %1263 = vmatpush2.bf16.msra.mxu0 0
        %1264 = vmatprep.mubr.bf16.mxu0 0
        %1265 = vmatmul.mubr.bf16.gmra.mxu0 %v1227
        %v1266 = vpop.f32.mrf.mxu0
        %v1267 = vadd.f32 0.0, %v1266
        %v1268 = vpop.f32.mrf.mxu0
        %v1269 = vpop.f32.mrf.mxu0
        %v1270 = vpop.f32.mrf.mxu0
        %1271 = vdwg.mxu0
        %1272 = vrot.lane.b32.xlu0 %v1042, 112
        %v1273 = vpop.permute.xlu0 %1272
        %1274 = vrot.lane.b32.xlu0 %v1043, 112
        %v1275 = vpop.permute.xlu0 %1274
        %v1277 = vsel %vm1044, %v1273, 0
        %v1280 = vsel %vm1044, %v1275, 0
        %1282 = vmatprep.subr.bf16.mxu0 0
        %1283 = vmatpush1.bf16.xpose.msra.mxu0 0
        %1284 = vmatprep.subr.bf16.mxu0 0
        %1285 = vmatpush1.bf16.xpose.msra.mxu0 0
        %1286 = vmatprep.subr.bf16.mxu0 0
        %1287 = vmatpush1.bf16.xpose.msra.mxu0 0
        %1288 = vmatprep.subr.bf16.mxu0 0
        %1289 = vmatpush1.bf16.xpose.msra.mxu0 0
        %1290 = vmatprep.subr.bf16.mxu0 0
        %1291 = vmatpush1.bf16.xpose.msra.mxu0 0
        %1292 = vmatprep.subr.bf16.mxu0 0
        %1293 = vmatpush1.bf16.xpose.msra.mxu0 0
        %1294 = vmatprep.subr.bf16.mxu0 0
        %1295 = vmatpush1.bf16.xpose.msra.mxu0 0
        %1296 = vmatprep.subr.bf16.mxu0 0
        %1297 = vmatpush1.bf16.xpose.msra.mxu0 %v1280
        %1298 = vmatprep.subr.bf16.mxu0 0
        %1299 = vmatpush2.bf16.xpose.msra.mxu0 0
        %1300 = vmatprep.subr.bf16.mxu0 0
        %1301 = vmatpush2.bf16.xpose.msra.mxu0 0
        %1302 = vmatprep.subr.bf16.mxu0 0
        %1303 = vmatpush2.bf16.xpose.msra.mxu0 0
        %1304 = vmatprep.subr.bf16.mxu0 0
        %1305 = vmatpush2.bf16.xpose.msra.mxu0 0
        %1306 = vmatprep.subr.bf16.mxu0 0
        %1307 = vmatpush2.bf16.xpose.msra.mxu0 0
        %1308 = vmatprep.subr.bf16.mxu0 0
        %1309 = vmatpush2.bf16.xpose.msra.mxu0 0
        %1310 = vmatprep.subr.bf16.mxu0 0
        %1311 = vmatpush2.bf16.xpose.msra.mxu0 0
        %1312 = vmatprep.subr.bf16.mxu0 0
        %1313 = vmatpush2.bf16.xpose.msra.mxu0 0
        %1314 = vmatprep.mubr.bf16.mxu0 0
        %1315 = vmatmul.mubr.bf16.gmra.mxu0 %v1277
        %v1316 = vpop.f32.mrf.mxu0
        %v1317 = vadd.f32 0.0, %v1316
        %v1318 = vpop.f32.mrf.mxu0
        %v1319 = vpop.f32.mrf.mxu0
        %v1320 = vpop.f32.mrf.mxu0
        %1321 = vdwg.mxu0
        %v1322 = vmul.f32 %v1317, 0.35355338
        %v1323 = vsel %vm876, %v1322, -1e+30
        %v1324 = vsel %vm1093, %v1323, -inf
        %1325 = vmax.xlane.f32.xlu0 %v1324
        %v1326 = vpop.xlane.xlu0 %1325
        %v1327 = vsub.f32 %v1323, %v1326
        %v1328 = vmul.f32 %v1327, 1.442695
        %v1329 = vpow.pop %v1328
        %v1330 = vsel %vm1093, %v1329, 0.0
        %1331 = vadd.xlane.f32.xlu0 %v1330
        %v1332 = vpop.xlane.xlu0 %1331
        %v1333 = vrcp.pop %v1332
        %v1334 = vmul.f32 %v1329, %v1333
        %v1335 = vpack.c.bf16 %v1334, %v1334
        %1336 = vrot.lane.b32.xlu0 %v1043, 80
        %v1337 = vpop.permute.xlu0 %1336
        %v1339 = vsel %vm1093, %v1335, 0
        %v1342 = vand.u32 %v1337, %v1115
        %1344 = vmatprep.subr.bf16.mxu0 0
        %1345 = vmatpush1.bf16.msra.mxu0 0
        %1346 = vmatprep.subr.bf16.mxu0 0
        %1347 = vmatpush1.bf16.msra.mxu0 0
        %1348 = vmatprep.subr.bf16.mxu0 0
        %1349 = vmatpush1.bf16.msra.mxu0 0
        %1350 = vmatprep.subr.bf16.mxu0 0
        %1351 = vmatpush1.bf16.msra.mxu0 0
        %1352 = vmatprep.subr.bf16.mxu0 0
        %1353 = vmatpush1.bf16.msra.mxu0 0
        %1354 = vmatprep.subr.bf16.mxu0 0
        %1355 = vmatpush1.bf16.msra.mxu0 0
        %1356 = vmatprep.subr.bf16.mxu0 0
        %1357 = vmatpush1.bf16.msra.mxu0 0
        %1358 = vmatprep.subr.bf16.mxu0 0
        %1359 = vmatpush1.bf16.msra.mxu0 %v1342
        %1360 = vmatprep.subr.bf16.mxu0 0
        %1361 = vmatpush2.bf16.msra.mxu0 0
        %1362 = vmatprep.subr.bf16.mxu0 0
        %1363 = vmatpush2.bf16.msra.mxu0 0
        %1364 = vmatprep.subr.bf16.mxu0 0
        %1365 = vmatpush2.bf16.msra.mxu0 0
        %1366 = vmatprep.subr.bf16.mxu0 0
        %1367 = vmatpush2.bf16.msra.mxu0 0
        %1368 = vmatprep.subr.bf16.mxu0 0
        %1369 = vmatpush2.bf16.msra.mxu0 0
        %1370 = vmatprep.subr.bf16.mxu0 0
        %1371 = vmatpush2.bf16.msra.mxu0 0
        %1372 = vmatprep.subr.bf16.mxu0 0
        %1373 = vmatpush2.bf16.msra.mxu0 0
        %1374 = vmatprep.subr.bf16.mxu0 0
        %1375 = vmatpush2.bf16.msra.mxu0 0
        %1376 = vmatprep.mubr.bf16.mxu0 0
        %1377 = vmatmul.mubr.bf16.gmra.mxu0 %v1339
        %v1378 = vpop.f32.mrf.mxu0
        %v1379 = vadd.f32 0.0, %v1378
        %v1380 = vpop.f32.mrf.mxu0
        %v1381 = vpop.f32.mrf.mxu0
        %v1382 = vpop.f32.mrf.mxu0
        %1383 = vdwg.mxu0
        %1384 = vrot.lane.b32.xlu0 %v1042, 104
        %v1385 = vpop.permute.xlu0 %1384
        %1386 = vrot.lane.b32.xlu0 %v1043, 104
        %v1387 = vpop.permute.xlu0 %1386
        %v1389 = vsel %vm1044, %v1385, 0
        %v1392 = vsel %vm1044, %v1387, 0
        %1394 = vmatprep.subr.bf16.mxu0 0
        %1395 = vmatpush1.bf16.xpose.msra.mxu0 0
        %1396 = vmatprep.subr.bf16.mxu0 0
        %1397 = vmatpush1.bf16.xpose.msra.mxu0 0
        %1398 = vmatprep.subr.bf16.mxu0 0
        %1399 = vmatpush1.bf16.xpose.msra.mxu0 0
        %1400 = vmatprep.subr.bf16.mxu0 0
        %1401 = vmatpush1.bf16.xpose.msra.mxu0 0
        %1402 = vmatprep.subr.bf16.mxu0 0
        %1403 = vmatpush1.bf16.xpose.msra.mxu0 0
        %1404 = vmatprep.subr.bf16.mxu0 0
        %1405 = vmatpush1.bf16.xpose.msra.mxu0 0
        %1406 = vmatprep.subr.bf16.mxu0 0
        %1407 = vmatpush1.bf16.xpose.msra.mxu0 0
        %1408 = vmatprep.subr.bf16.mxu0 0
        %1409 = vmatpush1.bf16.xpose.msra.mxu0 %v1392
        %1410 = vmatprep.subr.bf16.mxu0 0
        %1411 = vmatpush2.bf16.xpose.msra.mxu0 0
        %1412 = vmatprep.subr.bf16.mxu0 0
        %1413 = vmatpush2.bf16.xpose.msra.mxu0 0
        %1414 = vmatprep.subr.bf16.mxu0 0
        %1415 = vmatpush2.bf16.xpose.msra.mxu0 0
        %1416 = vmatprep.subr.bf16.mxu0 0
        %1417 = vmatpush2.bf16.xpose.msra.mxu0 0
        %1418 = vmatprep.subr.bf16.mxu0 0
        %1419 = vmatpush2.bf16.xpose.msra.mxu0 0
        %1420 = vmatprep.subr.bf16.mxu0 0
        %1421 = vmatpush2.bf16.xpose.msra.mxu0 0
        %1422 = vmatprep.subr.bf16.mxu0 0
        %1423 = vmatpush2.bf16.xpose.msra.mxu0 0
        %1424 = vmatprep.subr.bf16.mxu0 0
        %1425 = vmatpush2.bf16.xpose.msra.mxu0 0
        %1426 = vmatprep.mubr.bf16.mxu0 0
        %1427 = vmatmul.mubr.bf16.gmra.mxu0 %v1389
        %v1428 = vpop.f32.mrf.mxu0
        %v1429 = vadd.f32 0.0, %v1428
        %v1430 = vpop.f32.mrf.mxu0
        %v1431 = vpop.f32.mrf.mxu0
        %v1432 = vpop.f32.mrf.mxu0
        %1433 = vdwg.mxu0
        %v1434 = vmul.f32 %v1429, 0.35355338
        %v1435 = vsel %vm876, %v1434, -1e+30
        %v1436 = vsel %vm1093, %v1435, -inf
        %1437 = vmax.xlane.f32.xlu0 %v1436
        %v1438 = vpop.xlane.xlu0 %1437
        %v1439 = vsub.f32 %v1435, %v1438
        %v1440 = vmul.f32 %v1439, 1.442695
        %v1441 = vpow.pop %v1440
        %v1442 = vsel %vm1093, %v1441, 0.0
        %1443 = vadd.xlane.f32.xlu0 %v1442
        %v1444 = vpop.xlane.xlu0 %1443
        %v1445 = vrcp.pop %v1444
        %v1446 = vmul.f32 %v1441, %v1445
        %v1447 = vpack.c.bf16 %v1446, %v1446
        %1448 = vrot.lane.b32.xlu0 %v1043, 72
        %v1449 = vpop.permute.xlu0 %1448
        %v1451 = vsel %vm1093, %v1447, 0
        %v1454 = vand.u32 %v1449, %v1115
        %1456 = vmatprep.subr.bf16.mxu0 0
        %1457 = vmatpush1.bf16.msra.mxu0 0
        %1458 = vmatprep.subr.bf16.mxu0 0
        %1459 = vmatpush1.bf16.msra.mxu0 0
        %1460 = vmatprep.subr.bf16.mxu0 0
        %1461 = vmatpush1.bf16.msra.mxu0 0
        %1462 = vmatprep.subr.bf16.mxu0 0
        %1463 = vmatpush1.bf16.msra.mxu0 0
        %1464 = vmatprep.subr.bf16.mxu0 0
        %1465 = vmatpush1.bf16.msra.mxu0 0
        %1466 = vmatprep.subr.bf16.mxu0 0
        %1467 = vmatpush1.bf16.msra.mxu0 0
        %1468 = vmatprep.subr.bf16.mxu0 0
        %1469 = vmatpush1.bf16.msra.mxu0 0
        %1470 = vmatprep.subr.bf16.mxu0 0
        %1471 = vmatpush1.bf16.msra.mxu0 %v1454
        %1472 = vmatprep.subr.bf16.mxu0 0
        %1473 = vmatpush2.bf16.msra.mxu0 0
        %1474 = vmatprep.subr.bf16.mxu0 0
        %1475 = vmatpush2.bf16.msra.mxu0 0
        %1476 = vmatprep.subr.bf16.mxu0 0
        %1477 = vmatpush2.bf16.msra.mxu0 0
        %1478 = vmatprep.subr.bf16.mxu0 0
        %1479 = vmatpush2.bf16.msra.mxu0 0
        %1480 = vmatprep.subr.bf16.mxu0 0
        %1481 = vmatpush2.bf16.msra.mxu0 0
        %1482 = vmatprep.subr.bf16.mxu0 0
        %1483 = vmatpush2.bf16.msra.mxu0 0
        %1484 = vmatprep.subr.bf16.mxu0 0
        %1485 = vmatpush2.bf16.msra.mxu0 0
        %1486 = vmatprep.subr.bf16.mxu0 0
        %1487 = vmatpush2.bf16.msra.mxu0 0
        %1488 = vmatprep.mubr.bf16.mxu0 0
        %1489 = vmatmul.mubr.bf16.gmra.mxu0 %v1451
        %v1490 = vpop.f32.mrf.mxu0
        %v1491 = vadd.f32 0.0, %v1490
        %v1492 = vpop.f32.mrf.mxu0
        %v1493 = vpop.f32.mrf.mxu0
        %v1494 = vpop.f32.mrf.mxu0
        %1495 = vdwg.mxu0
        %1497 = vrot.lane.b32.xlu0 %v1267, 8
        %v1498 = vpop.permute.xlu0 %1497
        %1501 = vrot.lane.b32.xlu0 %v1379, 16
        %v1502 = vpop.permute.xlu0 %1501
        %1505 = vrot.lane.b32.xlu0 %v1491, 24
        %v1506 = vpop.permute.xlu0 %1505
        %v1508 = vsel %vm1044, %v1154, %v1498
        %vm1509 = vcmask 130048
        %v1510 = vsel %vm1509, %v1508, %v1502
        %vm1511 = vcmask 195584
        %v1512 = vsel %vm1511, %v1510, %v1506
        %v1513 = vpack.c.bf16 %v1512, %v1512
        %v1514 = vld [vmem:[%s12] sm:$0xf]
        %v1515 = vld [vmem:[%s12 + $0x4] sm:$0xf]
        %v1516 = vld [vmem:[%s12 + $0x8] sm:$0xf]
        %v1517 = vld [vmem:[%s12 + $0xc] sm:$0xf]
        %v1518 = vld [vmem:[#allocation14] sm:$0x1]
        %v1520 = vlaneseq
        %v1521 = vshrl.u32 %v1520, 7
        %v1522 = vsub.s32 0, %v1521
        %v1523 = vrot.slane %v1518, %v1522
        %v1529 = vunpack.c.l.b16 %v1514
        %v1530 = vunpack.c.l.b16 %v1515
        %v1531 = vunpack.c.l.b16 %v1516
        %v1532 = vunpack.c.l.b16 %v1517
        %v1533 = vpack.c.b16 %v1530, %v1529
        %v1534 = vpack.c.b16 %v1532, %v1531
        %v1538 = vsel %vm821, %v1513, 0
        %1540 = vmatprep.subr.bf16.mxu0 0
        %1541 = vmatpush1.bf16.msra.mxu0 0
        %1542 = vmatprep.subr.bf16.mxu0 0
        %1543 = vmatpush1.bf16.msra.mxu0 0
        %1544 = vmatprep.subr.bf16.mxu0 0
        %1545 = vmatpush1.bf16.msra.mxu0 0
        %1546 = vmatprep.subr.bf16.mxu0 0
        %1547 = vmatpush1.bf16.msra.mxu0 0
        %1548 = vmatprep.subr.bf16.mxu0 0
        %1549 = vmatpush1.bf16.msra.mxu0 0
        %1550 = vmatprep.subr.bf16.mxu0 0
        %1551 = vmatpush1.bf16.msra.mxu0 0
        %1552 = vmatprep.subr.bf16.mxu0 0
        %1553 = vmatpush1.bf16.msra.mxu0 %v1534
        %1554 = vmatprep.subr.bf16.mxu0 0
        %1555 = vmatpush1.bf16.msra.mxu0 %v1533
        %1556 = vmatprep.subr.bf16.mxu0 0
        %1557 = vmatpush2.bf16.msra.mxu0 0
        %1558 = vmatprep.subr.bf16.mxu0 0
        %1559 = vmatpush2.bf16.msra.mxu0 0
        %1560 = vmatprep.subr.bf16.mxu0 0
        %1561 = vmatpush2.bf16.msra.mxu0 0
        %1562 = vmatprep.subr.bf16.mxu0 0
        %1563 = vmatpush2.bf16.msra.mxu0 0
        %1564 = vmatprep.subr.bf16.mxu0 0
        %1565 = vmatpush2.bf16.msra.mxu0 0
        %1566 = vmatprep.subr.bf16.mxu0 0
        %1567 = vmatpush2.bf16.msra.mxu0 0
        %1568 = vmatprep.subr.bf16.mxu0 0
        %1569 = vmatpush2.bf16.msra.mxu0 0
        %1570 = vmatprep.subr.bf16.mxu0 0
        %1571 = vmatpush2.bf16.msra.mxu0 0
        %1572 = vmatprep.mubr.bf16.mxu0 0
        %1573 = vmatmul.mubr.bf16.gmra.mxu0 %v1538
        %v1574 = vpop.f32.mrf.mxu0
        %v1575 = vadd.f32 %v1523, %v1574
        %v1576 = vpop.f32.mrf.mxu0
        %v1577 = vpop.f32.mrf.mxu0
        %v1578 = vpop.f32.mrf.mxu0
        %1579 = vdwg.mxu0
        %v1580 = vadd.f32 %v867, %v1575
        %v1581 = vld [vmem:[#allocation11] sm:$0x3]
        %v1582 = vsel %vm821, %v1580, 0.0
        %1583 = vadd.xlane.f32.xlu0 %v1582
        %v1584 = vpop.xlane.xlu0 %1583
        %v1585 = vmul.f32 %v1584, %v845
        %v1586 = vsub.f32 %v1580, %v1585
        %v1587 = vmul.f32 %v1586, %v1586
        %v1588 = vsel %vm821, %v1587, 0.0
        %1589 = vadd.xlane.f32.xlu0 %v1588
        %v1590 = vpop.xlane.xlu0 %1589
        %v1591 = vmul.f32 %v1590, %v845
        %v1592 = vadd.f32 %v1591, 1e-05
        %v1593 = vrsqrt.pop %v1592
        %v1594 = vmul.f32 %v1586, %v1593
        %v1595 = vlaneseq
        %v1596 = vshrl.u32 %v1595, 7
        %v1597 = vsub.s32 0, %v1596
        %v1598 = vrot.slane %v1581, %v1597
        %v1599 = vmul.f32 %v1594, %v1598
        %v1600 = vlaneseq
        %v1601 = vshrl.u32 %v1600, 7
        %v1602 = vsub.s32 1, %v1601
        %v1603 = vrot.slane %v1581, %v1602
        %v1604 = vadd.f32 %v1599, %v1603
        %v1605 = vpack.c.bf16 %v1604, %v1604
        %v1606 = vld [vmem:[%s14] sm:$0xf]
        %v1607 = vld [vmem:[%s14 + $0x4] sm:$0xf]
        %v1608 = vld [vmem:[%s14 + $0x8] sm:$0xf]
        %v1609 = vld [vmem:[%s14 + $0xc] sm:$0xf]
        %v1610 = vld [vmem:[%s15] sm:$0x1]
        %v1612 = vlaneseq
        %v1613 = vshrl.u32 %v1612, 7
        %v1614 = vsub.s32 0, %v1613
        %v1615 = vrot.slane %v1610, %v1614
        %v1621 = vunpack.c.l.b16 %v1606
        %v1622 = vunpack.c.l.b16 %v1607
        %v1623 = vunpack.c.l.b16 %v1608
        %v1624 = vunpack.c.l.b16 %v1609
        %v1625 = vpack.c.b16 %v1622, %v1621
        %v1626 = vpack.c.b16 %v1624, %v1623
        %v1630 = vsel %vm821, %v1605, 0
        %1632 = vmatprep.subr.bf16.mxu0 0
        %1633 = vmatpush1.bf16.msra.mxu0 0
        %1634 = vmatprep.subr.bf16.mxu0 0
        %1635 = vmatpush1.bf16.msra.mxu0 0
        %1636 = vmatprep.subr.bf16.mxu0 0
        %1637 = vmatpush1.bf16.msra.mxu0 0
        %1638 = vmatprep.subr.bf16.mxu0 0
        %1639 = vmatpush1.bf16.msra.mxu0 0
        %1640 = vmatprep.subr.bf16.mxu0 0
        %1641 = vmatpush1.bf16.msra.mxu0 0
        %1642 = vmatprep.subr.bf16.mxu0 0
        %1643 = vmatpush1.bf16.msra.mxu0 0
        %1644 = vmatprep.subr.bf16.mxu0 0
        %1645 = vmatpush1.bf16.msra.mxu0 %v1626
        %1646 = vmatprep.subr.bf16.mxu0 0
        %1647 = vmatpush1.bf16.msra.mxu0 %v1625
        %1648 = vmatprep.subr.bf16.mxu0 0
        %1649 = vmatpush2.bf16.msra.mxu0 0
        %1650 = vmatprep.subr.bf16.mxu0 0
        %1651 = vmatpush2.bf16.msra.mxu0 0
        %1652 = vmatprep.subr.bf16.mxu0 0
        %1653 = vmatpush2.bf16.msra.mxu0 0
        %1654 = vmatprep.subr.bf16.mxu0 0
        %1655 = vmatpush2.bf16.msra.mxu0 0
        %1656 = vmatprep.subr.bf16.mxu0 0
        %1657 = vmatpush2.bf16.msra.mxu0 0
        %1658 = vmatprep.subr.bf16.mxu0 0
        %1659 = vmatpush2.bf16.msra.mxu0 0
        %1660 = vmatprep.subr.bf16.mxu0 0
        %1661 = vmatpush2.bf16.msra.mxu0 0
        %1662 = vmatprep.subr.bf16.mxu0 0
        %1663 = vmatpush2.bf16.msra.mxu0 0
        %1664 = vmatprep.mubr.bf16.mxu0 0
        %1665 = vmatmul.mubr.bf16.gmra.mxu0 %v1630
        %v1666 = vpop.f32.mrf.mxu0
        %v1667 = vadd.f32 %v1615, %v1666
        %v1668 = vpop.f32.mrf.mxu0
        %v1669 = vpop.f32.mrf.mxu0
        %v1670 = vpop.f32.mrf.mxu0
        %1671 = vdwg.mxu0
        %v1672 = vmul.f32 %v1667, %v1667
        %v1673 = vmul.f32 %v1667, %v1672
        %v1674 = vmul.f32 %v1673, 0.044715
        %v1675 = vadd.f32 %v1667, %v1674
        %v1676 = vmul.f32 %v1675, 0.7978846
        %v1677 = vtanh.pop %v1676
        %v1678 = vadd.f32 %v1677, 1.0
        %v1679 = vmul.f32 %v1678, 0.5
        %v1680 = vmul.f32 %v1667, %v1679
        %v1681 = vpack.c.bf16 %v1680, %v1680
        %v1682 = vld [vmem:[%s16] sm:$0xf]
        %v1683 = vld [vmem:[%s16 + $0x4] sm:$0xf]
        %v1684 = vld [vmem:[%s16 + $0x8] sm:$0xf]
        %v1685 = vld [vmem:[%s16 + $0xc] sm:$0xf]
        %v1686 = vld [vmem:[%s16 + $0x10] sm:$0xf]
        %v1687 = vld [vmem:[%s16 + $0x14] sm:$0xf]
        %v1688 = vld [vmem:[%s16 + $0x18] sm:$0xf]
        %v1689 = vld [vmem:[%s16 + $0x1c] sm:$0xf]
        %v1690 = vld [vmem:[%s16 + $0x20] sm:$0xf]
        %v1691 = vld [vmem:[%s16 + $0x24] sm:$0xf]
        %v1692 = vld [vmem:[%s16 + $0x28] sm:$0xf]
        %v1693 = vld [vmem:[%s16 + $0x2c] sm:$0xf]
        %v1694 = vld [vmem:[%s16 + $0x30] sm:$0xf]
        %v1695 = vld [vmem:[%s16 + $0x34] sm:$0xf]
        %v1696 = vld [vmem:[%s16 + $0x38] sm:$0xf]
        %v1697 = vld [vmem:[%s16 + $0x3c] sm:$0xf]
        %v1714 = vunpack.c.l.b16 %v1682
        %v1715 = vunpack.c.l.b16 %v1683
        %v1716 = vunpack.c.l.b16 %v1684
        %v1717 = vunpack.c.l.b16 %v1685
        %v1718 = vunpack.c.l.b16 %v1686
        %v1719 = vunpack.c.l.b16 %v1687
        %v1720 = vunpack.c.l.b16 %v1688
        %v1721 = vunpack.c.l.b16 %v1689
        %v1722 = vunpack.c.l.b16 %v1690
        %v1723 = vunpack.c.l.b16 %v1691
        %v1724 = vunpack.c.l.b16 %v1692
        %v1725 = vunpack.c.l.b16 %v1693
        %v1726 = vunpack.c.l.b16 %v1694
        %v1727 = vunpack.c.l.b16 %v1695
        %v1728 = vunpack.c.l.b16 %v1696
        %v1729 = vunpack.c.l.b16 %v1697
        %v1730 = vpack.c.b16 %v1715, %v1714
        %v1731 = vpack.c.b16 %v1717, %v1716
        %v1732 = vpack.c.b16 %v1719, %v1718
        %v1733 = vpack.c.b16 %v1721, %v1720
        %v1734 = vpack.c.b16 %v1723, %v1722
        %v1735 = vpack.c.b16 %v1725, %v1724
        %v1736 = vpack.c.b16 %v1727, %v1726
        %v1737 = vpack.c.b16 %v1729, %v1728
        %1746 = vmatprep.subr.bf16.mxu0 0
        %1747 = vmatpush1.bf16.msra.mxu0 %v1737
        %1748 = vmatprep.subr.bf16.mxu0 0
        %1749 = vmatpush1.bf16.msra.mxu0 %v1736
        %1750 = vmatprep.subr.bf16.mxu0 0
        %1751 = vmatpush1.bf16.msra.mxu0 %v1735
        %1752 = vmatprep.subr.bf16.mxu0 0
        %1753 = vmatpush1.bf16.msra.mxu0 %v1734
        %1754 = vmatprep.subr.bf16.mxu0 0
        %1755 = vmatpush1.bf16.msra.mxu0 %v1733
        %1756 = vmatprep.subr.bf16.mxu0 0
        %1757 = vmatpush1.bf16.msra.mxu0 %v1732
        %1758 = vmatprep.subr.bf16.mxu0 0
        %1759 = vmatpush1.bf16.msra.mxu0 %v1731
        %1760 = vmatprep.subr.bf16.mxu0 0
        %1761 = vmatpush1.bf16.msra.mxu0 %v1730
        %1762 = vmatprep.subr.bf16.mxu0 0
        %1763 = vmatpush2.bf16.msra.mxu0 0
        %1764 = vmatprep.subr.bf16.mxu0 0
        %1765 = vmatpush2.bf16.msra.mxu0 0
        %1766 = vmatprep.subr.bf16.mxu0 0
        %1767 = vmatpush2.bf16.msra.mxu0 0
        %1768 = vmatprep.subr.bf16.mxu0 0
        %1769 = vmatpush2.bf16.msra.mxu0 0
        %1770 = vmatprep.subr.bf16.mxu0 0
        %1771 = vmatpush2.bf16.msra.mxu0 0
        %1772 = vmatprep.subr.bf16.mxu0 0
        %1773 = vmatpush2.bf16.msra.mxu0 0
        %1774 = vmatprep.subr.bf16.mxu0 0
        %1775 = vmatpush2.bf16.msra.mxu0 0
        %1776 = vmatprep.subr.bf16.mxu0 0
        %1777 = vmatpush2.bf16.msra.mxu0 0
        %1778 = vmatprep.mubr.bf16.mxu0 0
        %1779 = vmatmul.mubr.bf16.gmra.mxu0 %v1681
        %v1780 = vpop.f32.mrf.mxu0
        %v1781 = vadd.f32 0.0, %v1780
        %v1782 = vpop.f32.mrf.mxu0
        %v1783 = vpop.f32.mrf.mxu0
        %v1784 = vpop.f32.mrf.mxu0
        %1785 = vdwg.mxu0
        %v1786 = vadd.f32 %v1580, %v1781
        %v1787 = vld [vmem:[%s17] sm:$0x1]
        %v1789 = vlaneseq
        %v1790 = vshrl.u32 %v1789, 7
        %v1791 = vsub.s32 0, %v1790
        %v1792 = vrot.slane %v1787, %v1791
        %v1794 = vadd.f32 %v1786, %v1792
        %s1795 = scalar_lea.vmem %s725, 1 [#allocation8]
        %v1796 = vld [vmem:[%s1795] sm:$0x1]
        %s1797 = scalar_lea.vmem [#allocation10], 2
        %v1798 = vld [vmem:[%s1797] sm:$0x3]
        %v1799 = vsel %vm821, %v1794, 0.0
        %1800 = vadd.xlane.f32.xlu0 %v1799
        %v1801 = vpop.xlane.xlu0 %1800
        %v1802 = vmul.f32 %v1801, %v845
        %v1803 = vsub.f32 %v1794, %v1802
        %v1804 = vmul.f32 %v1803, %v1803
        %v1805 = vsel %vm821, %v1804, 0.0
        %1806 = vadd.xlane.f32.xlu0 %v1805
        %v1807 = vpop.xlane.xlu0 %1806
        %v1808 = vmul.f32 %v1807, %v845
        %v1809 = vadd.f32 %v1808, 1e-05
        %v1810 = vrsqrt.pop %v1809
        %v1811 = vmul.f32 %v1803, %v1810
        %v1812 = vlaneseq
        %v1813 = vshrl.u32 %v1812, 7
        %v1814 = vsub.s32 0, %v1813
        %v1815 = vrot.slane %v1798, %v1814
        %v1816 = vmul.f32 %v1811, %v1815
        %v1817 = vlaneseq
        %v1818 = vshrl.u32 %v1817, 7
        %v1819 = vsub.s32 1, %v1818
        %v1820 = vrot.slane %v1798, %v1819
        %v1821 = vadd.f32 %v1816, %v1820
        %s1822 = scalar_lea.vmem %s812, 16 [#allocation17]
        %1823 = vst.msk [vmem:[%s1822] sm:$0x1] %vm902, %v1796
        %1824 = vst.msk [vmem:[%s1822 + $0x1] sm:$0xff] %vm821, %v1821
        %v1825 = vld [vmem:[%s1822] sm:$0xff]
        %v1826 = vld [vmem:[%s1822 + $0x8] sm:$0x1]
        %v1827 = vpack.c.bf16 %v1826, %v1825
        %v1828 = vpack.c.bf16 %v1821, %v1821
        %s1829 = scalar_lea.vmem %s8, 16
        %v1830 = vld [vmem:[%s1829] sm:$0xf]
        %v1831 = vld [vmem:[%s1829 + $0x4] sm:$0xf]
        %v1832 = vld [vmem:[%s1829 + $0x8] sm:$0xf]
        %v1833 = vld [vmem:[%s1829 + $0xc] sm:$0xf]
        %s1834 = scalar_lea.vmem [#allocation13], 1
        %v1835 = vld [vmem:[%s1834] sm:$0x1]
        %v1837 = vlaneseq
        %v1838 = vshrl.u32 %v1837, 7
        %v1839 = vsub.s32 0, %v1838
        %v1840 = vrot.slane %v1835, %v1839
        %v1846 = vunpack.c.l.b16 %v1830
        %v1847 = vunpack.c.l.b16 %v1831
        %v1848 = vunpack.c.l.b16 %v1832
        %v1849 = vunpack.c.l.b16 %v1833
        %v1850 = vpack.c.b16 %v1847, %v1846
        %v1851 = vpack.c.b16 %v1849, %v1848
        %v1855 = vsel %vm821, %v1828, 0
        %1857 = vmatprep.subr.bf16.mxu0 0
        %1858 = vmatpush1.bf16.msra.mxu0 0
        %1859 = vmatprep.subr.bf16.mxu0 0
        %1860 = vmatpush1.bf16.msra.mxu0 0
        %1861 = vmatprep.subr.bf16.mxu0 0
        %1862 = vmatpush1.bf16.msra.mxu0 0
        %1863 = vmatprep.subr.bf16.mxu0 0
        %1864 = vmatpush1.bf16.msra.mxu0 0
        %1865 = vmatprep.subr.bf16.mxu0 0
        %1866 = vmatpush1.bf16.msra.mxu0 0
        %1867 = vmatprep.subr.bf16.mxu0 0
        %1868 = vmatpush1.bf16.msra.mxu0 0
        %1869 = vmatprep.subr.bf16.mxu0 0
        %1870 = vmatpush1.bf16.msra.mxu0 %v1851
        %1871 = vmatprep.subr.bf16.mxu0 0
        %1872 = vmatpush1.bf16.msra.mxu0 %v1850
        %1873 = vmatprep.subr.bf16.mxu0 0
        %1874 = vmatpush2.bf16.msra.mxu0 0
        %1875 = vmatprep.subr.bf16.mxu0 0
        %1876 = vmatpush2.bf16.msra.mxu0 0
        %1877 = vmatprep.subr.bf16.mxu0 0
        %1878 = vmatpush2.bf16.msra.mxu0 0
        %1879 = vmatprep.subr.bf16.mxu0 0
        %1880 = vmatpush2.bf16.msra.mxu0 0
        %1881 = vmatprep.subr.bf16.mxu0 0
        %1882 = vmatpush2.bf16.msra.mxu0 0
        %1883 = vmatprep.subr.bf16.mxu0 0
        %1884 = vmatpush2.bf16.msra.mxu0 0
        %1885 = vmatprep.subr.bf16.mxu0 0
        %1886 = vmatpush2.bf16.msra.mxu0 0
        %1887 = vmatprep.subr.bf16.mxu0 0
        %1888 = vmatpush2.bf16.msra.mxu0 0
        %1889 = vmatprep.mubr.bf16.mxu0 0
        %1890 = vmatmul.mubr.bf16.gmra.mxu0 %v1855
        %v1891 = vpop.f32.mrf.mxu0
        %v1892 = vadd.f32 %v1840, %v1891
        %v1893 = vpop.f32.mrf.mxu0
        %v1894 = vpop.f32.mrf.mxu0
        %v1895 = vpop.f32.mrf.mxu0
        %1896 = vdwg.mxu0
        %s1897 = scalar_lea.vmem %s10, 16
        %v1898 = vld [vmem:[%s1897] sm:$0xf]
        %v1899 = vld [vmem:[%s1897 + $0x4] sm:$0xf]
        %v1900 = vld [vmem:[%s1897 + $0x8] sm:$0xf]
        %v1901 = vld [vmem:[%s1897 + $0xc] sm:$0xf]
        %s1902 = scalar_lea.vmem %s11, 1
        %v1903 = vld [vmem:[%s1902] sm:$0x1]
        %v1905 = vlaneseq
        %v1906 = vshrl.u32 %v1905, 7
        %v1907 = vsub.s32 0, %v1906
        %v1908 = vrot.slane %v1903, %v1907
        %v1914 = vunpack.c.l.b16 %v1898
        %v1915 = vunpack.c.l.b16 %v1899
        %v1916 = vunpack.c.l.b16 %v1900
        %v1917 = vunpack.c.l.b16 %v1901
        %v1918 = vpack.c.b16 %v1915, %v1914
        %v1919 = vpack.c.b16 %v1917, %v1916
        %v1923 = vsel %vm821, %v1827, 0
        %1925 = vmatprep.subr.bf16.mxu0 0
        %1926 = vmatpush1.bf16.msra.mxu0 0
        %1927 = vmatprep.subr.bf16.mxu0 0
        %1928 = vmatpush1.bf16.msra.mxu0 0
        %1929 = vmatprep.subr.bf16.mxu0 0
        %1930 = vmatpush1.bf16.msra.mxu0 0
        %1931 = vmatprep.subr.bf16.mxu0 0
        %1932 = vmatpush1.bf16.msra.mxu0 0
        %1933 = vmatprep.subr.bf16.mxu0 0
        %1934 = vmatpush1.bf16.msra.mxu0 0
        %1935 = vmatprep.subr.bf16.mxu0 0
        %1936 = vmatpush1.bf16.msra.mxu0 0
        %1937 = vmatprep.subr.bf16.mxu0 0
        %1938 = vmatpush1.bf16.msra.mxu0 %v1919
        %1939 = vmatprep.subr.bf16.mxu0 0
        %1940 = vmatpush1.bf16.msra.mxu0 %v1918
        %1941 = vmatprep.subr.bf16.mxu0 0
        %1942 = vmatpush2.bf16.msra.mxu0 0
        %1943 = vmatprep.subr.bf16.mxu0 0
        %1944 = vmatpush2.bf16.msra.mxu0 0
        %1945 = vmatprep.subr.bf16.mxu0 0
        %1946 = vmatpush2.bf16.msra.mxu0 0
        %1947 = vmatprep.subr.bf16.mxu0 0
        %1948 = vmatpush2.bf16.msra.mxu0 0
        %1949 = vmatprep.subr.bf16.mxu0 0
        %1950 = vmatpush2.bf16.msra.mxu0 0
        %1951 = vmatprep.subr.bf16.mxu0 0
        %1952 = vmatpush2.bf16.msra.mxu0 0
        %1953 = vmatprep.subr.bf16.mxu0 0
        %1954 = vmatpush2.bf16.msra.mxu0 0
        %1955 = vmatprep.subr.bf16.mxu0 0
        %1956 = vmatpush2.bf16.msra.mxu0 0
        %1957 = vmatprep.mubr.bf16.mxu0 0
        %1958 = vmatmul.mubr.bf16.gmra.mxu0 %v1923
        %v1959 = vpop.f32.mrf.mxu0
        %v1960 = vadd.f32 %v1908, %v1959
        %v1961 = vpop.f32.mrf.mxu0
        %v1962 = vpop.f32.mrf.mxu0
        %v1963 = vadd.f32 %v1908, %v1962
        %v1964 = vpop.f32.mrf.mxu0
        %1965 = vdwg.mxu0
        %v1966 = vpack.c.bf16 %v1892, %v1892
        %v1967 = vpack.c.bf16 %v1963, %v1960
        %v1969 = vsel %vm1044, %v1966, 0
        %v1972 = vsel %vm1044, %v1967, 0
        %1974 = vmatprep.subr.bf16.mxu0 0
        %1975 = vmatpush1.bf16.xpose.msra.mxu0 0
        %1976 = vmatprep.subr.bf16.mxu0 0
        %1977 = vmatpush1.bf16.xpose.msra.mxu0 0
        %1978 = vmatprep.subr.bf16.mxu0 0
        %1979 = vmatpush1.bf16.xpose.msra.mxu0 0
        %1980 = vmatprep.subr.bf16.mxu0 0
        %1981 = vmatpush1.bf16.xpose.msra.mxu0 0
        %1982 = vmatprep.subr.bf16.mxu0 0
        %1983 = vmatpush1.bf16.xpose.msra.mxu0 0
        %1984 = vmatprep.subr.bf16.mxu0 0
        %1985 = vmatpush1.bf16.xpose.msra.mxu0 0
        %1986 = vmatprep.subr.bf16.mxu0 0
        %1987 = vmatpush1.bf16.xpose.msra.mxu0 0
        %1988 = vmatprep.subr.bf16.mxu0 0
        %1989 = vmatpush1.bf16.xpose.msra.mxu0 %v1972
        %1990 = vmatprep.subr.bf16.mxu0 0
        %1991 = vmatpush2.bf16.xpose.msra.mxu0 0
        %1992 = vmatprep.subr.bf16.mxu0 0
        %1993 = vmatpush2.bf16.xpose.msra.mxu0 0
        %1994 = vmatprep.subr.bf16.mxu0 0
        %1995 = vmatpush2.bf16.xpose.msra.mxu0 0
        %1996 = vmatprep.subr.bf16.mxu0 0
        %1997 = vmatpush2.bf16.xpose.msra.mxu0 0
        %1998 = vmatprep.subr.bf16.mxu0 0
        %1999 = vmatpush2.bf16.xpose.msra.mxu0 0
        %2000 = vmatprep.subr.bf16.mxu0 0
        %2001 = vmatpush2.bf16.xpose.msra.mxu0 0
        %2002 = vmatprep.subr.bf16.mxu0 0
        %2003 = vmatpush2.bf16.xpose.msra.mxu0 0
        %2004 = vmatprep.subr.bf16.mxu0 0
        %2005 = vmatpush2.bf16.xpose.msra.mxu0 0
        %2006 = vmatprep.mubr.bf16.mxu0 0
        %2007 = vmatmul.mubr.bf16.gmra.mxu0 %v1969
        %v2008 = vpop.f32.mrf.mxu0
        %v2009 = vadd.f32 0.0, %v2008
        %v2010 = vpop.f32.mrf.mxu0
        %v2011 = vpop.f32.mrf.mxu0
        %v2012 = vpop.f32.mrf.mxu0
        %2013 = vdwg.mxu0
        %v2014 = vmul.f32 %v2009, 0.35355338
        %v2015 = vsel %vm876, %v2014, -1e+30
        %v2016 = vsel %vm1093, %v2015, -inf
        %2017 = vmax.xlane.f32.xlu0 %v2016
        %v2018 = vpop.xlane.xlu0 %2017
        %v2019 = vsub.f32 %v2015, %v2018
        %v2020 = vmul.f32 %v2019, 1.442695
        %v2021 = vpow.pop %v2020
        %v2022 = vsel %vm1093, %v2021, 0.0
        %2023 = vadd.xlane.f32.xlu0 %v2022
        %v2024 = vpop.xlane.xlu0 %2023
        %v2025 = vrcp.pop %v2024
        %v2026 = vmul.f32 %v2021, %v2025
        %v2027 = vpack.c.bf16 %v2026, %v2026
        %2029 = vrot.lane.b32.xlu0 %v1967, 96
        %v2030 = vpop.permute.xlu0 %2029
        %v2032 = vsel %vm1093, %v2027, 0
        %v2035 = vand.u32 %v2030, %v1115
        %2037 = vmatprep.subr.bf16.mxu0 0
        %2038 = vmatpush1.bf16.msra.mxu0 0
        %2039 = vmatprep.subr.bf16.mxu0 0
        %2040 = vmatpush1.bf16.msra.mxu0 0
        %2041 = vmatprep.subr.bf16.mxu0 0
        %2042 = vmatpush1.bf16.msra.mxu0 0
        %2043 = vmatprep.subr.bf16.mxu0 0
        %2044 = vmatpush1.bf16.msra.mxu0 0
        %2045 = vmatprep.subr.bf16.mxu0 0
        %2046 = vmatpush1.bf16.msra.mxu0 0
        %2047 = vmatprep.subr.bf16.mxu0 0
        %2048 = vmatpush1.bf16.msra.mxu0 0
        %2049 = vmatprep.subr.bf16.mxu0 0
        %2050 = vmatpush1.bf16.msra.mxu0 0
        %2051 = vmatprep.subr.bf16.mxu0 0
        %2052 = vmatpush1.bf16.msra.mxu0 %v2035
        %2053 = vmatprep.subr.bf16.mxu0 0
        %2054 = vmatpush2.bf16.msra.mxu0 0
        %2055 = vmatprep.subr.bf16.mxu0 0
        %2056 = vmatpush2.bf16.msra.mxu0 0
        %2057 = vmatprep.subr.bf16.mxu0 0
        %2058 = vmatpush2.bf16.msra.mxu0 0
        %2059 = vmatprep.subr.bf16.mxu0 0
        %2060 = vmatpush2.bf16.msra.mxu0 0
        %2061 = vmatprep.subr.bf16.mxu0 0
        %2062 = vmatpush2.bf16.msra.mxu0 0
        %2063 = vmatprep.subr.bf16.mxu0 0
        %2064 = vmatpush2.bf16.msra.mxu0 0
        %2065 = vmatprep.subr.bf16.mxu0 0
        %2066 = vmatpush2.bf16.msra.mxu0 0
        %2067 = vmatprep.subr.bf16.mxu0 0
        %2068 = vmatpush2.bf16.msra.mxu0 0
        %2069 = vmatprep.mubr.bf16.mxu0 0
        %2070 = vmatmul.mubr.bf16.gmra.mxu0 %v2032
        %v2071 = vpop.f32.mrf.mxu0
        %v2072 = vadd.f32 0.0, %v2071
        %v2073 = vpop.f32.mrf.mxu0
        %v2074 = vpop.f32.mrf.mxu0
        %v2075 = vpop.f32.mrf.mxu0
        %2076 = vdwg.mxu0
        %2078 = vrot.lane.b32.xlu0 %v1966, 120
        %v2079 = vpop.permute.xlu0 %2078
        %2080 = vrot.lane.b32.xlu0 %v1967, 120
        %v2081 = vpop.permute.xlu0 %2080
        %v2083 = vsel %vm1044, %v2079, 0
        %v2086 = vsel %vm1044, %v2081, 0
        %2088 = vmatprep.subr.bf16.mxu0 0
        %2089 = vmatpush1.bf16.xpose.msra.mxu0 0
        %2090 = vmatprep.subr.bf16.mxu0 0
        %2091 = vmatpush1.bf16.xpose.msra.mxu0 0
        %2092 = vmatprep.subr.bf16.mxu0 0
        %2093 = vmatpush1.bf16.xpose.msra.mxu0 0
        %2094 = vmatprep.subr.bf16.mxu0 0
        %2095 = vmatpush1.bf16.xpose.msra.mxu0 0
        %2096 = vmatprep.subr.bf16.mxu0 0
        %2097 = vmatpush1.bf16.xpose.msra.mxu0 0
        %2098 = vmatprep.subr.bf16.mxu0 0
        %2099 = vmatpush1.bf16.xpose.msra.mxu0 0
        %2100 = vmatprep.subr.bf16.mxu0 0
        %2101 = vmatpush1.bf16.xpose.msra.mxu0 0
        %2102 = vmatprep.subr.bf16.mxu0 0
        %2103 = vmatpush1.bf16.xpose.msra.mxu0 %v2086
        %2104 = vmatprep.subr.bf16.mxu0 0
        %2105 = vmatpush2.bf16.xpose.msra.mxu0 0
        %2106 = vmatprep.subr.bf16.mxu0 0
        %2107 = vmatpush2.bf16.xpose.msra.mxu0 0
        %2108 = vmatprep.subr.bf16.mxu0 0
        %2109 = vmatpush2.bf16.xpose.msra.mxu0 0
        %2110 = vmatprep.subr.bf16.mxu0 0
        %2111 = vmatpush2.bf16.xpose.msra.mxu0 0
        %2112 = vmatprep.subr.bf16.mxu0 0
        %2113 = vmatpush2.bf16.xpose.msra.mxu0 0
        %2114 = vmatprep.subr.bf16.mxu0 0
        %2115 = vmatpush2.bf16.xpose.msra.mxu0 0
        %2116 = vmatprep.subr.bf16.mxu0 0
        %2117 = vmatpush2.bf16.xpose.msra.mxu0 0
        %2118 = vmatprep.subr.bf16.mxu0 0
        %2119 = vmatpush2.bf16.xpose.msra.mxu0 0
        %2120 = vmatprep.mubr.bf16.mxu0 0
        %2121 = vmatmul.mubr.bf16.gmra.mxu0 %v2083
        %v2122 = vpop.f32.mrf.mxu0
        %v2123 = vadd.f32 0.0, %v2122
        %v2124 = vpop.f32.mrf.mxu0
        %v2125 = vpop.f32.mrf.mxu0
        %v2126 = vpop.f32.mrf.mxu0
        %2127 = vdwg.mxu0
        %v2128 = vmul.f32 %v2123, 0.35355338
        %v2129 = vsel %vm876, %v2128, -1e+30
        %v2130 = vsel %vm1093, %v2129, -inf
        %2131 = vmax.xlane.f32.xlu0 %v2130
        %v2132 = vpop.xlane.xlu0 %2131
        %v2133 = vsub.f32 %v2129, %v2132
        %v2134 = vmul.f32 %v2133, 1.442695
        %v2135 = vpow.pop %v2134
        %v2136 = vsel %vm1093, %v2135, 0.0
        %2137 = vadd.xlane.f32.xlu0 %v2136
        %v2138 = vpop.xlane.xlu0 %2137
        %v2139 = vrcp.pop %v2138
        %v2140 = vmul.f32 %v2135, %v2139
        %v2141 = vpack.c.bf16 %v2140, %v2140
        %2142 = vrot.lane.b32.xlu0 %v1967, 88
        %v2143 = vpop.permute.xlu0 %2142
        %v2145 = vsel %vm1093, %v2141, 0
        %v2148 = vand.u32 %v2143, %v1115
        %2150 = vmatprep.subr.bf16.mxu0 0
        %2151 = vmatpush1.bf16.msra.mxu0 0
        %2152 = vmatprep.subr.bf16.mxu0 0
        %2153 = vmatpush1.bf16.msra.mxu0 0
        %2154 = vmatprep.subr.bf16.mxu0 0
        %2155 = vmatpush1.bf16.msra.mxu0 0
        %2156 = vmatprep.subr.bf16.mxu0 0
        %2157 = vmatpush1.bf16.msra.mxu0 0
        %2158 = vmatprep.subr.bf16.mxu0 0
        %2159 = vmatpush1.bf16.msra.mxu0 0
        %2160 = vmatprep.subr.bf16.mxu0 0
        %2161 = vmatpush1.bf16.msra.mxu0 0
        %2162 = vmatprep.subr.bf16.mxu0 0
        %2163 = vmatpush1.bf16.msra.mxu0 0
        %2164 = vmatprep.subr.bf16.mxu0 0
        %2165 = vmatpush1.bf16.msra.mxu0 %v2148
        %2166 = vmatprep.subr.bf16.mxu0 0
        %2167 = vmatpush2.bf16.msra.mxu0 0
        %2168 = vmatprep.subr.bf16.mxu0 0
        %2169 = vmatpush2.bf16.msra.mxu0 0
        %2170 = vmatprep.subr.bf16.mxu0 0
        %2171 = vmatpush2.bf16.msra.mxu0 0
        %2172 = vmatprep.subr.bf16.mxu0 0
        %2173 = vmatpush2.bf16.msra.mxu0 0
        %2174 = vmatprep.subr.bf16.mxu0 0
        %2175 = vmatpush2.bf16.msra.mxu0 0
        %2176 = vmatprep.subr.bf16.mxu0 0
        %2177 = vmatpush2.bf16.msra.mxu0 0
        %2178 = vmatprep.subr.bf16.mxu0 0
        %2179 = vmatpush2.bf16.msra.mxu0 0
        %2180 = vmatprep.subr.bf16.mxu0 0
        %2181 = vmatpush2.bf16.msra.mxu0 0
        %2182 = vmatprep.mubr.bf16.mxu0 0
        %2183 = vmatmul.mubr.bf16.gmra.mxu0 %v2145
        %v2184 = vpop.f32.mrf.mxu0
        %v2185 = vadd.f32 0.0, %v2184
        %v2186 = vpop.f32.mrf.mxu0
        %v2187 = vpop.f32.mrf.mxu0
        %v2188 = vpop.f32.mrf.mxu0
        %2189 = vdwg.mxu0
        %2190 = vrot.lane.b32.xlu0 %v1966, 112
        %v2191 = vpop.permute.xlu0 %2190
        %2192 = vrot.lane.b32.xlu0 %v1967, 112
        %v2193 = vpop.permute.xlu0 %2192
        %v2195 = vsel %vm1044, %v2191, 0
        %v2198 = vsel %vm1044, %v2193, 0
        %2200 = vmatprep.subr.bf16.mxu0 0
        %2201 = vmatpush1.bf16.xpose.msra.mxu0 0
        %2202 = vmatprep.subr.bf16.mxu0 0
        %2203 = vmatpush1.bf16.xpose.msra.mxu0 0
        %2204 = vmatprep.subr.bf16.mxu0 0
        %2205 = vmatpush1.bf16.xpose.msra.mxu0 0
        %2206 = vmatprep.subr.bf16.mxu0 0
        %2207 = vmatpush1.bf16.xpose.msra.mxu0 0
        %2208 = vmatprep.subr.bf16.mxu0 0
        %2209 = vmatpush1.bf16.xpose.msra.mxu0 0
        %2210 = vmatprep.subr.bf16.mxu0 0
        %2211 = vmatpush1.bf16.xpose.msra.mxu0 0
        %2212 = vmatprep.subr.bf16.mxu0 0
        %2213 = vmatpush1.bf16.xpose.msra.mxu0 0
        %2214 = vmatprep.subr.bf16.mxu0 0
        %2215 = vmatpush1.bf16.xpose.msra.mxu0 %v2198
        %2216 = vmatprep.subr.bf16.mxu0 0
        %2217 = vmatpush2.bf16.xpose.msra.mxu0 0
        %2218 = vmatprep.subr.bf16.mxu0 0
        %2219 = vmatpush2.bf16.xpose.msra.mxu0 0
        %2220 = vmatprep.subr.bf16.mxu0 0
        %2221 = vmatpush2.bf16.xpose.msra.mxu0 0
        %2222 = vmatprep.subr.bf16.mxu0 0
        %2223 = vmatpush2.bf16.xpose.msra.mxu0 0
        %2224 = vmatprep.subr.bf16.mxu0 0
        %2225 = vmatpush2.bf16.xpose.msra.mxu0 0
        %2226 = vmatprep.subr.bf16.mxu0 0
        %2227 = vmatpush2.bf16.xpose.msra.mxu0 0
        %2228 = vmatprep.subr.bf16.mxu0 0
        %2229 = vmatpush2.bf16.xpose.msra.mxu0 0
        %2230 = vmatprep.subr.bf16.mxu0 0
        %2231 = vmatpush2.bf16.xpose.msra.mxu0 0
        %2232 = vmatprep.mubr.bf16.mxu0 0
        %2233 = vmatmul.mubr.bf16.gmra.mxu0 %v2195
        %v2234 = vpop.f32.mrf.mxu0
        %v2235 = vadd.f32 0.0, %v2234
        %v2236 = vpop.f32.mrf.mxu0
        %v2237 = vpop.f32.mrf.mxu0
        %v2238 = vpop.f32.mrf.mxu0
        %2239 = vdwg.mxu0
        %v2240 = vmul.f32 %v2235, 0.35355338
        %v2241 = vsel %vm876, %v2240, -1e+30
        %v2242 = vsel %vm1093, %v2241, -inf
        %2243 = vmax.xlane.f32.xlu0 %v2242
        %v2244 = vpop.xlane.xlu0 %2243
        %v2245 = vsub.f32 %v2241, %v2244
        %v2246 = vmul.f32 %v2245, 1.442695
        %v2247 = vpow.pop %v2246
        %v2248 = vsel %vm1093, %v2247, 0.0
        %2249 = vadd.xlane.f32.xlu0 %v2248
        %v2250 = vpop.xlane.xlu0 %2249
        %v2251 = vrcp.pop %v2250
        %v2252 = vmul.f32 %v2247, %v2251
        %v2253 = vpack.c.bf16 %v2252, %v2252
        %2254 = vrot.lane.b32.xlu0 %v1967, 80
        %v2255 = vpop.permute.xlu0 %2254
        %v2257 = vsel %vm1093, %v2253, 0
        %v2260 = vand.u32 %v2255, %v1115
        %2262 = vmatprep.subr.bf16.mxu0 0
        %2263 = vmatpush1.bf16.msra.mxu0 0
        %2264 = vmatprep.subr.bf16.mxu0 0
        %2265 = vmatpush1.bf16.msra.mxu0 0
        %2266 = vmatprep.subr.bf16.mxu0 0
        %2267 = vmatpush1.bf16.msra.mxu0 0
        %2268 = vmatprep.subr.bf16.mxu0 0
        %2269 = vmatpush1.bf16.msra.mxu0 0
        %2270 = vmatprep.subr.bf16.mxu0 0
        %2271 = vmatpush1.bf16.msra.mxu0 0
        %2272 = vmatprep.subr.bf16.mxu0 0
        %2273 = vmatpush1.bf16.msra.mxu0 0
        %2274 = vmatprep.subr.bf16.mxu0 0
        %2275 = vmatpush1.bf16.msra.mxu0 0
        %2276 = vmatprep.subr.bf16.mxu0 0
        %2277 = vmatpush1.bf16.msra.mxu0 %v2260
        %2278 = vmatprep.subr.bf16.mxu0 0
        %2279 = vmatpush2.bf16.msra.mxu0 0
        %2280 = vmatprep.subr.bf16.mxu0 0
        %2281 = vmatpush2.bf16.msra.mxu0 0
        %2282 = vmatprep.subr.bf16.mxu0 0
        %2283 = vmatpush2.bf16.msra.mxu0 0
        %2284 = vmatprep.subr.bf16.mxu0 0
        %2285 = vmatpush2.bf16.msra.mxu0 0
        %2286 = vmatprep.subr.bf16.mxu0 0
        %2287 = vmatpush2.bf16.msra.mxu0 0
        %2288 = vmatprep.subr.bf16.mxu0 0
        %2289 = vmatpush2.bf16.msra.mxu0 0
        %2290 = vmatprep.subr.bf16.mxu0 0
        %2291 = vmatpush2.bf16.msra.mxu0 0
        %2292 = vmatprep.subr.bf16.mxu0 0
        %2293 = vmatpush2.bf16.msra.mxu0 0
        %2294 = vmatprep.mubr.bf16.mxu0 0
        %2295 = vmatmul.mubr.bf16.gmra.mxu0 %v2257
        %v2296 = vpop.f32.mrf.mxu0
        %v2297 = vadd.f32 0.0, %v2296
        %v2298 = vpop.f32.mrf.mxu0
        %v2299 = vpop.f32.mrf.mxu0
        %v2300 = vpop.f32.mrf.mxu0
        %2301 = vdwg.mxu0
        %2302 = vrot.lane.b32.xlu0 %v1966, 104
        %v2303 = vpop.permute.xlu0 %2302
        %2304 = vrot.lane.b32.xlu0 %v1967, 104
        %v2305 = vpop.permute.xlu0 %2304
        %v2307 = vsel %vm1044, %v2303, 0
        %v2310 = vsel %vm1044, %v2305, 0
        %2312 = vmatprep.subr.bf16.mxu0 0
        %2313 = vmatpush1.bf16.xpose.msra.mxu0 0
        %2314 = vmatprep.subr.bf16.mxu0 0
        %2315 = vmatpush1.bf16.xpose.msra.mxu0 0
        %2316 = vmatprep.subr.bf16.mxu0 0
        %2317 = vmatpush1.bf16.xpose.msra.mxu0 0
        %2318 = vmatprep.subr.bf16.mxu0 0
        %2319 = vmatpush1.bf16.xpose.msra.mxu0 0
        %2320 = vmatprep.subr.bf16.mxu0 0
        %2321 = vmatpush1.bf16.xpose.msra.mxu0 0
        %2322 = vmatprep.subr.bf16.mxu0 0
        %2323 = vmatpush1.bf16.xpose.msra.mxu0 0
        %2324 = vmatprep.subr.bf16.mxu0 0
        %2325 = vmatpush1.bf16.xpose.msra.mxu0 0
        %2326 = vmatprep.subr.bf16.mxu0 0
        %2327 = vmatpush1.bf16.xpose.msra.mxu0 %v2310
        %2328 = vmatprep.subr.bf16.mxu0 0
        %2329 = vmatpush2.bf16.xpose.msra.mxu0 0
        %2330 = vmatprep.subr.bf16.mxu0 0
        %2331 = vmatpush2.bf16.xpose.msra.mxu0 0
        %2332 = vmatprep.subr.bf16.mxu0 0
        %2333 = vmatpush2.bf16.xpose.msra.mxu0 0
        %2334 = vmatprep.subr.bf16.mxu0 0
        %2335 = vmatpush2.bf16.xpose.msra.mxu0 0
        %2336 = vmatprep.subr.bf16.mxu0 0
        %2337 = vmatpush2.bf16.xpose.msra.mxu0 0
        %2338 = vmatprep.subr.bf16.mxu0 0
        %2339 = vmatpush2.bf16.xpose.msra.mxu0 0
        %2340 = vmatprep.subr.bf16.mxu0 0
        %2341 = vmatpush2.bf16.xpose.msra.mxu0 0
        %2342 = vmatprep.subr.bf16.mxu0 0
        %2343 = vmatpush2.bf16.xpose.msra.mxu0 0
        %2344 = vmatprep.mubr.bf16.mxu0 0
        %2345 = vmatmul.mubr.bf16.gmra.mxu0 %v2307
        %v2346 = vpop.f32.mrf.mxu0
        %v2347 = vadd.f32 0.0, %v2346
        %v2348 = vpop.f32.mrf.mxu0
        %v2349 = vpop.f32.mrf.mxu0
        %v2350 = vpop.f32.mrf.mxu0
        %2351 = vdwg.mxu0
        %v2352 = vmul.f32 %v2347, 0.35355338
        %v2353 = vsel %vm876, %v2352, -1e+30
        %v2354 = vsel %vm1093, %v2353, -inf
        %2355 = vmax.xlane.f32.xlu0 %v2354
        %v2356 = vpop.xlane.xlu0 %2355
        %v2357 = vsub.f32 %v2353, %v2356
        %v2358 = vmul.f32 %v2357, 1.442695
        %v2359 = vpow.pop %v2358
        %v2360 = vsel %vm1093, %v2359, 0.0
        %2361 = vadd.xlane.f32.xlu0 %v2360
        %v2362 = vpop.xlane.xlu0 %2361
        %v2363 = vrcp.pop %v2362
        %v2364 = vmul.f32 %v2359, %v2363
        %v2365 = vpack.c.bf16 %v2364, %v2364
        %2366 = vrot.lane.b32.xlu0 %v1967, 72
        %v2367 = vpop.permute.xlu0 %2366
        %v2369 = vsel %vm1093, %v2365, 0
        %v2372 = vand.u32 %v2367, %v1115
        %2374 = vmatprep.subr.bf16.mxu0 0
        %2375 = vmatpush1.bf16.msra.mxu0 0
        %2376 = vmatprep.subr.bf16.mxu0 0
        %2377 = vmatpush1.bf16.msra.mxu0 0
        %2378 = vmatprep.subr.bf16.mxu0 0
        %2379 = vmatpush1.bf16.msra.mxu0 0
        %2380 = vmatprep.subr.bf16.mxu0 0
        %2381 = vmatpush1.bf16.msra.mxu0 0
        %2382 = vmatprep.subr.bf16.mxu0 0
        %2383 = vmatpush1.bf16.msra.mxu0 0
        %2384 = vmatprep.subr.bf16.mxu0 0
        %2385 = vmatpush1.bf16.msra.mxu0 0
        %2386 = vmatprep.subr.bf16.mxu0 0
        %2387 = vmatpush1.bf16.msra.mxu0 0
        %2388 = vmatprep.subr.bf16.mxu0 0
        %2389 = vmatpush1.bf16.msra.mxu0 %v2372
        %2390 = vmatprep.subr.bf16.mxu0 0
        %2391 = vmatpush2.bf16.msra.mxu0 0
        %2392 = vmatprep.subr.bf16.mxu0 0
        %2393 = vmatpush2.bf16.msra.mxu0 0
        %2394 = vmatprep.subr.bf16.mxu0 0
        %2395 = vmatpush2.bf16.msra.mxu0 0
        %2396 = vmatprep.subr.bf16.mxu0 0
        %2397 = vmatpush2.bf16.msra.mxu0 0
        %2398 = vmatprep.subr.bf16.mxu0 0
        %2399 = vmatpush2.bf16.msra.mxu0 0
        %2400 = vmatprep.subr.bf16.mxu0 0
        %2401 = vmatpush2.bf16.msra.mxu0 0
        %2402 = vmatprep.subr.bf16.mxu0 0
        %2403 = vmatpush2.bf16.msra.mxu0 0
        %2404 = vmatprep.subr.bf16.mxu0 0
        %2405 = vmatpush2.bf16.msra.mxu0 0
        %2406 = vmatprep.mubr.bf16.mxu0 0
        %2407 = vmatmul.mubr.bf16.gmra.mxu0 %v2369
        %v2408 = vpop.f32.mrf.mxu0
        %v2409 = vadd.f32 0.0, %v2408
        %v2410 = vpop.f32.mrf.mxu0
        %v2411 = vpop.f32.mrf.mxu0
        %v2412 = vpop.f32.mrf.mxu0
        %2413 = vdwg.mxu0
        %2415 = vrot.lane.b32.xlu0 %v2185, 8
        %v2416 = vpop.permute.xlu0 %2415
        %2419 = vrot.lane.b32.xlu0 %v2297, 16
        %v2420 = vpop.permute.xlu0 %2419
        %2423 = vrot.lane.b32.xlu0 %v2409, 24
        %v2424 = vpop.permute.xlu0 %2423
        %v2426 = vsel %vm1044, %v2072, %v2416
        %v2427 = vsel %vm1509, %v2426, %v2420
        %v2428 = vsel %vm1511, %v2427, %v2424
        %v2429 = vpack.c.bf16 %v2428, %v2428
        %s2430 = scalar_lea.vmem %s12, 16
        %v2431 = vld [vmem:[%s2430] sm:$0xf]
        %v2432 = vld [vmem:[%s2430 + $0x4] sm:$0xf]
        %v2433 = vld [vmem:[%s2430 + $0x8] sm:$0xf]
        %v2434 = vld [vmem:[%s2430 + $0xc] sm:$0xf]
        %s2435 = scalar_lea.vmem [#allocation14], 1
        %v2436 = vld [vmem:[%s2435] sm:$0x1]
        %v2438 = vlaneseq
        %v2439 = vshrl.u32 %v2438, 7
        %v2440 = vsub.s32 0, %v2439
        %v2441 = vrot.slane %v2436, %v2440
        %v2447 = vunpack.c.l.b16 %v2431
        %v2448 = vunpack.c.l.b16 %v2432
        %v2449 = vunpack.c.l.b16 %v2433
        %v2450 = vunpack.c.l.b16 %v2434
        %v2451 = vpack.c.b16 %v2448, %v2447
        %v2452 = vpack.c.b16 %v2450, %v2449
        %v2456 = vsel %vm821, %v2429, 0
        %2458 = vmatprep.subr.bf16.mxu0 0
        %2459 = vmatpush1.bf16.msra.mxu0 0
        %2460 = vmatprep.subr.bf16.mxu0 0
        %2461 = vmatpush1.bf16.msra.mxu0 0
        %2462 = vmatprep.subr.bf16.mxu0 0
        %2463 = vmatpush1.bf16.msra.mxu0 0
        %2464 = vmatprep.subr.bf16.mxu0 0
        %2465 = vmatpush1.bf16.msra.mxu0 0
        %2466 = vmatprep.subr.bf16.mxu0 0
        %2467 = vmatpush1.bf16.msra.mxu0 0
        %2468 = vmatprep.subr.bf16.mxu0 0
        %2469 = vmatpush1.bf16.msra.mxu0 0
        %2470 = vmatprep.subr.bf16.mxu0 0
        %2471 = vmatpush1.bf16.msra.mxu0 %v2452
        %2472 = vmatprep.subr.bf16.mxu0 0
        %2473 = vmatpush1.bf16.msra.mxu0 %v2451
        %2474 = vmatprep.subr.bf16.mxu0 0
        %2475 = vmatpush2.bf16.msra.mxu0 0
        %2476 = vmatprep.subr.bf16.mxu0 0
        %2477 = vmatpush2.bf16.msra.mxu0 0
        %2478 = vmatprep.subr.bf16.mxu0 0
        %2479 = vmatpush2.bf16.msra.mxu0 0
        %2480 = vmatprep.subr.bf16.mxu0 0
        %2481 = vmatpush2.bf16.msra.mxu0 0
        %2482 = vmatprep.subr.bf16.mxu0 0
        %2483 = vmatpush2.bf16.msra.mxu0 0
        %2484 = vmatprep.subr.bf16.mxu0 0
        %2485 = vmatpush2.bf16.msra.mxu0 0
        %2486 = vmatprep.subr.bf16.mxu0 0
        %2487 = vmatpush2.bf16.msra.mxu0 0
        %2488 = vmatprep.subr.bf16.mxu0 0
        %2489 = vmatpush2.bf16.msra.mxu0 0
        %2490 = vmatprep.mubr.bf16.mxu0 0
        %2491 = vmatmul.mubr.bf16.gmra.mxu0 %v2456
        %v2492 = vpop.f32.mrf.mxu0
        %v2493 = vadd.f32 %v2441, %v2492
        %v2494 = vpop.f32.mrf.mxu0
        %v2495 = vpop.f32.mrf.mxu0
        %v2496 = vpop.f32.mrf.mxu0
        %2497 = vdwg.mxu0
        %v2498 = vadd.f32 %v1794, %v2493
        %s2499 = scalar_lea.vmem [#allocation11], 2
        %v2500 = vld [vmem:[%s2499] sm:$0x3]
        %v2501 = vsel %vm821, %v2498, 0.0
        %2502 = vadd.xlane.f32.xlu0 %v2501
        %v2503 = vpop.xlane.xlu0 %2502
        %v2504 = vmul.f32 %v2503, %v845
        %v2505 = vsub.f32 %v2498, %v2504
        %v2506 = vmul.f32 %v2505, %v2505
        %v2507 = vsel %vm821, %v2506, 0.0
        %2508 = vadd.xlane.f32.xlu0 %v2507
        %v2509 = vpop.xlane.xlu0 %2508
        %v2510 = vmul.f32 %v2509, %v845
        %v2511 = vadd.f32 %v2510, 1e-05
        %v2512 = vrsqrt.pop %v2511
        %v2513 = vmul.f32 %v2505, %v2512
        %v2514 = vlaneseq
        %v2515 = vshrl.u32 %v2514, 7
        %v2516 = vsub.s32 0, %v2515
        %v2517 = vrot.slane %v2500, %v2516
        %v2518 = vmul.f32 %v2513, %v2517
        %v2519 = vlaneseq
        %v2520 = vshrl.u32 %v2519, 7
        %v2521 = vsub.s32 1, %v2520
        %v2522 = vrot.slane %v2500, %v2521
        %v2523 = vadd.f32 %v2518, %v2522
        %v2524 = vpack.c.bf16 %v2523, %v2523
        %s2525 = scalar_lea.vmem %s14, 16
        %v2526 = vld [vmem:[%s2525] sm:$0xf]
        %v2527 = vld [vmem:[%s2525 + $0x4] sm:$0xf]
        %v2528 = vld [vmem:[%s2525 + $0x8] sm:$0xf]
        %v2529 = vld [vmem:[%s2525 + $0xc] sm:$0xf]
        %s2530 = scalar_lea.vmem %s15, 1
        %v2531 = vld [vmem:[%s2530] sm:$0x1]
        %v2533 = vlaneseq
        %v2534 = vshrl.u32 %v2533, 7
        %v2535 = vsub.s32 0, %v2534
        %v2536 = vrot.slane %v2531, %v2535
        %v2542 = vunpack.c.l.b16 %v2526
        %v2543 = vunpack.c.l.b16 %v2527
        %v2544 = vunpack.c.l.b16 %v2528
        %v2545 = vunpack.c.l.b16 %v2529
        %v2546 = vpack.c.b16 %v2543, %v2542
        %v2547 = vpack.c.b16 %v2545, %v2544
        %v2551 = vsel %vm821, %v2524, 0
        %2553 = vmatprep.subr.bf16.mxu0 0
        %2554 = vmatpush1.bf16.msra.mxu0 0
        %2555 = vmatprep.subr.bf16.mxu0 0
        %2556 = vmatpush1.bf16.msra.mxu0 0
        %2557 = vmatprep.subr.bf16.mxu0 0
        %2558 = vmatpush1.bf16.msra.mxu0 0
        %2559 = vmatprep.subr.bf16.mxu0 0
        %2560 = vmatpush1.bf16.msra.mxu0 0
        %2561 = vmatprep.subr.bf16.mxu0 0
        %2562 = vmatpush1.bf16.msra.mxu0 0
        %2563 = vmatprep.subr.bf16.mxu0 0
        %2564 = vmatpush1.bf16.msra.mxu0 0
        %2565 = vmatprep.subr.bf16.mxu0 0
        %2566 = vmatpush1.bf16.msra.mxu0 %v2547
        %2567 = vmatprep.subr.bf16.mxu0 0
        %2568 = vmatpush1.bf16.msra.mxu0 %v2546
        %2569 = vmatprep.subr.bf16.mxu0 0
        %2570 = vmatpush2.bf16.msra.mxu0 0
        %2571 = vmatprep.subr.bf16.mxu0 0
        %2572 = vmatpush2.bf16.msra.mxu0 0
        %2573 = vmatprep.subr.bf16.mxu0 0
        %2574 = vmatpush2.bf16.msra.mxu0 0
        %2575 = vmatprep.subr.bf16.mxu0 0
        %2576 = vmatpush2.bf16.msra.mxu0 0
        %2577 = vmatprep.subr.bf16.mxu0 0
        %2578 = vmatpush2.bf16.msra.mxu0 0
        %2579 = vmatprep.subr.bf16.mxu0 0
        %2580 = vmatpush2.bf16.msra.mxu0 0
        %2581 = vmatprep.subr.bf16.mxu0 0
        %2582 = vmatpush2.bf16.msra.mxu0 0
        %2583 = vmatprep.subr.bf16.mxu0 0
        %2584 = vmatpush2.bf16.msra.mxu0 0
        %2585 = vmatprep.mubr.bf16.mxu0 0
        %2586 = vmatmul.mubr.bf16.gmra.mxu0 %v2551
        %v2587 = vpop.f32.mrf.mxu0
        %v2588 = vadd.f32 %v2536, %v2587
        %v2589 = vpop.f32.mrf.mxu0
        %v2590 = vpop.f32.mrf.mxu0
        %v2591 = vpop.f32.mrf.mxu0
        %2592 = vdwg.mxu0
        %v2593 = vmul.f32 %v2588, %v2588
        %v2594 = vmul.f32 %v2588, %v2593
        %v2595 = vmul.f32 %v2594, 0.044715
        %v2596 = vadd.f32 %v2588, %v2595
        %v2597 = vmul.f32 %v2596, 0.7978846
        %v2598 = vtanh.pop %v2597
        %v2599 = vadd.f32 %v2598, 1.0
        %v2600 = vmul.f32 %v2599, 0.5
        %v2601 = vmul.f32 %v2588, %v2600
        %v2602 = vpack.c.bf16 %v2601, %v2601
        %s2603 = scalar_lea.vmem %s16, 64
        %v2604 = vld [vmem:[%s2603] sm:$0xf]
        %v2605 = vld [vmem:[%s2603 + $0x4] sm:$0xf]
        %v2606 = vld [vmem:[%s2603 + $0x8] sm:$0xf]
        %v2607 = vld [vmem:[%s2603 + $0xc] sm:$0xf]
        %v2608 = vld [vmem:[%s2603 + $0x10] sm:$0xf]
        %v2609 = vld [vmem:[%s2603 + $0x14] sm:$0xf]
        %v2610 = vld [vmem:[%s2603 + $0x18] sm:$0xf]
        %v2611 = vld [vmem:[%s2603 + $0x1c] sm:$0xf]
        %v2612 = vld [vmem:[%s2603 + $0x20] sm:$0xf]
        %v2613 = vld [vmem:[%s2603 + $0x24] sm:$0xf]
        %v2614 = vld [vmem:[%s2603 + $0x28] sm:$0xf]
        %v2615 = vld [vmem:[%s2603 + $0x2c] sm:$0xf]
        %v2616 = vld [vmem:[%s2603 + $0x30] sm:$0xf]
        %v2617 = vld [vmem:[%s2603 + $0x34] sm:$0xf]
        %v2618 = vld [vmem:[%s2603 + $0x38] sm:$0xf]
        %v2619 = vld [vmem:[%s2603 + $0x3c] sm:$0xf]
        %v2636 = vunpack.c.l.b16 %v2604
        %v2637 = vunpack.c.l.b16 %v2605
        %v2638 = vunpack.c.l.b16 %v2606
        %v2639 = vunpack.c.l.b16 %v2607
        %v2640 = vunpack.c.l.b16 %v2608
        %v2641 = vunpack.c.l.b16 %v2609
        %v2642 = vunpack.c.l.b16 %v2610
        %v2643 = vunpack.c.l.b16 %v2611
        %v2644 = vunpack.c.l.b16 %v2612
        %v2645 = vunpack.c.l.b16 %v2613
        %v2646 = vunpack.c.l.b16 %v2614
        %v2647 = vunpack.c.l.b16 %v2615
        %v2648 = vunpack.c.l.b16 %v2616
        %v2649 = vunpack.c.l.b16 %v2617
        %v2650 = vunpack.c.l.b16 %v2618
        %v2651 = vunpack.c.l.b16 %v2619
        %v2652 = vpack.c.b16 %v2637, %v2636
        %v2653 = vpack.c.b16 %v2639, %v2638
        %v2654 = vpack.c.b16 %v2641, %v2640
        %v2655 = vpack.c.b16 %v2643, %v2642
        %v2656 = vpack.c.b16 %v2645, %v2644
        %v2657 = vpack.c.b16 %v2647, %v2646
        %v2658 = vpack.c.b16 %v2649, %v2648
        %v2659 = vpack.c.b16 %v2651, %v2650
        %2668 = vmatprep.subr.bf16.mxu0 0
        %2669 = vmatpush1.bf16.msra.mxu0 %v2659
        %2670 = vmatprep.subr.bf16.mxu0 0
        %2671 = vmatpush1.bf16.msra.mxu0 %v2658
        %2672 = vmatprep.subr.bf16.mxu0 0
        %2673 = vmatpush1.bf16.msra.mxu0 %v2657
        %2674 = vmatprep.subr.bf16.mxu0 0
        %2675 = vmatpush1.bf16.msra.mxu0 %v2656
        %2676 = vmatprep.subr.bf16.mxu0 0
        %2677 = vmatpush1.bf16.msra.mxu0 %v2655
        %2678 = vmatprep.subr.bf16.mxu0 0
        %2679 = vmatpush1.bf16.msra.mxu0 %v2654
        %2680 = vmatprep.subr.bf16.mxu0 0
        %2681 = vmatpush1.bf16.msra.mxu0 %v2653
        %2682 = vmatprep.subr.bf16.mxu0 0
        %2683 = vmatpush1.bf16.msra.mxu0 %v2652
        %2684 = vmatprep.subr.bf16.mxu0 0
        %2685 = vmatpush2.bf16.msra.mxu0 0
        %2686 = vmatprep.subr.bf16.mxu0 0
        %2687 = vmatpush2.bf16.msra.mxu0 0
        %2688 = vmatprep.subr.bf16.mxu0 0
        %2689 = vmatpush2.bf16.msra.mxu0 0
        %2690 = vmatprep.subr.bf16.mxu0 0
        %2691 = vmatpush2.bf16.msra.mxu0 0
        %2692 = vmatprep.subr.bf16.mxu0 0
        %2693 = vmatpush2.bf16.msra.mxu0 0
        %2694 = vmatprep.subr.bf16.mxu0 0
        %2695 = vmatpush2.bf16.msra.mxu0 0
        %2696 = vmatprep.subr.bf16.mxu0 0
        %2697 = vmatpush2.bf16.msra.mxu0 0
        %2698 = vmatprep.subr.bf16.mxu0 0
        %2699 = vmatpush2.bf16.msra.mxu0 0
        %2700 = vmatprep.mubr.bf16.mxu0 0
        %2701 = vmatmul.mubr.bf16.gmra.mxu0 %v2602
        %v2702 = vpop.f32.mrf.mxu0
        %v2703 = vadd.f32 0.0, %v2702
        %v2704 = vpop.f32.mrf.mxu0
        %v2705 = vpop.f32.mrf.mxu0
        %v2706 = vpop.f32.mrf.mxu0
        %2707 = vdwg.mxu0
        %v2708 = vadd.f32 %v2498, %v2703
        %s2709 = scalar_lea.vmem %s17, 1
        %v2710 = vld [vmem:[%s2709] sm:$0x1]
        %v2712 = vlaneseq
        %v2713 = vshrl.u32 %v2712, 7
        %v2714 = vsub.s32 0, %v2713
        %v2715 = vrot.slane %v2710, %v2714
        %v2717 = vadd.f32 %v2708, %v2715
        %v2718 = vpack.c.bf16 %v2717, %v2717
        %v2719 = vld [vmem:[%s18] sm:$0xf]
        %v2720 = vld [vmem:[%s18 + $0x4] sm:$0xf]
        %v2721 = vld [vmem:[%s18 + $0x8] sm:$0xf]
        %v2722 = vld [vmem:[%s18 + $0xc] sm:$0xf]
        %v2723 = vld [vmem:[%s19] sm:$0x1]
        %v2725 = vlaneseq
        %v2726 = vshrl.u32 %v2725, 7
        %v2727 = vsub.s32 0, %v2726
        %v2728 = vrot.slane %v2723, %v2727
        %v2734 = vunpack.c.l.b16 %v2719
        %v2735 = vunpack.c.l.b16 %v2720
        %v2736 = vunpack.c.l.b16 %v2721
        %v2737 = vunpack.c.l.b16 %v2722
        %v2738 = vpack.c.b16 %v2735, %v2734
        %v2739 = vpack.c.b16 %v2737, %v2736
        %v2743 = vsel %vm821, %v2718, 0
        %2745 = vmatprep.subr.bf16.mxu0 0
        %2746 = vmatpush1.bf16.msra.mxu0 0
        %2747 = vmatprep.subr.bf16.mxu0 0
        %2748 = vmatpush1.bf16.msra.mxu0 0
        %2749 = vmatprep.subr.bf16.mxu0 0
        %2750 = vmatpush1.bf16.msra.mxu0 0
        %2751 = vmatprep.subr.bf16.mxu0 0
        %2752 = vmatpush1.bf16.msra.mxu0 0
        %2753 = vmatprep.subr.bf16.mxu0 0
        %2754 = vmatpush1.bf16.msra.mxu0 0
        %2755 = vmatprep.subr.bf16.mxu0 0
        %2756 = vmatpush1.bf16.msra.mxu0 0
        %2757 = vmatprep.subr.bf16.mxu0 0
        %2758 = vmatpush1.bf16.msra.mxu0 %v2739
        %2759 = vmatprep.subr.bf16.mxu0 0
        %2760 = vmatpush1.bf16.msra.mxu0 %v2738
        %2761 = vmatprep.subr.bf16.mxu0 0
        %2762 = vmatpush2.bf16.msra.mxu0 0
        %2763 = vmatprep.subr.bf16.mxu0 0
        %2764 = vmatpush2.bf16.msra.mxu0 0
        %2765 = vmatprep.subr.bf16.mxu0 0
        %2766 = vmatpush2.bf16.msra.mxu0 0
        %2767 = vmatprep.subr.bf16.mxu0 0
        %2768 = vmatpush2.bf16.msra.mxu0 0
        %2769 = vmatprep.subr.bf16.mxu0 0
        %2770 = vmatpush2.bf16.msra.mxu0 0
        %2771 = vmatprep.subr.bf16.mxu0 0
        %2772 = vmatpush2.bf16.msra.mxu0 0
        %2773 = vmatprep.subr.bf16.mxu0 0
        %2774 = vmatpush2.bf16.msra.mxu0 0
        %2775 = vmatprep.subr.bf16.mxu0 0
        %2776 = vmatpush2.bf16.msra.mxu0 0
        %2777 = vmatprep.mubr.bf16.mxu0 0
        %2778 = vmatmul.mubr.bf16.gmra.mxu0 %v2743
        %v2779 = vpop.f32.mrf.mxu0
        %v2780 = vadd.f32 %v2728, %v2779
        %v2781 = vpop.f32.mrf.mxu0
        %v2782 = vpop.f32.mrf.mxu0
        %v2783 = vpop.f32.mrf.mxu0
        %2784 = vdwg.mxu0
        %2785 = vst [vmem:[%s806] sm:$0xff] %v2780
        %s2786 = sand.u32 %s488, 1
        %s2787 = scalar_lea.sflag [#allocation4], %s2786
        %s2788 = sand.u32 %s488, 1
        %s2789 = smul.addr %s2788, 8
        %s2790 = scalar_lea.vmem [#allocation16], %s2789
        %s2791 = sand.u32 %s514, 1
        %s2792 = sand.u32 %s514, 1
        %s2793 = smul.addr %s2792, 32
        %s2794 = scalar_lea.vmem [#allocation17], %s2793
        // Predicated region
        $region133: #{tpu_custom_call.1} parent=99 // pred_check
          %p2795 = pneg %p498
        $region134: #{tpu_custom_call.1} parent=99 // pred_check_branch
          %2797 = sbr.rel (%p2795) target = $region136
        $region135: #{tpu_custom_call.1} parent=99 // pred_region
          %s2799 = ssub.s32 128, 128
          %2800 = vsyncadd %s2787, %s2799
          %s2801 = smul.addr %s45, 128
          %s2802 = scalar_lea.hbm %s20, %s2801
          %s2804 = sshll.u32 %s2790, 4
          %s2805 = int_to_ptr.vmem [resolvable:$true] %s2804
          %2807 = dma.vmem_to_hbm [thread:$0]  %s2805, 128, %s2802, %s2787
        $region136: #{tpu_custom_call.1} parent=99 // pred_fallthru
          _
        // Predicated region
        $region137: #{tpu_custom_call.1} parent=99 // pred_check
          %p2808 = pneg %p524
        $region138: #{tpu_custom_call.1} parent=99 // pred_check_branch
          %2810 = sbr.rel (%p2808) target = $region140
        $region139: #{tpu_custom_call.1} parent=99 // pred_region
          %s2811 = smul.addr %s45, 2
          %s2812 = smul.addr %s2811, 8
          %s2813 = scalar_lea.vmem %s21, %s2812
          // Predicated region
          $region141: #{tpu_custom_call.1} parent=139 // pred_check
            _
          $region142: #{tpu_custom_call.1} parent=139 // pred_check_branch
            %2815 = sbr.rel (0) target = $region144
          $region143: #{tpu_custom_call.1} parent=139 // pred_region
            // Predicated region
            $region145: #{tpu_custom_call.1} parent=143 // pred_check
              _
            $region146: #{tpu_custom_call.1} parent=143 // pred_check_branch
              %2817 = sbr.rel (0) target = $region148
            $region147: #{tpu_custom_call.1} parent=143 // pred_region
              // Predicated region
              $region160: #{tpu_custom_call.1} parent=147 // pred_check
                _
              $region161: #{tpu_custom_call.1} parent=147 // pred_check_branch
                %2839 = sbr.rel (0) target = $region163
              $region162: #{tpu_custom_call.1} parent=147 // pred_region
                loop: start=0, step=1, limit=1
                $region164: #{tpu_custom_call.1} parent=162 // loop_pre_header
                  _
                $region165: #{tpu_custom_call.1} parent=162 // loop_header
                  %s2841 = sphi 0, %s2845
                  %p2842 = scmp.ge.s32.totalorder %s2841, 1
                  %s2846 = sphi %s2794, %s2794
                  %s2847 = sphi %s2813, %s2813
                $region166: #{tpu_custom_call.1} parent=162 // loop_header_branch
                  %2844 = sbr.rel (%p2842) target = $region170
                $region167: #{tpu_custom_call.1} parent=162 // loop_body
                  %v2848 = vld [vmem:[%s2846] sm:$0xff]
                  %2849 = vst [vmem:[%s2847] sm:$0xff] %v2848
                  %v2850 = vld [vmem:[%s2846 + $0x8] sm:$0xff]
                  %2851 = vst [vmem:[%s2847 + $0x8] sm:$0xff] %v2850
                  %v2852 = vld [vmem:[%s2846 + $0x10] sm:$0xff]
                  %2853 = vst [vmem:[%s2847 + $0x20] sm:$0xff] %v2852
                  %v2854 = vld [vmem:[%s2846 + $0x18] sm:$0xff]
                  %2855 = vst [vmem:[%s2847 + $0x28] sm:$0xff] %v2854
                $region168: #{tpu_custom_call.1} parent=162 // loop_footer
                  %s2845 = sadd.s32 1, %s2841
                $region169: #{tpu_custom_call.1} parent=162 // loop_footer_branch
                  %2840 = sbr.rel target = $region165
                $region170: #{tpu_custom_call.1} parent=162 // loop_exit
                  _
              $region163: #{tpu_custom_call.1} parent=147 // pred_fallthru
                _
              // Predicated region
              $region171: #{tpu_custom_call.1} parent=147 // pred_check
                _
              $region172: #{tpu_custom_call.1} parent=147 // pred_check_branch
                %2857 = sbr.rel target = $region174
              $region173: #{tpu_custom_call.1} parent=147 // pred_region
                _
              $region174: #{tpu_custom_call.1} parent=147 // pred_fallthru
                _
            $region148: #{tpu_custom_call.1} parent=143 // pred_fallthru
              _
            // Predicated region
            $region149: #{tpu_custom_call.1} parent=143 // pred_check
              _
            $region150: #{tpu_custom_call.1} parent=143 // pred_check_branch
              %2819 = sbr.rel target = $region152
            $region151: #{tpu_custom_call.1} parent=143 // pred_region
              %s2821 = ssub.s32 256, 1
              loop: start=0, step=1, limit=1
              $region153: #{tpu_custom_call.1} parent=151 // loop_pre_header
                _
              $region154: #{tpu_custom_call.1} parent=151 // loop_header
                %s2823 = sphi 0, %s2827
                %p2824 = scmp.ge.s32.totalorder %s2823, 1
                %s2828 = sphi %s2794, %s2794
                %s2829 = sphi %s2813, %s2813
              $region155: #{tpu_custom_call.1} parent=151 // loop_header_branch
                %2826 = sbr.rel (%p2824) target = $region159
              $region156: #{tpu_custom_call.1} parent=151 // loop_body
                %v2830 = vld [vmem:[%s2828] sm:%s2821]
                %2831 = vst [vmem:[%s2829] sm:%s2821] %v2830
                %v2832 = vld [vmem:[%s2828 + $0x8] sm:%s2821]
                %2833 = vst [vmem:[%s2829 + $0x8] sm:%s2821] %v2832
                %v2834 = vld [vmem:[%s2828 + $0x10] sm:%s2821]
                %2835 = vst [vmem:[%s2829 + $0x20] sm:%s2821] %v2834
                %v2836 = vld [vmem:[%s2828 + $0x18] sm:%s2821]
                %2837 = vst [vmem:[%s2829 + $0x28] sm:%s2821] %v2836
              $region157: #{tpu_custom_call.1} parent=151 // loop_footer
                %s2827 = sadd.s32 1, %s2823
              $region158: #{tpu_custom_call.1} parent=151 // loop_footer_branch
                %2822 = sbr.rel target = $region154
              $region159: #{tpu_custom_call.1} parent=151 // loop_exit
                _
            $region152: #{tpu_custom_call.1} parent=143 // pred_fallthru
              _
          $region144: #{tpu_custom_call.1} parent=139 // pred_fallthru
            _
          %2858 = vnop
        $region140: #{tpu_custom_call.1} parent=99 // pred_fallthru
          _
      $region100: #{tpu_custom_call.1} parent=5 // pred_fallthru
        _
      %p2859 = scmp.le.s32.totalorder 2, %s40
      // Predicated region
      $region175: #{tpu_custom_call.1} parent=5 // pred_check
        %p2860 = pneg %p2859
      $region176: #{tpu_custom_call.1} parent=5 // pred_check_branch
        %2862 = sbr.rel (%p2860) target = $region178
      $region177: #{tpu_custom_call.1} parent=5 // pred_region
        %s2863 = ssub.s32 %s40, 2
        // Predicated region
        $region179: #{tpu_custom_call.1} parent=177 // pred_check
          %p2864 = pneg %p504
        $region180: #{tpu_custom_call.1} parent=177 // pred_check_branch
          %2866 = sbr.rel (%p2864) target = $region182
        $region181: #{tpu_custom_call.1} parent=177 // pred_region
          %s2867 = sand.u32 %s489, 1
          %s2868 = scalar_lea.sflag [#allocation4], %s2867
          %s2869 = sand.u32 %s489, 1
          %s2870 = smul.addr %s2869, 8
          %s2871 = scalar_lea.vmem [#allocation16], %s2870
          %2872 = dma.done %s2868, 128
        $region182: #{tpu_custom_call.1} parent=177 // pred_fallthru
          _
        // Predicated region
        $region183: #{tpu_custom_call.1} parent=177 // pred_check
          %p2873 = pneg %p530
        $region184: #{tpu_custom_call.1} parent=177 // pred_check_branch
          %2875 = sbr.rel (%p2873) target = $region186
        $region185: #{tpu_custom_call.1} parent=177 // pred_region
          %s2876 = sand.u32 %s515, 1
          %s2877 = sand.u32 %s515, 1
          %s2878 = smul.addr %s2877, 32
          %s2879 = scalar_lea.vmem [#allocation17], %s2878
        $region186: #{tpu_custom_call.1} parent=177 // pred_fallthru
          _
      $region178: #{tpu_custom_call.1} parent=5 // pred_fallthru
        _
    $region6: #{tpu_custom_call.1} parent=1 // loop_footer
      %s44 = sadd.s32 1, %s40
    $region7: #{tpu_custom_call.1} parent=1 // loop_footer_branch
      %39 = sbr.rel target = $region3
    $region8: #{tpu_custom_call.1} parent=1 // loop_exit
      _
    %2880 = vsyncpa [#allocation3], 1
    %s2881 = scalar_lea.sflag [#allocation3], 1
    %2882 = vsyncpa %s2881, 1
    %2883 = vsyncpa [#allocation6], 1
    %2884 = vsyncpa [#allocation9], 1
    %s2885 = scalar_lea.sflag [#allocation9], 1
    %2886 = vsyncpa %s2885, 1
    %2887 = vsyncpa [#allocation12], 1
    %2888 = vsyncpa [#allocation15], 1
    %2889 = vsyncpa [#allocation4], 1
    %s2890 = scalar_lea.sflag [#allocation4], 1
    %2891 = vsyncpa %s2890, 1

</llo_original>
